<compile_context>
chip_gen: v5e
topology: v5e:2x2
jax: 0.10.0
libtpu: 0.0.40
codegen_flags: <defaults>
</compile_context>

<pallas_src>
from functools import partial

import jax
import jax.numpy as jnp
from jax.experimental import pallas as pl
from jax.experimental.pallas import tpu as pltpu


# ---------------------------------------------------------------------------
# helpers
# ---------------------------------------------------------------------------
def _round_up(x, m):
    return ((x + m - 1) // m) * m


def _cdiv(a, b):
    return (a + b - 1) // b


def _pad2(w, rows, cols):
    return jnp.pad(w, ((0, rows - w.shape[0]), (0, cols - w.shape[1])))


# ---------------------------------------------------------------------------
# kernel
# ---------------------------------------------------------------------------
def _critic_kernel(
    obs_ref, act_ref,
    wt_ref, bt_ref, ln_g_ref, ln_b_ref,
    w1_ref, b1_ref,
    q1_w2_ref, q1_b2_ref, q2_w2_ref, q2_b2_ref,
    q1_w3_ref, q2_w3_ref, b3_ref,
    out_ref, acc_ref,
    *, inv_f, f_dim, f_pad, h_pad, tk, repr_dim, wt_resident, mask_k,
):
    k = pl.program_id(1)

    # ---- trunk matmul, K-streamed, accumulated in f32 VMEM scratch --------
    obs_t = obs_ref[...]                                   # f32 (TB, TK)
    if mask_k:
        # obs is unpadded in HBM: the last K tile only partially overlaps
        # repr_dim, so out-of-bounds lanes hold unspecified data -> mask to 0.
        lane = jax.lax.broadcasted_iota(jnp.int32, obs_t.shape, 1)
        obs_t = jnp.where(lane + k * tk < repr_dim, obs_t, 0.0)
    obs_b = obs_t.astype(jnp.bfloat16)

    if wt_resident:
        # whole trunk weight is VMEM-resident: slice the current K tile.
        k0 = pl.multiple_of(k * tk, tk)
        w_blk = wt_ref[pl.ds(k0, tk), :]                   # (TK, F_pad) bf16
    else:
        w_blk = wt_ref[...]                                # streamed (TK, F_pad)

    d = jnp.dot(obs_b, w_blk, preferred_element_type=jnp.float32)

    @pl.when(k == 0)
    def _first():
        acc_ref[...] = d          # direct assign: no zero-init store+reload

    @pl.when(k > 0)
    def _accum():
        acc_ref[...] += d

    # ---- finalize on the last K step: LN + tanh + both Q heads ------------
    @pl.when(k == pl.num_programs(1) - 1)
    def _finalize():
        t = acc_ref[...] + bt_ref[...]                     # f32 (TB, F_pad)

        # LayerNorm over the true feature count (two-pass variance; padded
        # lanes of t are exact zeros but (t - mean) is not, so mask them).
        mean = jnp.sum(t, axis=-1, keepdims=True) * inv_f
        cent = t - mean
        if f_pad > f_dim:
            lane_f = jax.lax.broadcasted_iota(jnp.int32, cent.shape, 1)
            cent_v = jnp.where(lane_f < f_dim, cent, 0.0)
        else:
            cent_v = cent
        var = jnp.sum(cent_v * cent_v, axis=-1, keepdims=True) * inv_f
        # gamma/beta padding is 0 -> padded lanes of h are exactly tanh(0)=0
        h = jnp.tanh(cent * jax.lax.rsqrt(var + 1e-5) * ln_g_ref[...]
                     + ln_b_ref[...])

        # Single fused K=(F_pad+A_pad) dot for BOTH heads' first layers:
        #   cat(h, a) @ [[W1h_q1 | W1h_q2], [W1a_q1 | W1a_q2]]
        ha = jnp.concatenate(
            [h.astype(jnp.bfloat16), act_ref[...].astype(jnp.bfloat16)],
            axis=-1)                                       # (TB, F_pad+A_pad)
        x = jnp.dot(ha, w1_ref[...], preferred_element_type=jnp.float32)
        x = jnp.maximum(x + b1_ref[...], 0.0)              # (TB, 2*H_pad) f32
        x1 = x[:, :h_pad].astype(jnp.bfloat16)
        x2 = x[:, h_pad:].astype(jnp.bfloat16)

        # Second layer per head.
        y1 = jnp.maximum(
            jnp.dot(x1, q1_w2_ref[...], preferred_element_type=jnp.float32)
            + q1_b2_ref[...], 0.0)
        y2 = jnp.maximum(
            jnp.dot(x2, q2_w2_ref[...], preferred_element_type=jnp.float32)
            + q2_b2_ref[...], 0.0)

        # hidden -> 1: VPU multiply + lane reduction (avoid N=1 MXU matmul).
        q1 = jnp.sum(y1 * q1_w3_ref[...], axis=-1, keepdims=True)   # (TB, 1)
        q2 = jnp.sum(y2 * q2_w3_ref[...], axis=-1, keepdims=True)   # (TB, 1)

        # Lane-dense output block: q1 in lane 0, q2 in lane 1, rest 0.
        lane_o = jax.lax.broadcasted_iota(jnp.int32, out_ref.shape, 1)
        out_ref[...] = (jnp.where(lane_o == 0, q1, 0.0)
                        + jnp.where(lane_o == 1, q2, 0.0)
                        + b3_ref[...])


# ---------------------------------------------------------------------------
# parameter packing (pad to (8,128) multiples, fuse heads, cast matmul wts bf16)
# ---------------------------------------------------------------------------
def pack_params(p, repr_dim, action_dim, feature_dim, hidden_dim, *, tk_max=2048):
    TK = min(tk_max, _round_up(repr_dim, 128))
    R_pad = _round_up(repr_dim, TK)
    F_pad = _round_up(feature_dim, 128)
    H_pad = _round_up(hidden_dim, 128)
    A_pad = _round_up(action_dim, 128)
    OUT_pad = 128

    packed = {}
    # trunk (matmul weight -> bf16; LN params / bias stay f32)
    packed["wt"] = _pad2(p["wt"], R_pad, F_pad).astype(jnp.bfloat16)
    packed["bt"] = _pad2(p["bt"], 1, F_pad)
    packed["ln_g"] = _pad2(p["ln_g"], 1, F_pad)
    packed["ln_b"] = _pad2(p["ln_b"], 1, F_pad)

    # fused first layer of both heads, feature rows stacked over action rows:
    #   [ q1_w1h | q2_w1h ]
    #   [ q1_w1a | q2_w1a ]   -> (F_pad + A_pad, 2*H_pad) bf16
    w1_h = jnp.concatenate([_pad2(p["q1_w1h"], F_pad, H_pad),
                            _pad2(p["q2_w1h"], F_pad, H_pad)], axis=1)
    w1_a = jnp.concatenate([_pad2(p["q1_w1a"], A_pad, H_pad),
                            _pad2(p["q2_w1a"], A_pad, H_pad)], axis=1)
    packed["w1"] = jnp.concatenate([w1_h, w1_a], axis=0).astype(jnp.bfloat16)
    packed["b1"] = jnp.concatenate([_pad2(p["q1_b1"], 1, H_pad),
                                    _pad2(p["q2_b1"], 1, H_pad)], axis=1)

    # second layers
    packed["q1_w2"] = _pad2(p["q1_w2"], H_pad, H_pad).astype(jnp.bfloat16)
    packed["q2_w2"] = _pad2(p["q2_w2"], H_pad, H_pad).astype(jnp.bfloat16)
    packed["q1_b2"] = _pad2(p["q1_b2"], 1, H_pad)
    packed["q2_b2"] = _pad2(p["q2_b2"], 1, H_pad)

    # final hidden->1 layers stored as f32 rows for the VPU reduction
    packed["q1_w3"] = _pad2(p["q1_w3"].T, 1, H_pad)
    packed["q2_w3"] = _pad2(p["q2_w3"].T, 1, H_pad)
    b3 = jnp.zeros((1, OUT_pad), jnp.float32)
    b3 = b3.at[0, 0].set(p["q1_b3"][0, 0]).at[0, 1].set(p["q2_b3"][0, 0])
    packed["b3"] = b3

    meta = dict(repr_dim=repr_dim, action_dim=action_dim,
                feature_dim=feature_dim, hidden_dim=hidden_dim,
                TK=TK, R_pad=R_pad, F_pad=F_pad, H_pad=H_pad,
                A_pad=A_pad, OUT_pad=OUT_pad)
    return packed, meta


# ---------------------------------------------------------------------------
# forward wrapper
# ---------------------------------------------------------------------------
def critic_forward(obs, action, packed, meta, *, tb=None,
                   wt_resident_max_bytes=12 * 1024 * 1024):
    B = obs.shape[0]
    TK, R_pad = meta["TK"], meta["R_pad"]
    F_pad, H_pad = meta["F_pad"], meta["H_pad"]
    A_pad, OUT_pad = meta["A_pad"], meta["OUT_pad"]
    repr_dim, feature_dim = meta["repr_dim"], meta["feature_dim"]

    # --- batch tiling: big tiles; prefer an even tile count (v7x 2-TC) -----
    if tb is None:
        tb = 512
    TB = min(_round_up(tb, 8), _round_up(B, 8))
    nbt = _cdiv(B, TB)
    if nbt > 1 and nbt % 2 == 1:
        for target in (nbt + 1, nbt - 1):
            if target <= 0:
                continue
            tb2 = _round_up(_cdiv(B, target), 8)
            if _cdiv(B, tb2) % 2 == 0:
                TB = tb2
                nbt = _cdiv(B, TB)
                break
    nkt = _cdiv(repr_dim, TK)

    # obs stays f32 and unpadded (in-kernel bf16 cast + OOB lane mask);
    # action is tiny, pad its lanes once so zeros are exact.
    act_p = jnp.pad(action, ((0, 0), (0, A_pad - meta["action_dim"])))

    wt = packed["wt"]
    wt_resident = wt.size * wt.dtype.itemsize <= wt_resident_max_bytes

    kernel = partial(
        _critic_kernel,
        inv_f=1.0 / float(feature_dim), f_dim=feature_dim, f_pad=F_pad,
        h_pad=H_pad, tk=TK, repr_dim=repr_dim,
        wt_resident=wt_resident, mask_k=(repr_dim % TK != 0))

    def run(single_buffer):
        def rspec(shape):
            # resident params: constant index_map -> fetched once; single
            # buffered so they don't double their VMEM footprint (v7x 64 MiB).
            if single_buffer:
                return pl.BlockSpec(shape, lambda i, k: (0, 0),
                                    pipeline_mode=pl.Buffered(1))
            return pl.BlockSpec(shape, lambda i, k: (0, 0))

        if wt_resident:
            wt_spec = rspec((R_pad, F_pad))      # whole trunk weight in VMEM
        else:
            # too big to keep resident: stream K tiles (default double-buffer)
            wt_spec = pl.BlockSpec((TK, F_pad), lambda i, k: (k, 0))

        out = pl.pallas_call(
            kernel,
            out_shape=jax.ShapeDtypeStruct((B, OUT_pad), jnp.float32),
            grid_spec=pltpu.PrefetchScalarGridSpec(
                num_scalar_prefetch=0,
                grid=(nbt, nkt),
                in_specs=[
                    pl.BlockSpec((TB, TK), lambda i, k: (i, k)),      # obs f32
                    pl.BlockSpec((TB, A_pad), lambda i, k: (i, 0)),   # action
                    wt_spec,                                          # trunk W
                    rspec((1, F_pad)),                                # trunk b
                    rspec((1, F_pad)),                                # LN gamma
                    rspec((1, F_pad)),                                # LN beta
                    rspec((F_pad + A_pad, 2 * H_pad)),                # fused W1
                    rspec((1, 2 * H_pad)),                            # fused b1
                    rspec((H_pad, H_pad)),                            # Q1 W2
                    rspec((1, H_pad)),                                # Q1 b2
                    rspec((H_pad, H_pad)),                            # Q2 W2
                    rspec((1, H_pad)),                                # Q2 b2
                    rspec((1, H_pad)),                                # Q1 w3 row
                    rspec((1, H_pad)),                                # Q2 w3 row
                    rspec((1, OUT_pad)),                              # packed b3
                ],
                out_specs=pl.BlockSpec((TB, OUT_pad), lambda i, k: (i, 0)),
                scratch_shapes=[pltpu.VMEM((TB, F_pad), jnp.float32)],
            ),
            compiler_params=pltpu.CompilerParams(
                # batch axis parallel (megacore), K reduction last & arbitrary
                dimension_semantics=("parallel", "arbitrary"),
                vmem_limit_bytes=48 * 1024 * 1024,   # fits v7x 64 MiB/TC
            ),
        )(obs, act_p, wt,
          packed["bt"], packed["ln_g"], packed["ln_b"],
          packed["w1"], packed["b1"],
          packed["q1_w2"], packed["q1_b2"], packed["q2_w2"], packed["q2_b2"],
          packed["q1_w3"], packed["q2_w3"], packed["b3"])
        return jax.block_until_ready(out)

    try:
        out = run(single_buffer=True)
    except Exception:
        # pl.Buffered(1) unsupported on this JAX version -> default buffering
        out = run(single_buffer=False)

    q1 = out[:, 0:1]
    q2 = out[:, 1:2]
    return q1, q2


# ---------------------------------------------------------------------------
# synthetic init + pure-JAX reference (for correctness)
# ---------------------------------------------------------------------------
def init_params(key, repr_dim, action_dim, feature_dim, hidden_dim):
    """Deterministic synthetic init (stands in for utils.weight_init)."""
    ks = jax.random.split(key, 8)

    def lin(k, fan_in, fan_out):
        # weight stored [in, out] (transpose of nn.Linear's [out, in])
        return (jax.random.normal(k, (fan_in, fan_out), jnp.float32)
                * (1.0 / jnp.sqrt(fan_in)))

    p = {}
    p["wt"] = lin(ks[0], repr_dim, feature_dim)
    p["bt"] = jnp.zeros((1, feature_dim), jnp.float32)
    p["ln_g"] = jnp.ones((1, feature_dim), jnp.float32)
    p["ln_b"] = jnp.zeros((1, feature_dim), jnp.float32)
    p["q1_w1h"] = lin(ks[1], feature_dim, hidden_dim)
    p["q1_w1a"] = lin(ks[2], action_dim, hidden_dim)
    p["q1_b1"] = jnp.zeros((1, hidden_dim), jnp.float32)
    p["q1_w2"] = lin(ks[3], hidden_dim, hidden_dim)
    p["q1_b2"] = jnp.zeros((1, hidden_dim), jnp.float32)
    p["q1_w3"] = lin(ks[4], hidden_dim, 1)
    p["q1_b3"] = jnp.zeros((1, 1), jnp.float32)
    p["q2_w1h"] = lin(ks[5], feature_dim, hidden_dim)
    p["q2_w1a"] = lin(ks[6], action_dim, hidden_dim)
    p["q2_b1"] = jnp.zeros((1, hidden_dim), jnp.float32)
    p["q2_w2"] = lin(ks[7], hidden_dim, hidden_dim)
    p["q2_b2"] = jnp.zeros((1, hidden_dim), jnp.float32)
    p["q2_w3"] = lin(jax.random.fold_in(key, 99), hidden_dim, 1)
    p["q2_b3"] = jnp.zeros((1, 1), jnp.float32)
    return p


def critic_reference(obs, action, p):
    """Pure-JAX f32 reference of the PyTorch forward."""
    t = obs @ p["wt"] + p["bt"]
    mean = jnp.mean(t, axis=-1, keepdims=True)
    var = jnp.mean((t - mean) ** 2, axis=-1, keepdims=True)
    t = (t - mean) / jnp.sqrt(var + 1e-5) * p["ln_g"] + p["ln_b"]
    h = jnp.tanh(t)
    ha = jnp.concatenate([h, action], axis=-1)

    def head(prefix):
        w1 = jnp.concatenate([p[prefix + "_w1h"], p[prefix + "_w1a"]], axis=0)
        x = jnp.maximum(ha @ w1 + p[prefix + "_b1"], 0.0)
        x = jnp.maximum(x @ p[prefix + "_w2"] + p[prefix + "_b2"], 0.0)
        return x @ p[prefix + "_w3"] + p[prefix + "_b3"]

    return head("q1"), head("q2")


# ---------------------------------------------------------------------------
if __name__ == "__main__":
    # small shapes consistent with the module; chosen so the test exercises
    # multiple batch tiles, multiple K steps, the in-kernel K masking
    # (300 % 128 != 0) and the partial last batch block.
    B, REPR_DIM, ACTION_DIM, FEATURE_DIM, HIDDEN_DIM = 24, 300, 4, 50, 64

    key = jax.random.PRNGKey(0)
    k_obs, k_act, k_par = jax.random.split(key, 3)

    obs = jax.random.normal(k_obs, (B, REPR_DIM), jnp.float32)
    action = jax.random.normal(k_act, (B, ACTION_DIM), jnp.float32)
    params = init_params(k_par, REPR_DIM, ACTION_DIM, FEATURE_DIM, HIDDEN_DIM)

    q1_ref, q2_ref = critic_reference(obs, action, params)

    # tk_max=128 -> 3 K steps; tb=8 -> batch tiles (production: tk_max=2048, tb=512)
    packed, meta = pack_params(params, REPR_DIM, ACTION_DIM, FEATURE_DIM,
                               HIDDEN_DIM, tk_max=128)

    # 1) VMEM-resident trunk-weight path (production default)
    q1, q2 = critic_forward(obs, action, packed, meta, tb=8)
    jax.block_until_ready((q1, q2))
    assert q1.shape == (B, 1) and q2.shape == (B, 1)
    # tolerance loosened vs pure f32 because matmul operands are bf16 in-kernel
    assert jnp.allclose(q1, q1_ref, atol=5e-2, rtol=5e-2), \
        f"q1 max err {jnp.max(jnp.abs(q1 - q1_ref))}"
    assert jnp.allclose(q2, q2_ref, atol=5e-2, rtol=5e-2), \
        f"q2 max err {jnp.max(jnp.abs(q2 - q2_ref))}"

    # 2) streamed trunk-weight fallback (used when the weight exceeds the VMEM budget)
    q1s, q2s = critic_forward(obs, action, packed, meta, tb=8,
                              wt_resident_max_bytes=0)
    jax.block_until_ready((q1s, q2s))
    assert jnp.allclose(q1s, q1_ref, atol=5e-2, rtol=5e-2), \
        f"q1(streamed) max err {jnp.max(jnp.abs(q1s - q1_ref))}"
    assert jnp.allclose(q2s, q2_ref, atol=5e-2, rtol=5e-2), \
        f"q2(streamed) max err {jnp.max(jnp.abs(q2s - q2_ref))}"

    print("KERNEL_OK")
</pallas_src>

<mosaic_0001>
module attributes {stable_mosaic.version = 11 : i64} {
  func.func @_critic_kernel(%arg0: i32, %arg1: i32, %arg2: memref<16x128xf32, #tpu.memory_space<vmem>>, %arg3: memref<16x128xf32, #tpu.memory_space<vmem>>, %arg4: memref<384x128xbf16, #tpu.memory_space<vmem>>, %arg5: memref<1x128xf32, #tpu.memory_space<vmem>>, %arg6: memref<1x128xf32, #tpu.memory_space<vmem>>, %arg7: memref<1x128xf32, #tpu.memory_space<vmem>>, %arg8: memref<256x256xbf16, #tpu.memory_space<vmem>>, %arg9: memref<1x256xf32, #tpu.memory_space<vmem>>, %arg10: memref<128x128xbf16, #tpu.memory_space<vmem>>, %arg11: memref<1x128xf32, #tpu.memory_space<vmem>>, %arg12: memref<128x128xbf16, #tpu.memory_space<vmem>>, %arg13: memref<1x128xf32, #tpu.memory_space<vmem>>, %arg14: memref<1x128xf32, #tpu.memory_space<vmem>>, %arg15: memref<1x128xf32, #tpu.memory_space<vmem>>, %arg16: memref<1x128xf32, #tpu.memory_space<vmem>>, %arg17: memref<16x128xf32, #tpu.memory_space<vmem>>, %arg18: memref<16x128xf32, #tpu.memory_space<vmem>>) attributes {dimension_semantics = [#tpu.dimension_semantics<parallel>, #tpu.dimension_semantics<arbitrary>], iteration_bounds = array<i64: 2, 3>, scalar_prefetch = 0 : i64, scratch_operands = 1 : i64, tpu.core_type = #tpu.core_type<tc>, window_params = [{transform_indices = @transform_0, window_bounds = array<i64: 16, 128>}, {transform_indices = @transform_1, window_bounds = array<i64: 16, 128>}, {pipeline_mode = #tpu.pipeline_mode<synchronous>, transform_indices = @transform_2, window_bounds = array<i64: 384, 128>}, {pipeline_mode = #tpu.pipeline_mode<synchronous>, transform_indices = @transform_3, window_bounds = array<i64: 1, 128>}, {pipeline_mode = #tpu.pipeline_mode<synchronous>, transform_indices = @transform_4, window_bounds = array<i64: 1, 128>}, {pipeline_mode = #tpu.pipeline_mode<synchronous>, transform_indices = @transform_5, window_bounds = array<i64: 1, 128>}, {pipeline_mode = #tpu.pipeline_mode<synchronous>, transform_indices = @transform_6, window_bounds = array<i64: 256, 256>}, {pipeline_mode = #tpu.pipeline_mode<synchronous>, transform_indices = @transform_7, window_bounds = array<i64: 1, 256>}, {pipeline_mode = #tpu.pipeline_mode<synchronous>, transform_indices = @transform_8, window_bounds = array<i64: 128, 128>}, {pipeline_mode = #tpu.pipeline_mode<synchronous>, transform_indices = @transform_9, window_bounds = array<i64: 1, 128>}, {pipeline_mode = #tpu.pipeline_mode<synchronous>, transform_indices = @transform_10, window_bounds = array<i64: 128, 128>}, {pipeline_mode = #tpu.pipeline_mode<synchronous>, transform_indices = @transform_11, window_bounds = array<i64: 1, 128>}, {pipeline_mode = #tpu.pipeline_mode<synchronous>, transform_indices = @transform_12, window_bounds = array<i64: 1, 128>}, {pipeline_mode = #tpu.pipeline_mode<synchronous>, transform_indices = @transform_13, window_bounds = array<i64: 1, 128>}, {pipeline_mode = #tpu.pipeline_mode<synchronous>, transform_indices = @transform_14, window_bounds = array<i64: 1, 128>}, {transform_indices = @transform_15, window_bounds = array<i64: 16, 128>}]} {
    %c0 = arith.constant 0 : index
    %c0_0 = arith.constant 0 : index
    %0 = vector.load %arg2[%c0, %c0_0] : memref<16x128xf32, #tpu.memory_space<vmem>>, vector<16x128xf32>
    %1 = tpu.iota {dimensions = array<i32: 1>} : vector<16x128xi32>
    %c128_i32 = arith.constant 128 : i32
    %2 = arith.muli %arg1, %c128_i32 : i32
    %3 = vector.broadcast %2 : i32 to vector<16x128xi32>
    %4 = arith.addi %1, %3 : vector<16x128xi32>
    %c300_i32 = arith.constant 300 : i32
    %5 = vector.broadcast %c300_i32 : i32 to vector<16x128xi32>
    %6 = arith.cmpi slt, %4, %5 : vector<16x128xi32>
    %cst = arith.constant 0.000000e+00 : f32
    %7 = vector.broadcast %cst : f32 to vector<16x128xf32>
    %8 = arith.select %6, %0, %7 : vector<16x128xi1>, vector<16x128xf32>
    %9 = arith.truncf %8 : vector<16x128xf32> to vector<16x128xbf16>
    %c128_i32_1 = arith.constant 128 : i32
    %10 = arith.muli %arg1, %c128_i32_1 : i32
    %11 = tpu.assume_multiple %10, 128 : i32
    %12 = arith.index_cast %11 : i32 to index
    %c0_2 = arith.constant 0 : index
    %13 = vector.load %arg4[%12, %c0_2] : memref<384x128xbf16, #tpu.memory_space<vmem>>, vector<128x128xbf16>
    %cst_3 = arith.constant dense<0.000000e+00> : vector<16x128xf32>
    %14 = tpu.matmul %9, %13, %cst_3 {dimension_numbers = #tpu.dot_dimension_numbers<[1], [0], [0], [1], [0, 0, 1, 1], [], []>} : vector<16x128xbf16>, vector<128x128xbf16>, vector<16x128xf32> -> vector<16x128xf32>
    %c0_i32 = arith.constant 0 : i32
    %15 = arith.cmpi eq, %arg1, %c0_i32 : i32
    %16 = arith.extui %15 : i1 to i32
    %c0_i32_4 = arith.constant 0 : i32
    %17 = arith.cmpi ne, %16, %c0_i32_4 : i32
    scf.if %17 {
      %c0_8 = arith.constant 0 : index
      %c0_9 = arith.constant 0 : index
      %24 = vector.load %arg18[%c0_8, %c0_9] : memref<16x128xf32, #tpu.memory_space<vmem>>, vector<16x128xf32>
      tpu.vector_store %arg18[%c0_8, %c0_9], %14 {strides = array<i32>} : memref<16x128xf32, #tpu.memory_space<vmem>>, vector<16x128xf32>,
    } else {
    }
    %c0_i32_5 = arith.constant 0 : i32
    %18 = arith.cmpi sgt, %arg1, %c0_i32_5 : i32
    %19 = arith.extui %18 : i1 to i32
    %c0_i32_6 = arith.constant 0 : i32
    %20 = arith.cmpi ne, %19, %c0_i32_6 : i32
    scf.if %20 {
      %c0_8 = arith.constant 0 : index
      %c0_9 = arith.constant 0 : index
      %24 = vector.load %arg18[%c0_8, %c0_9] : memref<16x128xf32, #tpu.memory_space<vmem>>, vector<16x128xf32>
      %25 = arith.addf %24, %14 : vector<16x128xf32>
      %c0_10 = arith.constant 0 : index
      %c0_11 = arith.constant 0 : index
      %26 = vector.load %arg18[%c0_10, %c0_11] : memref<16x128xf32, #tpu.memory_space<vmem>>, vector<16x128xf32>
      tpu.vector_store %arg18[%c0_10, %c0_11], %25 {strides = array<i32>} : memref<16x128xf32, #tpu.memory_space<vmem>>, vector<16x128xf32>,
    } else {
    }
    %c2_i32 = arith.constant 2 : i32
    %21 = arith.cmpi eq, %arg1, %c2_i32 : i32
    %22 = arith.extui %21 : i1 to i32
    %c0_i32_7 = arith.constant 0 : i32
    %23 = arith.cmpi ne, %22, %c0_i32_7 : i32
    scf.if %23 {
      %c0_8 = arith.constant 0 : index
      %c0_9 = arith.constant 0 : index
      %24 = vector.load %arg18[%c0_8, %c0_9] : memref<16x128xf32, #tpu.memory_space<vmem>>, vector<16x128xf32>
      %c0_10 = arith.constant 0 : index
      %c0_11 = arith.constant 0 : index
      %25 = vector.load %arg5[%c0_10, %c0_11] : memref<1x128xf32, #tpu.memory_space<vmem>>, vector<1x128xf32>
      %26 = vector.broadcast %25 : vector<1x128xf32> to vector<16x128xf32>
      %27 = arith.addf %24, %26 : vector<16x128xf32>
      %cst_12 = arith.constant dense<0.000000e+00> : vector<16xf32>
      %28 = vector.multi_reduction <add>, %27, %cst_12 [1] : vector<16x128xf32> to vector<16xf32>
      %29 = vector.shape_cast %28 : vector<16xf32> to vector<16x1xf32>
      %cst_13 = arith.constant 2.000000e-02 : f32
      %30 = vector.broadcast %cst_13 : f32 to vector<16x1xf32>
      %31 = arith.mulf %29, %30 : vector<16x1xf32>
      %32 = vector.broadcast %31 : vector<16x1xf32> to vector<16x128xf32>
      %33 = arith.subf %27, %32 : vector<16x128xf32>
      %34 = tpu.iota {dimensions = array<i32: 1>} : vector<16x128xi32>
      %c50_i32 = arith.constant 50 : i32
      %35 = vector.broadcast %c50_i32 : i32 to vector<16x128xi32>
      %36 = arith.cmpi slt, %34, %35 : vector<16x128xi32>
      %cst_14 = arith.constant 0.000000e+00 : f32
      %37 = vector.broadcast %cst_14 : f32 to vector<16x128xf32>
      %38 = arith.select %36, %33, %37 : vector<16x128xi1>, vector<16x128xf32>
      %39 = arith.mulf %38, %38 : vector<16x128xf32>
      %cst_15 = arith.constant dense<0.000000e+00> : vector<16xf32>
      %40 = vector.multi_reduction <add>, %39, %cst_15 [1] : vector<16x128xf32> to vector<16xf32>
      %41 = vector.shape_cast %40 : vector<16xf32> to vector<16x1xf32>
      %cst_16 = arith.constant 2.000000e-02 : f32
      %42 = vector.broadcast %cst_16 : f32 to vector<16x1xf32>
      %43 = arith.mulf %41, %42 : vector<16x1xf32>
      %cst_17 = arith.constant 9.99999974E-6 : f32
      %44 = vector.broadcast %cst_17 : f32 to vector<16x1xf32>
      %45 = arith.addf %43, %44 : vector<16x1xf32>
      %46 = math.rsqrt %45 : vector<16x1xf32>
      %47 = vector.broadcast %46 : vector<16x1xf32> to vector<16x128xf32>
      %48 = arith.mulf %33, %47 : vector<16x128xf32>
      %c0_18 = arith.constant 0 : index
      %c0_19 = arith.constant 0 : index
      %49 = vector.load %arg6[%c0_18, %c0_19] : memref<1x128xf32, #tpu.memory_space<vmem>>, vector<1x128xf32>
      %50 = vector.broadcast %49 : vector<1x128xf32> to vector<16x128xf32>
      %51 = arith.mulf %48, %50 : vector<16x128xf32>
      %c0_20 = arith.constant 0 : index
      %c0_21 = arith.constant 0 : index
      %52 = vector.load %arg7[%c0_20, %c0_21] : memref<1x128xf32, #tpu.memory_space<vmem>>, vector<1x128xf32>
      %53 = vector.broadcast %52 : vector<1x128xf32> to vector<16x128xf32>
      %54 = arith.addf %51, %53 : vector<16x128xf32>
      %55 = math.tanh %54 : vector<16x128xf32>
      %56 = arith.truncf %55 : vector<16x128xf32> to vector<16x128xbf16>
      %c0_22 = arith.constant 0 : index
      %c0_23 = arith.constant 0 : index
      %57 = vector.load %arg3[%c0_22, %c0_23] : memref<16x128xf32, #tpu.memory_space<vmem>>, vector<16x128xf32>
      %58 = arith.truncf %57 : vector<16x128xf32> to vector<16x128xbf16>
      %59 = tpu.concatenate %56, %58 in 1 : vector<16x128xbf16>, vector<16x128xbf16> -> vector<16x256xbf16>
      %c0_24 = arith.constant 0 : index
      %c0_25 = arith.constant 0 : index
      %60 = vector.load %arg8[%c0_24, %c0_25] : memref<256x256xbf16, #tpu.memory_space<vmem>>, vector<256x256xbf16>
      %cst_26 = arith.constant dense<0.000000e+00> : vector<16x256xf32>
      %61 = tpu.matmul %59, %60, %cst_26 {dimension_numbers = #tpu.dot_dimension_numbers<[1], [0], [0], [1], [0, 0, 1, 1], [], []>} : vector<16x256xbf16>, vector<256x256xbf16>, vector<16x256xf32> -> vector<16x256xf32>
      %c0_27 = arith.constant 0 : index
      %c0_28 = arith.constant 0 : index
      %62 = vector.load %arg9[%c0_27, %c0_28] : memref<1x256xf32, #tpu.memory_space<vmem>>, vector<1x256xf32>
      %63 = vector.broadcast %62 : vector<1x256xf32> to vector<16x256xf32>
      %64 = arith.addf %61, %63 : vector<16x256xf32>
      %cst_29 = arith.constant 0.000000e+00 : f32
      %65 = vector.broadcast %cst_29 : f32 to vector<16x256xf32>
      %66 = arith.maximumf %64, %65 : vector<16x256xf32>
      %67 = vector.extract_strided_slice %66 {offsets = [0, 0], sizes = [16, 128], strides = [1, 1]} : vector<16x256xf32> to vector<16x128xf32>
      %68 = arith.truncf %67 : vector<16x128xf32> to vector<16x128xbf16>
      %69 = vector.extract_strided_slice %66 {offsets = [0, 128], sizes = [16, 128], strides = [1, 1]} : vector<16x256xf32> to vector<16x128xf32>
      %70 = arith.truncf %69 : vector<16x128xf32> to vector<16x128xbf16>
      %c0_30 = arith.constant 0 : index
      %c0_31 = arith.constant 0 : index
      %71 = vector.load %arg10[%c0_30, %c0_31] : memref<128x128xbf16, #tpu.memory_space<vmem>>, vector<128x128xbf16>
      %cst_32 = arith.constant dense<0.000000e+00> : vector<16x128xf32>
      %72 = tpu.matmul %68, %71, %cst_32 {dimension_numbers = #tpu.dot_dimension_numbers<[1], [0], [0], [1], [0, 0, 1, 1], [], []>} : vector<16x128xbf16>, vector<128x128xbf16>, vector<16x128xf32> -> vector<16x128xf32>
      %c0_33 = arith.constant 0 : index
      %c0_34 = arith.constant 0 : index
      %73 = vector.load %arg11[%c0_33, %c0_34] : memref<1x128xf32, #tpu.memory_space<vmem>>, vector<1x128xf32>
      %74 = vector.broadcast %73 : vector<1x128xf32> to vector<16x128xf32>
      %75 = arith.addf %72, %74 : vector<16x128xf32>
      %cst_35 = arith.constant 0.000000e+00 : f32
      %76 = vector.broadcast %cst_35 : f32 to vector<16x128xf32>
      %77 = arith.maximumf %75, %76 : vector<16x128xf32>
      %c0_36 = arith.constant 0 : index
      %c0_37 = arith.constant 0 : index
      %78 = vector.load %arg12[%c0_36, %c0_37] : memref<128x128xbf16, #tpu.memory_space<vmem>>, vector<128x128xbf16>
      %cst_38 = arith.constant dense<0.000000e+00> : vector<16x128xf32>
      %79 = tpu.matmul %70, %78, %cst_38 {dimension_numbers = #tpu.dot_dimension_numbers<[1], [0], [0], [1], [0, 0, 1, 1], [], []>} : vector<16x128xbf16>, vector<128x128xbf16>, vector<16x128xf32> -> vector<16x128xf32>
      %c0_39 = arith.constant 0 : index
      %c0_40 = arith.constant 0 : index
      %80 = vector.load %arg13[%c0_39, %c0_40] : memref<1x128xf32, #tpu.memory_space<vmem>>, vector<1x128xf32>
      %81 = vector.broadcast %80 : vector<1x128xf32> to vector<16x128xf32>
      %82 = arith.addf %79, %81 : vector<16x128xf32>
      %cst_41 = arith.constant 0.000000e+00 : f32
      %83 = vector.broadcast %cst_41 : f32 to vector<16x128xf32>
      %84 = arith.maximumf %82, %83 : vector<16x128xf32>
      %c0_42 = arith.constant 0 : index
      %c0_43 = arith.constant 0 : index
      %85 = vector.load %arg14[%c0_42, %c0_43] : memref<1x128xf32, #tpu.memory_space<vmem>>, vector<1x128xf32>
      %86 = vector.broadcast %85 : vector<1x128xf32> to vector<16x128xf32>
      %87 = arith.mulf %77, %86 : vector<16x128xf32>
      %cst_44 = arith.constant dense<0.000000e+00> : vector<16xf32>
      %88 = vector.multi_reduction <add>, %87, %cst_44 [1] : vector<16x128xf32> to vector<16xf32>
      %89 = vector.shape_cast %88 : vector<16xf32> to vector<16x1xf32>
      %c0_45 = arith.constant 0 : index
      %c0_46 = arith.constant 0 : index
      %90 = vector.load %arg15[%c0_45, %c0_46] : memref<1x128xf32, #tpu.memory_space<vmem>>, vector<1x128xf32>
      %91 = vector.broadcast %90 : vector<1x128xf32> to vector<16x128xf32>
      %92 = arith.mulf %84, %91 : vector<16x128xf32>
      %cst_47 = arith.constant dense<0.000000e+00> : vector<16xf32>
      %93 = vector.multi_reduction <add>, %92, %cst_47 [1] : vector<16x128xf32> to vector<16xf32>
      %94 = vector.shape_cast %93 : vector<16xf32> to vector<16x1xf32>
      %95 = tpu.iota {dimensions = array<i32: 1>} : vector<16x128xi32>
      %c0_i32_48 = arith.constant 0 : i32
      %96 = vector.broadcast %c0_i32_48 : i32 to vector<16x128xi32>
      %97 = arith.cmpi eq, %95, %96 : vector<16x128xi32>
      %cst_49 = arith.constant 0.000000e+00 : f32
      %98 = vector.shape_cast %89 : vector<16x1xf32> to vector<16x1xf32>
      %99 = vector.broadcast %98 : vector<16x1xf32> to vector<16x128xf32>
      %100 = vector.broadcast %cst_49 : f32 to vector<16x128xf32>
      %101 = arith.select %97, %99, %100 : vector<16x128xi1>, vector<16x128xf32>
      %c1_i32 = arith.constant 1 : i32
      %102 = vector.broadcast %c1_i32 : i32 to vector<16x128xi32>
      %103 = arith.cmpi eq, %95, %102 : vector<16x128xi32>
      %cst_50 = arith.constant 0.000000e+00 : f32
      %104 = vector.shape_cast %94 : vector<16x1xf32> to vector<16x1xf32>
      %105 = vector.broadcast %104 : vector<16x1xf32> to vector<16x128xf32>
      %106 = vector.broadcast %cst_50 : f32 to vector<16x128xf32>
      %107 = arith.select %103, %105, %106 : vector<16x128xi1>, vector<16x128xf32>
      %108 = arith.addf %101, %107 : vector<16x128xf32>
      %c0_51 = arith.constant 0 : index
      %c0_52 = arith.constant 0 : index
      %109 = vector.load %arg16[%c0_51, %c0_52] : memref<1x128xf32, #tpu.memory_space<vmem>>, vector<1x128xf32>
      %110 = vector.broadcast %109 : vector<1x128xf32> to vector<16x128xf32>
      %111 = arith.addf %108, %110 : vector<16x128xf32>
      %c0_53 = arith.constant 0 : index
      %c0_54 = arith.constant 0 : index
      %112 = vector.load %arg17[%c0_53, %c0_54] : memref<16x128xf32, #tpu.memory_space<vmem>>, vector<16x128xf32>
      tpu.vector_store %arg17[%c0_53, %c0_54], %111 {strides = array<i32>} : memref<16x128xf32, #tpu.memory_space<vmem>>, vector<16x128xf32>,
    } else {
    }
    return
  }
  func.func @transform_0(%arg0: i32, %arg1: i32) -> (i32, i32) {
    %c0_i32 = arith.constant 0 : i32
    return %arg0, %arg1 : i32, i32
  }
  func.func @transform_1(%arg0: i32, %arg1: i32) -> (i32, i32) {
    %c0_i32 = arith.constant 0 : i32
    %c0_i32_0 = arith.constant 0 : i32
    return %arg0, %c0_i32 : i32, i32
  }
  func.func @transform_2(%arg0: i32, %arg1: i32) -> (i32, i32) {
    %c0_i32 = arith.constant 0 : i32
    %c0_i32_0 = arith.constant 0 : i32
    %c0_i32_1 = arith.constant 0 : i32
    return %c0_i32, %c0_i32_0 : i32, i32
  }
  func.func @transform_3(%arg0: i32, %arg1: i32) -> (i32, i32) {
    %c0_i32 = arith.constant 0 : i32
    %c0_i32_0 = arith.constant 0 : i32
    %c0_i32_1 = arith.constant 0 : i32
    return %c0_i32, %c0_i32_0 : i32, i32
  }
  func.func @transform_4(%arg0: i32, %arg1: i32) -> (i32, i32) {
    %c0_i32 = arith.constant 0 : i32
    %c0_i32_0 = arith.constant 0 : i32
    %c0_i32_1 = arith.constant 0 : i32
    return %c0_i32, %c0_i32_0 : i32, i32
  }
  func.func @transform_5(%arg0: i32, %arg1: i32) -> (i32, i32) {
    %c0_i32 = arith.constant 0 : i32
    %c0_i32_0 = arith.constant 0 : i32
    %c0_i32_1 = arith.constant 0 : i32
    return %c0_i32, %c0_i32_0 : i32, i32
  }
  func.func @transform_6(%arg0: i32, %arg1: i32) -> (i32, i32) {
    %c0_i32 = arith.constant 0 : i32
    %c0_i32_0 = arith.constant 0 : i32
    %c0_i32_1 = arith.constant 0 : i32
    return %c0_i32, %c0_i32_0 : i32, i32
  }
  func.func @transform_7(%arg0: i32, %arg1: i32) -> (i32, i32) {
    %c0_i32 = arith.constant 0 : i32
    %c0_i32_0 = arith.constant 0 : i32
    %c0_i32_1 = arith.constant 0 : i32
    return %c0_i32, %c0_i32_0 : i32, i32
  }
  func.func @transform_8(%arg0: i32, %arg1: i32) -> (i32, i32) {
    %c0_i32 = arith.constant 0 : i32
    %c0_i32_0 = arith.constant 0 : i32
    %c0_i32_1 = arith.constant 0 : i32
    return %c0_i32, %c0_i32_0 : i32, i32
  }
  func.func @transform_9(%arg0: i32, %arg1: i32) -> (i32, i32) {
    %c0_i32 = arith.constant 0 : i32
    %c0_i32_0 = arith.constant 0 : i32
    %c0_i32_1 = arith.constant 0 : i32
    return %c0_i32, %c0_i32_0 : i32, i32
  }
  func.func @transform_10(%arg0: i32, %arg1: i32) -> (i32, i32) {
    %c0_i32 = arith.constant 0 : i32
    %c0_i32_0 = arith.constant 0 : i32
    %c0_i32_1 = arith.constant 0 : i32
    return %c0_i32, %c0_i32_0 : i32, i32
  }
  func.func @transform_11(%arg0: i32, %arg1: i32) -> (i32, i32) {
    %c0_i32 = arith.constant 0 : i32
    %c0_i32_0 = arith.constant 0 : i32
    %c0_i32_1 = arith.constant 0 : i32
    return %c0_i32, %c0_i32_0 : i32, i32
  }
  func.func @transform_12(%arg0: i32, %arg1: i32) -> (i32, i32) {
    %c0_i32 = arith.constant 0 : i32
    %c0_i32_0 = arith.constant 0 : i32
    %c0_i32_1 = arith.constant 0 : i32
    return %c0_i32, %c0_i32_0 : i32, i32
  }
  func.func @transform_13(%arg0: i32, %arg1: i32) -> (i32, i32) {
    %c0_i32 = arith.constant 0 : i32
    %c0_i32_0 = arith.constant 0 : i32
    %c0_i32_1 = arith.constant 0 : i32
    return %c0_i32, %c0_i32_0 : i32, i32
  }
  func.func @transform_14(%arg0: i32, %arg1: i32) -> (i32, i32) {
    %c0_i32 = arith.constant 0 : i32
    %c0_i32_0 = arith.constant 0 : i32
    %c0_i32_1 = arith.constant 0 : i32
    return %c0_i32, %c0_i32_0 : i32, i32
  }
  func.func @transform_15(%arg0: i32, %arg1: i32) -> (i32, i32) {
    %c0_i32 = arith.constant 0 : i32
    %c0_i32_0 = arith.constant 0 : i32
    return %arg0, %c0_i32 : i32, i32
  }
}

module attributes {stable_mosaic.version = 11 : i64} {
  func.func @_critic_kernel(%arg0: i32, %arg1: i32, %arg2: memref<16x128xf32, #tpu.memory_space<vmem>>, %arg3: memref<16x128xf32, #tpu.memory_space<vmem>>, %arg4: memref<384x128xbf16, #tpu.memory_space<vmem>>, %arg5: memref<1x128xf32, #tpu.memory_space<vmem>>, %arg6: memref<1x128xf32, #tpu.memory_space<vmem>>, %arg7: memref<1x128xf32, #tpu.memory_space<vmem>>, %arg8: memref<256x256xbf16, #tpu.memory_space<vmem>>, %arg9: memref<1x256xf32, #tpu.memory_space<vmem>>, %arg10: memref<128x128xbf16, #tpu.memory_space<vmem>>, %arg11: memref<1x128xf32, #tpu.memory_space<vmem>>, %arg12: memref<128x128xbf16, #tpu.memory_space<vmem>>, %arg13: memref<1x128xf32, #tpu.memory_space<vmem>>, %arg14: memref<1x128xf32, #tpu.memory_space<vmem>>, %arg15: memref<1x128xf32, #tpu.memory_space<vmem>>, %arg16: memref<1x128xf32, #tpu.memory_space<vmem>>, %arg17: memref<16x128xf32, #tpu.memory_space<vmem>>, %arg18: memref<16x128xf32, #tpu.memory_space<vmem>>) attributes {dimension_semantics = [#tpu.dimension_semantics<parallel>, #tpu.dimension_semantics<arbitrary>], iteration_bounds = array<i64: 2, 3>, scalar_prefetch = 0 : i64, scratch_operands = 1 : i64, tpu.core_type = #tpu.core_type<tc>, window_params = [{transform_indices = @transform_0, window_bounds = array<i64: 16, 128>}, {transform_indices = @transform_1, window_bounds = array<i64: 16, 128>}, {pipeline_mode = #tpu.pipeline_mode<synchronous>, transform_indices = @transform_2, window_bounds = array<i64: 384, 128>}, {pipeline_mode = #tpu.pipeline_mode<synchronous>, transform_indices = @transform_3, window_bounds = array<i64: 1, 128>}, {pipeline_mode = #tpu.pipeline_mode<synchronous>, transform_indices = @transform_4, window_bounds = array<i64: 1, 128>}, {pipeline_mode = #tpu.pipeline_mode<synchronous>, transform_indices = @transform_5, window_bounds = array<i64: 1, 128>}, {pipeline_mode = #tpu.pipeline_mode<synchronous>, transform_indices = @transform_6, window_bounds = array<i64: 256, 256>}, {pipeline_mode = #tpu.pipeline_mode<synchronous>, transform_indices = @transform_7, window_bounds = array<i64: 1, 256>}, {pipeline_mode = #tpu.pipeline_mode<synchronous>, transform_indices = @transform_8, window_bounds = array<i64: 128, 128>}, {pipeline_mode = #tpu.pipeline_mode<synchronous>, transform_indices = @transform_9, window_bounds = array<i64: 1, 128>}, {pipeline_mode = #tpu.pipeline_mode<synchronous>, transform_indices = @transform_10, window_bounds = array<i64: 128, 128>}, {pipeline_mode = #tpu.pipeline_mode<synchronous>, transform_indices = @transform_11, window_bounds = array<i64: 1, 128>}, {pipeline_mode = #tpu.pipeline_mode<synchronous>, transform_indices = @transform_12, window_bounds = array<i64: 1, 128>}, {pipeline_mode = #tpu.pipeline_mode<synchronous>, transform_indices = @transform_13, window_bounds = array<i64: 1, 128>}, {pipeline_mode = #tpu.pipeline_mode<synchronous>, transform_indices = @transform_14, window_bounds = array<i64: 1, 128>}, {transform_indices = @transform_15, window_bounds = array<i64: 16, 128>}]} {
    %c0 = arith.constant 0 : index
    %c0_0 = arith.constant 0 : index
    %0 = vector.load %arg2[%c0, %c0_0] : memref<16x128xf32, #tpu.memory_space<vmem>>, vector<16x128xf32>
    %1 = tpu.iota {dimensions = array<i32: 1>} : vector<16x128xi32>
    %c128_i32 = arith.constant 128 : i32
    %2 = arith.muli %arg1, %c128_i32 : i32
    %3 = vector.broadcast %2 : i32 to vector<16x128xi32>
    %4 = arith.addi %1, %3 : vector<16x128xi32>
    %c300_i32 = arith.constant 300 : i32
    %5 = vector.broadcast %c300_i32 : i32 to vector<16x128xi32>
    %6 = arith.cmpi slt, %4, %5 : vector<16x128xi32>
    %cst = arith.constant 0.000000e+00 : f32
    %7 = vector.broadcast %cst : f32 to vector<16x128xf32>
    %8 = arith.select %6, %0, %7 : vector<16x128xi1>, vector<16x128xf32>
    %9 = arith.truncf %8 : vector<16x128xf32> to vector<16x128xbf16>
    %c128_i32_1 = arith.constant 128 : i32
    %10 = arith.muli %arg1, %c128_i32_1 : i32
    %11 = tpu.assume_multiple %10, 128 : i32
    %12 = arith.index_cast %11 : i32 to index
    %c0_2 = arith.constant 0 : index
    %13 = vector.load %arg4[%12, %c0_2] : memref<384x128xbf16, #tpu.memory_space<vmem>>, vector<128x128xbf16>
    %cst_3 = arith.constant dense<0.000000e+00> : vector<16x128xf32>
    %14 = tpu.matmul %9, %13, %cst_3 {dimension_numbers = #tpu.dot_dimension_numbers<[1], [0], [0], [1], [0, 0, 1, 1], [], []>} : vector<16x128xbf16>, vector<128x128xbf16>, vector<16x128xf32> -> vector<16x128xf32>
    %c0_i32 = arith.constant 0 : i32
    %15 = arith.cmpi eq, %arg1, %c0_i32 : i32
    %16 = arith.extui %15 : i1 to i32
    %c0_i32_4 = arith.constant 0 : i32
    %17 = arith.cmpi ne, %16, %c0_i32_4 : i32
    scf.if %17 {
      %c0_8 = arith.constant 0 : index
      %c0_9 = arith.constant 0 : index
      %24 = vector.load %arg18[%c0_8, %c0_9] : memref<16x128xf32, #tpu.memory_space<vmem>>, vector<16x128xf32>
      tpu.vector_store %arg18[%c0_8, %c0_9], %14 {strides = array<i32>} : memref<16x128xf32, #tpu.memory_space<vmem>>, vector<16x128xf32>,
    } else {
    }
    %c0_i32_5 = arith.constant 0 : i32
    %18 = arith.cmpi sgt, %arg1, %c0_i32_5 : i32
    %19 = arith.extui %18 : i1 to i32
    %c0_i32_6 = arith.constant 0 : i32
    %20 = arith.cmpi ne, %19, %c0_i32_6 : i32
    scf.if %20 {
      %c0_8 = arith.constant 0 : index
      %c0_9 = arith.constant 0 : index
      %24 = vector.load %arg18[%c0_8, %c0_9] : memref<16x128xf32, #tpu.memory_space<vmem>>, vector<16x128xf32>
      %25 = arith.addf %24, %14 : vector<16x128xf32>
      %c0_10 = arith.constant 0 : index
      %c0_11 = arith.constant 0 : index
      %26 = vector.load %arg18[%c0_10, %c0_11] : memref<16x128xf32, #tpu.memory_space<vmem>>, vector<16x128xf32>
      tpu.vector_store %arg18[%c0_10, %c0_11], %25 {strides = array<i32>} : memref<16x128xf32, #tpu.memory_space<vmem>>, vector<16x128xf32>,
    } else {
    }
    %c2_i32 = arith.constant 2 : i32
    %21 = arith.cmpi eq, %arg1, %c2_i32 : i32
    %22 = arith.extui %21 : i1 to i32
    %c0_i32_7 = arith.constant 0 : i32
    %23 = arith.cmpi ne, %22, %c0_i32_7 : i32
    scf.if %23 {
      %c0_8 = arith.constant 0 : index
      %c0_9 = arith.constant 0 : index
      %24 = vector.load %arg18[%c0_8, %c0_9] : memref<16x128xf32, #tpu.memory_space<vmem>>, vector<16x128xf32>
      %c0_10 = arith.constant 0 : index
      %c0_11 = arith.constant 0 : index
      %25 = vector.load %arg5[%c0_10, %c0_11] : memref<1x128xf32, #tpu.memory_space<vmem>>, vector<1x128xf32>
      %26 = vector.broadcast %25 : vector<1x128xf32> to vector<16x128xf32>
      %27 = arith.addf %24, %26 : vector<16x128xf32>
      %cst_12 = arith.constant dense<0.000000e+00> : vector<16xf32>
      %28 = vector.multi_reduction <add>, %27, %cst_12 [1] : vector<16x128xf32> to vector<16xf32>
      %29 = vector.shape_cast %28 : vector<16xf32> to vector<16x1xf32>
      %cst_13 = arith.constant 2.000000e-02 : f32
      %30 = vector.broadcast %cst_13 : f32 to vector<16x1xf32>
      %31 = arith.mulf %29, %30 : vector<16x1xf32>
      %32 = vector.broadcast %31 : vector<16x1xf32> to vector<16x128xf32>
      %33 = arith.subf %27, %32 : vector<16x128xf32>
      %34 = tpu.iota {dimensions = array<i32: 1>} : vector<16x128xi32>
      %c50_i32 = arith.constant 50 : i32
      %35 = vector.broadcast %c50_i32 : i32 to vector<16x128xi32>
      %36 = arith.cmpi slt, %34, %35 : vector<16x128xi32>
      %cst_14 = arith.constant 0.000000e+00 : f32
      %37 = vector.broadcast %cst_14 : f32 to vector<16x128xf32>
      %38 = arith.select %36, %33, %37 : vector<16x128xi1>, vector<16x128xf32>
      %39 = arith.mulf %38, %38 : vector<16x128xf32>
      %cst_15 = arith.constant dense<0.000000e+00> : vector<16xf32>
      %40 = vector.multi_reduction <add>, %39, %cst_15 [1] : vector<16x128xf32> to vector<16xf32>
      %41 = vector.shape_cast %40 : vector<16xf32> to vector<16x1xf32>
      %cst_16 = arith.constant 2.000000e-02 : f32
      %42 = vector.broadcast %cst_16 : f32 to vector<16x1xf32>
      %43 = arith.mulf %41, %42 : vector<16x1xf32>
      %cst_17 = arith.constant 9.99999974E-6 : f32
      %44 = vector.broadcast %cst_17 : f32 to vector<16x1xf32>
      %45 = arith.addf %43, %44 : vector<16x1xf32>
      %46 = math.rsqrt %45 : vector<16x1xf32>
      %47 = vector.broadcast %46 : vector<16x1xf32> to vector<16x128xf32>
      %48 = arith.mulf %33, %47 : vector<16x128xf32>
      %c0_18 = arith.constant 0 : index
      %c0_19 = arith.constant 0 : index
      %49 = vector.load %arg6[%c0_18, %c0_19] : memref<1x128xf32, #tpu.memory_space<vmem>>, vector<1x128xf32>
      %50 = vector.broadcast %49 : vector<1x128xf32> to vector<16x128xf32>
      %51 = arith.mulf %48, %50 : vector<16x128xf32>
      %c0_20 = arith.constant 0 : index
      %c0_21 = arith.constant 0 : index
      %52 = vector.load %arg7[%c0_20, %c0_21] : memref<1x128xf32, #tpu.memory_space<vmem>>, vector<1x128xf32>
      %53 = vector.broadcast %52 : vector<1x128xf32> to vector<16x128xf32>
      %54 = arith.addf %51, %53 : vector<16x128xf32>
      %55 = math.tanh %54 : vector<16x128xf32>
      %56 = arith.truncf %55 : vector<16x128xf32> to vector<16x128xbf16>
      %c0_22 = arith.constant 0 : index
      %c0_23 = arith.constant 0 : index
      %57 = vector.load %arg3[%c0_22, %c0_23] : memref<16x128xf32, #tpu.memory_space<vmem>>, vector<16x128xf32>
      %58 = arith.truncf %57 : vector<16x128xf32> to vector<16x128xbf16>
      %59 = tpu.concatenate %56, %58 in 1 : vector<16x128xbf16>, vector<16x128xbf16> -> vector<16x256xbf16>
      %c0_24 = arith.constant 0 : index
      %c0_25 = arith.constant 0 : index
      %60 = vector.load %arg8[%c0_24, %c0_25] : memref<256x256xbf16, #tpu.memory_space<vmem>>, vector<256x256xbf16>
      %cst_26 = arith.constant dense<0.000000e+00> : vector<16x256xf32>
      %61 = tpu.matmul %59, %60, %cst_26 {dimension_numbers = #tpu.dot_dimension_numbers<[1], [0], [0], [1], [0, 0, 1, 1], [], []>} : vector<16x256xbf16>, vector<256x256xbf16>, vector<16x256xf32> -> vector<16x256xf32>
      %c0_27 = arith.constant 0 : index
      %c0_28 = arith.constant 0 : index
      %62 = vector.load %arg9[%c0_27, %c0_28] : memref<1x256xf32, #tpu.memory_space<vmem>>, vector<1x256xf32>
      %63 = vector.broadcast %62 : vector<1x256xf32> to vector<16x256xf32>
      %64 = arith.addf %61, %63 : vector<16x256xf32>
      %cst_29 = arith.constant 0.000000e+00 : f32
      %65 = vector.broadcast %cst_29 : f32 to vector<16x256xf32>
      %66 = arith.maximumf %64, %65 : vector<16x256xf32>
      %67 = vector.extract_strided_slice %66 {offsets = [0, 0], sizes = [16, 128], strides = [1, 1]} : vector<16x256xf32> to vector<16x128xf32>
      %68 = arith.truncf %67 : vector<16x128xf32> to vector<16x128xbf16>
      %69 = vector.extract_strided_slice %66 {offsets = [0, 128], sizes = [16, 128], strides = [1, 1]} : vector<16x256xf32> to vector<16x128xf32>
      %70 = arith.truncf %69 : vector<16x128xf32> to vector<16x128xbf16>
      %c0_30 = arith.constant 0 : index
      %c0_31 = arith.constant 0 : index
      %71 = vector.load %arg10[%c0_30, %c0_31] : memref<128x128xbf16, #tpu.memory_space<vmem>>, vector<128x128xbf16>
      %cst_32 = arith.constant dense<0.000000e+00> : vector<16x128xf32>
      %72 = tpu.matmul %68, %71, %cst_32 {dimension_numbers = #tpu.dot_dimension_numbers<[1], [0], [0], [1], [0, 0, 1, 1], [], []>} : vector<16x128xbf16>, vector<128x128xbf16>, vector<16x128xf32> -> vector<16x128xf32>
      %c0_33 = arith.constant 0 : index
      %c0_34 = arith.constant 0 : index
      %73 = vector.load %arg11[%c0_33, %c0_34] : memref<1x128xf32, #tpu.memory_space<vmem>>, vector<1x128xf32>
      %74 = vector.broadcast %73 : vector<1x128xf32> to vector<16x128xf32>
      %75 = arith.addf %72, %74 : vector<16x128xf32>
      %cst_35 = arith.constant 0.000000e+00 : f32
      %76 = vector.broadcast %cst_35 : f32 to vector<16x128xf32>
      %77 = arith.maximumf %75, %76 : vector<16x128xf32>
      %c0_36 = arith.constant 0 : index
      %c0_37 = arith.constant 0 : index
      %78 = vector.load %arg12[%c0_36, %c0_37] : memref<128x128xbf16, #tpu.memory_space<vmem>>, vector<128x128xbf16>
      %cst_38 = arith.constant dense<0.000000e+00> : vector<16x128xf32>
      %79 = tpu.matmul %70, %78, %cst_38 {dimension_numbers = #tpu.dot_dimension_numbers<[1], [0], [0], [1], [0, 0, 1, 1], [], []>} : vector<16x128xbf16>, vector<128x128xbf16>, vector<16x128xf32> -> vector<16x128xf32>
      %c0_39 = arith.constant 0 : index
      %c0_40 = arith.constant 0 : index
      %80 = vector.load %arg13[%c0_39, %c0_40] : memref<1x128xf32, #tpu.memory_space<vmem>>, vector<1x128xf32>
      %81 = vector.broadcast %80 : vector<1x128xf32> to vector<16x128xf32>
      %82 = arith.addf %79, %81 : vector<16x128xf32>
      %cst_41 = arith.constant 0.000000e+00 : f32
      %83 = vector.broadcast %cst_41 : f32 to vector<16x128xf32>
      %84 = arith.maximumf %82, %83 : vector<16x128xf32>
      %c0_42 = arith.constant 0 : index
      %c0_43 = arith.constant 0 : index
      %85 = vector.load %arg14[%c0_42, %c0_43] : memref<1x128xf32, #tpu.memory_space<vmem>>, vector<1x128xf32>
      %86 = vector.broadcast %85 : vector<1x128xf32> to vector<16x128xf32>
      %87 = arith.mulf %77, %86 : vector<16x128xf32>
      %cst_44 = arith.constant dense<0.000000e+00> : vector<16xf32>
      %88 = vector.multi_reduction <add>, %87, %cst_44 [1] : vector<16x128xf32> to vector<16xf32>
      %89 = vector.shape_cast %88 : vector<16xf32> to vector<16x1xf32>
      %c0_45 = arith.constant 0 : index
      %c0_46 = arith.constant 0 : index
      %90 = vector.load %arg15[%c0_45, %c0_46] : memref<1x128xf32, #tpu.memory_space<vmem>>, vector<1x128xf32>
      %91 = vector.broadcast %90 : vector<1x128xf32> to vector<16x128xf32>
      %92 = arith.mulf %84, %91 : vector<16x128xf32>
      %cst_47 = arith.constant dense<0.000000e+00> : vector<16xf32>
      %93 = vector.multi_reduction <add>, %92, %cst_47 [1] : vector<16x128xf32> to vector<16xf32>
      %94 = vector.shape_cast %93 : vector<16xf32> to vector<16x1xf32>
      %95 = tpu.iota {dimensions = array<i32: 1>} : vector<16x128xi32>
      %c0_i32_48 = arith.constant 0 : i32
      %96 = vector.broadcast %c0_i32_48 : i32 to vector<16x128xi32>
      %97 = arith.cmpi eq, %95, %96 : vector<16x128xi32>
      %cst_49 = arith.constant 0.000000e+00 : f32
      %98 = vector.shape_cast %89 : vector<16x1xf32> to vector<16x1xf32>
      %99 = vector.broadcast %98 : vector<16x1xf32> to vector<16x128xf32>
      %100 = vector.broadcast %cst_49 : f32 to vector<16x128xf32>
      %101 = arith.select %97, %99, %100 : vector<16x128xi1>, vector<16x128xf32>
      %c1_i32 = arith.constant 1 : i32
      %102 = vector.broadcast %c1_i32 : i32 to vector<16x128xi32>
      %103 = arith.cmpi eq, %95, %102 : vector<16x128xi32>
      %cst_50 = arith.constant 0.000000e+00 : f32
      %104 = vector.shape_cast %94 : vector<16x1xf32> to vector<16x1xf32>
      %105 = vector.broadcast %104 : vector<16x1xf32> to vector<16x128xf32>
      %106 = vector.broadcast %cst_50 : f32 to vector<16x128xf32>
      %107 = arith.select %103, %105, %106 : vector<16x128xi1>, vector<16x128xf32>
      %108 = arith.addf %101, %107 : vector<16x128xf32>
      %c0_51 = arith.constant 0 : index
      %c0_52 = arith.constant 0 : index
      %109 = vector.load %arg16[%c0_51, %c0_52] : memref<1x128xf32, #tpu.memory_space<vmem>>, vector<1x128xf32>
      %110 = vector.broadcast %109 : vector<1x128xf32> to vector<16x128xf32>
      %111 = arith.addf %108, %110 : vector<16x128xf32>
      %c0_53 = arith.constant 0 : index
      %c0_54 = arith.constant 0 : index
      %112 = vector.load %arg17[%c0_53, %c0_54] : memref<16x128xf32, #tpu.memory_space<vmem>>, vector<16x128xf32>
      tpu.vector_store %arg17[%c0_53, %c0_54], %111 {strides = array<i32>} : memref<16x128xf32, #tpu.memory_space<vmem>>, vector<16x128xf32>,
    } else {
    }
    return
  }
  func.func @transform_0(%arg0: i32, %arg1: i32) -> (i32, i32) {
    %c0_i32 = arith.constant 0 : i32
    return %arg0, %arg1 : i32, i32
  }
  func.func @transform_1(%arg0: i32, %arg1: i32) -> (i32, i32) {
    %c0_i32 = arith.constant 0 : i32
    %c0_i32_0 = arith.constant 0 : i32
    return %arg0, %c0_i32 : i32, i32
  }
  func.func @transform_2(%arg0: i32, %arg1: i32) -> (i32, i32) {
    %c0_i32 = arith.constant 0 : i32
    %c0_i32_0 = arith.constant 0 : i32
    %c0_i32_1 = arith.constant 0 : i32
    return %c0_i32, %c0_i32_0 : i32, i32
  }
  func.func @transform_3(%arg0: i32, %arg1: i32) -> (i32, i32) {
    %c0_i32 = arith.constant 0 : i32
    %c0_i32_0 = arith.constant 0 : i32
    %c0_i32_1 = arith.constant 0 : i32
    return %c0_i32, %c0_i32_0 : i32, i32
  }
  func.func @transform_4(%arg0: i32, %arg1: i32) -> (i32, i32) {
    %c0_i32 = arith.constant 0 : i32
    %c0_i32_0 = arith.constant 0 : i32
    %c0_i32_1 = arith.constant 0 : i32
    return %c0_i32, %c0_i32_0 : i32, i32
  }
  func.func @transform_5(%arg0: i32, %arg1: i32) -> (i32, i32) {
    %c0_i32 = arith.constant 0 : i32
    %c0_i32_0 = arith.constant 0 : i32
    %c0_i32_1 = arith.constant 0 : i32
    return %c0_i32, %c0_i32_0 : i32, i32
  }
  func.func @transform_6(%arg0: i32, %arg1: i32) -> (i32, i32) {
    %c0_i32 = arith.constant 0 : i32
    %c0_i32_0 = arith.constant 0 : i32
    %c0_i32_1 = arith.constant 0 : i32
    return %c0_i32, %c0_i32_0 : i32, i32
  }
  func.func @transform_7(%arg0: i32, %arg1: i32) -> (i32, i32) {
    %c0_i32 = arith.constant 0 : i32
    %c0_i32_0 = arith.constant 0 : i32
    %c0_i32_1 = arith.constant 0 : i32
    return %c0_i32, %c0_i32_0 : i32, i32
  }
  func.func @transform_8(%arg0: i32, %arg1: i32) -> (i32, i32) {
    %c0_i32 = arith.constant 0 : i32
    %c0_i32_0 = arith.constant 0 : i32
    %c0_i32_1 = arith.constant 0 : i32
    return %c0_i32, %c0_i32_0 : i32, i32
  }
  func.func @transform_9(%arg0: i32, %arg1: i32) -> (i32, i32) {
    %c0_i32 = arith.constant 0 : i32
    %c0_i32_0 = arith.constant 0 : i32
    %c0_i32_1 = arith.constant 0 : i32
    return %c0_i32, %c0_i32_0 : i32, i32
  }
  func.func @transform_10(%arg0: i32, %arg1: i32) -> (i32, i32) {
    %c0_i32 = arith.constant 0 : i32
    %c0_i32_0 = arith.constant 0 : i32
    %c0_i32_1 = arith.constant 0 : i32
    return %c0_i32, %c0_i32_0 : i32, i32
  }
  func.func @transform_11(%arg0: i32, %arg1: i32) -> (i32, i32) {
    %c0_i32 = arith.constant 0 : i32
    %c0_i32_0 = arith.constant 0 : i32
    %c0_i32_1 = arith.constant 0 : i32
    return %c0_i32, %c0_i32_0 : i32, i32
  }
  func.func @transform_12(%arg0: i32, %arg1: i32) -> (i32, i32) {
    %c0_i32 = arith.constant 0 : i32
    %c0_i32_0 = arith.constant 0 : i32
    %c0_i32_1 = arith.constant 0 : i32
    return %c0_i32, %c0_i32_0 : i32, i32
  }
  func.func @transform_13(%arg0: i32, %arg1: i32) -> (i32, i32) {
    %c0_i32 = arith.constant 0 : i32
    %c0_i32_0 = arith.constant 0 : i32
    %c0_i32_1 = arith.constant 0 : i32
    return %c0_i32, %c0_i32_0 : i32, i32
  }
  func.func @transform_14(%arg0: i32, %arg1: i32) -> (i32, i32) {
    %c0_i32 = arith.constant 0 : i32
    %c0_i32_0 = arith.constant 0 : i32
    %c0_i32_1 = arith.constant 0 : i32
    return %c0_i32, %c0_i32_0 : i32, i32
  }
  func.func @transform_15(%arg0: i32, %arg1: i32) -> (i32, i32) {
    %c0_i32 = arith.constant 0 : i32
    %c0_i32_0 = arith.constant 0 : i32
    return %arg0, %c0_i32 : i32, i32
  }
}

</mosaic_0001>

<llo_original>
// kernel: tpu_custom_call.1
$region0: #{tpu_custom_call.1}
  #allocation0 [shape = 'u32[]', space=smem, size = 0x4, offset = 0x4, fixed_abs, tag = 'smem constant byte address 0x4 - core index']
  #allocation1 [shape = 'u32[72,128]{1,0:T(1,128)}', space=vmem, size = 0x9000, scoped, tag = 'internal scratch']
  #allocation2 [shape = 'f32[16,128]{1,0:T(8,128)}', space=vmem, size = 0x2000, scoped, tag = 'scratch operand']
  %s0 = inlined_call_operand.hbm [shape: f32[24,300], index: 0, kind: input, shape index: {}]
  %s1 = inlined_call_operand.hbm [shape: f32[24,128], index: 1, kind: input, shape index: {}]
  %s2 = inlined_call_operand.hbm [shape: bf16[384,128], index: 2, kind: input, shape index: {}]
  %s3 = inlined_call_operand.vmem [shape: f32[1,128], index: 3, kind: input, shape index: {}]
  %s4 = inlined_call_operand.hbm [shape: f32[1,128], index: 4, kind: input, shape index: {}]
  %s5 = inlined_call_operand.vmem [shape: f32[1,128], index: 5, kind: input, shape index: {}]
  %s6 = inlined_call_operand.hbm [shape: bf16[256,256], index: 6, kind: input, shape index: {}]
  %s7 = inlined_call_operand.vmem [shape: f32[1,256], index: 7, kind: input, shape index: {}]
  %s8 = inlined_call_operand.hbm [shape: bf16[128,128], index: 8, kind: input, shape index: {}]
  %s9 = inlined_call_operand.vmem [shape: f32[1,128], index: 9, kind: input, shape index: {}]
  %s10 = inlined_call_operand.hbm [shape: bf16[128,128], index: 10, kind: input, shape index: {}]
  %s11 = inlined_call_operand.vmem [shape: f32[1,128], index: 11, kind: input, shape index: {}]
  %s12 = inlined_call_operand.vmem [shape: f32[1,128], index: 12, kind: input, shape index: {}]
  %s13 = inlined_call_operand.vmem [shape: f32[1,128], index: 13, kind: input, shape index: {}]
  %s14 = inlined_call_operand.vmem [shape: f32[1,128], index: 14, kind: input, shape index: {}]
  %s15 = inlined_call_operand.hbm [shape: f32[24,128], index: 15, kind: output, shape index: {}]
  %s16 = sld [smem:[#allocation0]]
  $region133: #{tpu_custom_call.1} parent=0
    _
  %s18 = ssub.s32 1, %s16
  %s19 = scalar_select 0, %s18, %s16
  $region1: #{tpu_custom_call.1} parent=0
    #allocation3 [shape = 'u8[16384]{0}', space=vmem, size = 0x4000, scoped, tag = 'input window, operand 0']
    #allocation4 [shape = 's32[2]{0}', space=sflag, size = 0x8, scoped, tag = 'scoped memory for tpu_custom_call.1']
    #allocation5 [shape = 's32[2]{0}', space=sflag, size = 0x8, scoped, tag = 'scoped memory for tpu_custom_call.1']
    #allocation6 [shape = 'u8[16384]{0}', space=vmem, size = 0x4000, scoped, tag = 'input window, operand 1']
    #allocation7 [shape = 's32[2]{0}', space=sflag, size = 0x8, scoped, tag = 'scoped memory for tpu_custom_call.1']
    #allocation8 [shape = 'u8[98304]{0}', space=vmem, size = 0x18000, scoped, tag = 'input window, operand 2, single buffered']
    #allocation9 [shape = 'u8[512]{0}', space=vmem, size = 0x400, scoped, tag = 'input window, operand 4, single buffered']
    #allocation10 [shape = 's32[1]{0}', space=sflag, size = 0x4, scoped, tag = 'scoped memory for tpu_custom_call.1']
    #allocation11 [shape = 'u8[131072]{0}', space=vmem, size = 0x20000, scoped, tag = 'input window, operand 6, single buffered']
    #allocation12 [shape = 'u8[32768]{0}', space=vmem, size = 0x8000, scoped, tag = 'input window, operand 8, single buffered']
    #allocation13 [shape = 's32[1]{0}', space=sflag, size = 0x4, scoped, tag = 'scoped memory for tpu_custom_call.1']
    #allocation14 [shape = 'u8[32768]{0}', space=vmem, size = 0x8000, scoped, tag = 'input window, operand 10, single buffered']
    #allocation15 [shape = 'u8[16384]{0}', space=vmem, size = 0x4000, scoped, tag = 'output window, operand 0']
    %20 = vsyncpa [#allocation4], 0
    %s21 = scalar_lea.sflag [#allocation4], 1
    %22 = vsyncpa %s21, 0
    %23 = vsyncpa [#allocation7], 0
    %s24 = scalar_lea.sflag [#allocation7], 1
    %25 = vsyncpa %s24, 0
    %26 = vsyncpa [#allocation10], 0
    %27 = vsyncpa [#allocation13], 0
    %28 = vsyncpa [#allocation5], 0
    %s29 = scalar_lea.sflag [#allocation5], 1
    %30 = vsyncpa %s29, 0
    loop: start=0, step=1, limit=8
    $region2: #{tpu_custom_call.1} parent=1 // loop_pre_header
      _
    $region3: #{tpu_custom_call.1} parent=1 // loop_header
      %s32 = sphi 0, %s36
      %p33 = scmp.ge.s32.totalorder %s32, 8
      %s39 = sphi 0, %s51
      %s40 = sphi 0, %s47
      %s41 = sphi 0, %s39
      %s42 = sphi 0, %s40
      %s43 = sphi 0, %s41
      %s44 = sphi 0, %s42
      %s56 = sphi 0, %s58
      %s59 = sphi 0, %s56
      %s60 = sphi 0, %s59
      %s76 = sphi 0, %s60
      %s82 = sphi 0, %s84
      %s85 = sphi 0, %s82
      %s86 = sphi 0, %s85
      %s102 = sphi 0, %s86
      %s106 = sphi 0, %s106
      %s108 = sphi 0, %s106
      %s109 = sphi 0, %s108
      %s123 = sphi 0, %s109
      %s127 = sphi 0, %s127
      %s129 = sphi 0, %s127
      %s130 = sphi 0, %s129
      %s144 = sphi 0, %s130
      %s148 = sphi 0, %s148
      %s150 = sphi 0, %s148
      %s151 = sphi 0, %s150
      %s165 = sphi 0, %s151
      %s169 = sphi 0, %s169
      %s171 = sphi 0, %s169
      %s172 = sphi 0, %s171
      %s186 = sphi 0, %s172
      %s190 = sphi 0, %s190
      %s192 = sphi 0, %s190
      %s193 = sphi 0, %s192
      %s207 = sphi 0, %s193
      %s211 = sphi 0, %s211
      %s213 = sphi 0, %s211
      %s214 = sphi 0, %s213
      %s228 = sphi 0, %s214
      %s232 = sphi 0, %s232
      %s234 = sphi 0, %s232
      %s235 = sphi 0, %s234
      %s249 = sphi 0, %s235
      %s253 = sphi 0, %s253
      %s255 = sphi 0, %s253
      %s256 = sphi 0, %s255
      %s270 = sphi 0, %s256
      %s274 = sphi 0, %s274
      %s276 = sphi 0, %s274
      %s277 = sphi 0, %s276
      %s291 = sphi 0, %s277
      %s295 = sphi 0, %s295
      %s297 = sphi 0, %s295
      %s298 = sphi 0, %s297
      %s312 = sphi 0, %s298
      %s316 = sphi 0, %s316
      %s318 = sphi 0, %s316
      %s319 = sphi 0, %s318
      %s333 = sphi 0, %s319
      %s337 = sphi 0, %s337
      %s339 = sphi 0, %s337
      %s340 = sphi 0, %s339
      %s354 = sphi 0, %s340
      %s358 = sphi 0, %s358
      %s360 = sphi 0, %s358
      %s361 = sphi 0, %s360
      %s375 = sphi 0, %s361
      %s381 = sphi 0, %s383
      %s384 = sphi 0, %s381
      %s385 = sphi 0, %s384
      %s401 = sphi 0, %s385
    $region4: #{tpu_custom_call.1} parent=1 // loop_header_branch
      %35 = sbr.rel (%p33) target = $region8
    $region5: #{tpu_custom_call.1} parent=1 // loop_body
      %s37 = ssub.s32 %s32, 1
      %s38 = ssub.s32 %s32, 2
      %s45 = sadd.s32 1, %s40
      %p46 = scmp.ge.s32.totalorder %s45, 3
      %s47 = scalar_select %p46, 0, %s45
      %s48 = sadd.s32 1, %s39
      %s49 = scalar_select %p46, %s48, %s39
      %p50 = scmp.ge.s32.totalorder %s49, 2
      %s51 = scalar_select %p50, 0, %s49
      %s52 = ssub.s32 %s39, %s51
      %s53 = ssub.s32 %s40, %s47
      %s54 = sor.u32 %s52, %s53
      %p55 = scmp.eq.s32.totalorder %s54, 0
      %s57 = sadd.s32 %s56, 1
      %s58 = scalar_select %p55, %s56, %s57
      %p61 = pneg %p55
      %p62 = scmp.eq.s32.totalorder %s32, 5
      %p63 = por %p61, %p62
      %p64 = scmp.ne.s32.totalorder %s56, %s59
      %p65 = scmp.eq.s32.totalorder %s32, 0
      %p66 = por %p64, %p65
      %p67 = scmp.ne.s32.totalorder %s56, %s59
      %p68 = scmp.eq.s32.totalorder %s37, 5
      %p69 = por %p67, %p68
      %p70 = scmp.ne.s32.totalorder %s59, %s60
      %p71 = scmp.eq.s32.totalorder %s37, 0
      %p72 = por %p70, %p71
      %p73 = scmp.ne.s32.totalorder %s59, %s60
      %p74 = scmp.eq.s32.totalorder %s38, 5
      %p75 = por %p73, %p74
      %p77 = scmp.ne.s32.totalorder %s60, %s76
      %p78 = scmp.eq.s32.totalorder %s38, 0
      %p79 = por %p77, %p78
      %s80 = ssub.s32 %s39, %s51
      %p81 = scmp.eq.s32.totalorder %s80, 0
      %s83 = sadd.s32 %s82, 1
      %s84 = scalar_select %p81, %s82, %s83
      %p87 = pneg %p81
      %p88 = scmp.eq.s32.totalorder %s32, 5
      %p89 = por %p87, %p88
      %p90 = scmp.ne.s32.totalorder %s82, %s85
      %p91 = scmp.eq.s32.totalorder %s32, 0
      %p92 = por %p90, %p91
      %p93 = scmp.ne.s32.totalorder %s82, %s85
      %p94 = scmp.eq.s32.totalorder %s37, 5
      %p95 = por %p93, %p94
      %p96 = scmp.ne.s32.totalorder %s85, %s86
      %p97 = scmp.eq.s32.totalorder %s37, 0
      %p98 = por %p96, %p97
      %p99 = scmp.ne.s32.totalorder %s85, %s86
      %p100 = scmp.eq.s32.totalorder %s38, 5
      %p101 = por %p99, %p100
      %p103 = scmp.ne.s32.totalorder %s86, %s102
      %p104 = scmp.eq.s32.totalorder %s38, 0
      %p105 = por %p103, %p104
      %s107 = sadd.s32 %s106, 1
      %p110 = scmp.eq.s32.totalorder %s32, 5
      %p111 = scmp.ne.s32.totalorder %s106, %s108
      %p112 = scmp.eq.s32.totalorder %s32, 0
      %p113 = por %p111, %p112
      %p114 = scmp.ne.s32.totalorder %s106, %s108
      %p115 = scmp.eq.s32.totalorder %s37, 5
      %p116 = por %p114, %p115
      %p117 = scmp.ne.s32.totalorder %s108, %s109
      %p118 = scmp.eq.s32.totalorder %s37, 0
      %p119 = por %p117, %p118
      %p120 = scmp.ne.s32.totalorder %s108, %s109
      %p121 = scmp.eq.s32.totalorder %s38, 5
      %p122 = por %p120, %p121
      %p124 = scmp.ne.s32.totalorder %s109, %s123
      %p125 = scmp.eq.s32.totalorder %s38, 0
      %p126 = por %p124, %p125
      %s128 = sadd.s32 %s127, 1
      %p131 = scmp.eq.s32.totalorder %s32, 5
      %p132 = scmp.ne.s32.totalorder %s127, %s129
      %p133 = scmp.eq.s32.totalorder %s32, 0
      %p134 = por %p132, %p133
      %p135 = scmp.ne.s32.totalorder %s127, %s129
      %p136 = scmp.eq.s32.totalorder %s37, 5
      %p137 = por %p135, %p136
      %p138 = scmp.ne.s32.totalorder %s129, %s130
      %p139 = scmp.eq.s32.totalorder %s37, 0
      %p140 = por %p138, %p139
      %p141 = scmp.ne.s32.totalorder %s129, %s130
      %p142 = scmp.eq.s32.totalorder %s38, 5
      %p143 = por %p141, %p142
      %p145 = scmp.ne.s32.totalorder %s130, %s144
      %p146 = scmp.eq.s32.totalorder %s38, 0
      %p147 = por %p145, %p146
      %s149 = sadd.s32 %s148, 1
      %p152 = scmp.eq.s32.totalorder %s32, 5
      %p153 = scmp.ne.s32.totalorder %s148, %s150
      %p154 = scmp.eq.s32.totalorder %s32, 0
      %p155 = por %p153, %p154
      %p156 = scmp.ne.s32.totalorder %s148, %s150
      %p157 = scmp.eq.s32.totalorder %s37, 5
      %p158 = por %p156, %p157
      %p159 = scmp.ne.s32.totalorder %s150, %s151
      %p160 = scmp.eq.s32.totalorder %s37, 0
      %p161 = por %p159, %p160
      %p162 = scmp.ne.s32.totalorder %s150, %s151
      %p163 = scmp.eq.s32.totalorder %s38, 5
      %p164 = por %p162, %p163
      %p166 = scmp.ne.s32.totalorder %s151, %s165
      %p167 = scmp.eq.s32.totalorder %s38, 0
      %p168 = por %p166, %p167
      %s170 = sadd.s32 %s169, 1
      %p173 = scmp.eq.s32.totalorder %s32, 5
      %p174 = scmp.ne.s32.totalorder %s169, %s171
      %p175 = scmp.eq.s32.totalorder %s32, 0
      %p176 = por %p174, %p175
      %p177 = scmp.ne.s32.totalorder %s169, %s171
      %p178 = scmp.eq.s32.totalorder %s37, 5
      %p179 = por %p177, %p178
      %p180 = scmp.ne.s32.totalorder %s171, %s172
      %p181 = scmp.eq.s32.totalorder %s37, 0
      %p182 = por %p180, %p181
      %p183 = scmp.ne.s32.totalorder %s171, %s172
      %p184 = scmp.eq.s32.totalorder %s38, 5
      %p185 = por %p183, %p184
      %p187 = scmp.ne.s32.totalorder %s172, %s186
      %p188 = scmp.eq.s32.totalorder %s38, 0
      %p189 = por %p187, %p188
      %s191 = sadd.s32 %s190, 1
      %p194 = scmp.eq.s32.totalorder %s32, 5
      %p195 = scmp.ne.s32.totalorder %s190, %s192
      %p196 = scmp.eq.s32.totalorder %s32, 0
      %p197 = por %p195, %p196
      %p198 = scmp.ne.s32.totalorder %s190, %s192
      %p199 = scmp.eq.s32.totalorder %s37, 5
      %p200 = por %p198, %p199
      %p201 = scmp.ne.s32.totalorder %s192, %s193
      %p202 = scmp.eq.s32.totalorder %s37, 0
      %p203 = por %p201, %p202
      %p204 = scmp.ne.s32.totalorder %s192, %s193
      %p205 = scmp.eq.s32.totalorder %s38, 5
      %p206 = por %p204, %p205
      %p208 = scmp.ne.s32.totalorder %s193, %s207
      %p209 = scmp.eq.s32.totalorder %s38, 0
      %p210 = por %p208, %p209
      %s212 = sadd.s32 %s211, 1
      %p215 = scmp.eq.s32.totalorder %s32, 5
      %p216 = scmp.ne.s32.totalorder %s211, %s213
      %p217 = scmp.eq.s32.totalorder %s32, 0
      %p218 = por %p216, %p217
      %p219 = scmp.ne.s32.totalorder %s211, %s213
      %p220 = scmp.eq.s32.totalorder %s37, 5
      %p221 = por %p219, %p220
      %p222 = scmp.ne.s32.totalorder %s213, %s214
      %p223 = scmp.eq.s32.totalorder %s37, 0
      %p224 = por %p222, %p223
      %p225 = scmp.ne.s32.totalorder %s213, %s214
      %p226 = scmp.eq.s32.totalorder %s38, 5
      %p227 = por %p225, %p226
      %p229 = scmp.ne.s32.totalorder %s214, %s228
      %p230 = scmp.eq.s32.totalorder %s38, 0
      %p231 = por %p229, %p230
      %s233 = sadd.s32 %s232, 1
      %p236 = scmp.eq.s32.totalorder %s32, 5
      %p237 = scmp.ne.s32.totalorder %s232, %s234
      %p238 = scmp.eq.s32.totalorder %s32, 0
      %p239 = por %p237, %p238
      %p240 = scmp.ne.s32.totalorder %s232, %s234
      %p241 = scmp.eq.s32.totalorder %s37, 5
      %p242 = por %p240, %p241
      %p243 = scmp.ne.s32.totalorder %s234, %s235
      %p244 = scmp.eq.s32.totalorder %s37, 0
      %p245 = por %p243, %p244
      %p246 = scmp.ne.s32.totalorder %s234, %s235
      %p247 = scmp.eq.s32.totalorder %s38, 5
      %p248 = por %p246, %p247
      %p250 = scmp.ne.s32.totalorder %s235, %s249
      %p251 = scmp.eq.s32.totalorder %s38, 0
      %p252 = por %p250, %p251
      %s254 = sadd.s32 %s253, 1
      %p257 = scmp.eq.s32.totalorder %s32, 5
      %p258 = scmp.ne.s32.totalorder %s253, %s255
      %p259 = scmp.eq.s32.totalorder %s32, 0
      %p260 = por %p258, %p259
      %p261 = scmp.ne.s32.totalorder %s253, %s255
      %p262 = scmp.eq.s32.totalorder %s37, 5
      %p263 = por %p261, %p262
      %p264 = scmp.ne.s32.totalorder %s255, %s256
      %p265 = scmp.eq.s32.totalorder %s37, 0
      %p266 = por %p264, %p265
      %p267 = scmp.ne.s32.totalorder %s255, %s256
      %p268 = scmp.eq.s32.totalorder %s38, 5
      %p269 = por %p267, %p268
      %p271 = scmp.ne.s32.totalorder %s256, %s270
      %p272 = scmp.eq.s32.totalorder %s38, 0
      %p273 = por %p271, %p272
      %s275 = sadd.s32 %s274, 1
      %p278 = scmp.eq.s32.totalorder %s32, 5
      %p279 = scmp.ne.s32.totalorder %s274, %s276
      %p280 = scmp.eq.s32.totalorder %s32, 0
      %p281 = por %p279, %p280
      %p282 = scmp.ne.s32.totalorder %s274, %s276
      %p283 = scmp.eq.s32.totalorder %s37, 5
      %p284 = por %p282, %p283
      %p285 = scmp.ne.s32.totalorder %s276, %s277
      %p286 = scmp.eq.s32.totalorder %s37, 0
      %p287 = por %p285, %p286
      %p288 = scmp.ne.s32.totalorder %s276, %s277
      %p289 = scmp.eq.s32.totalorder %s38, 5
      %p290 = por %p288, %p289
      %p292 = scmp.ne.s32.totalorder %s277, %s291
      %p293 = scmp.eq.s32.totalorder %s38, 0
      %p294 = por %p292, %p293
      %s296 = sadd.s32 %s295, 1
      %p299 = scmp.eq.s32.totalorder %s32, 5
      %p300 = scmp.ne.s32.totalorder %s295, %s297
      %p301 = scmp.eq.s32.totalorder %s32, 0
      %p302 = por %p300, %p301
      %p303 = scmp.ne.s32.totalorder %s295, %s297
      %p304 = scmp.eq.s32.totalorder %s37, 5
      %p305 = por %p303, %p304
      %p306 = scmp.ne.s32.totalorder %s297, %s298
      %p307 = scmp.eq.s32.totalorder %s37, 0
      %p308 = por %p306, %p307
      %p309 = scmp.ne.s32.totalorder %s297, %s298
      %p310 = scmp.eq.s32.totalorder %s38, 5
      %p311 = por %p309, %p310
      %p313 = scmp.ne.s32.totalorder %s298, %s312
      %p314 = scmp.eq.s32.totalorder %s38, 0
      %p315 = por %p313, %p314
      %s317 = sadd.s32 %s316, 1
      %p320 = scmp.eq.s32.totalorder %s32, 5
      %p321 = scmp.ne.s32.totalorder %s316, %s318
      %p322 = scmp.eq.s32.totalorder %s32, 0
      %p323 = por %p321, %p322
      %p324 = scmp.ne.s32.totalorder %s316, %s318
      %p325 = scmp.eq.s32.totalorder %s37, 5
      %p326 = por %p324, %p325
      %p327 = scmp.ne.s32.totalorder %s318, %s319
      %p328 = scmp.eq.s32.totalorder %s37, 0
      %p329 = por %p327, %p328
      %p330 = scmp.ne.s32.totalorder %s318, %s319
      %p331 = scmp.eq.s32.totalorder %s38, 5
      %p332 = por %p330, %p331
      %p334 = scmp.ne.s32.totalorder %s319, %s333
      %p335 = scmp.eq.s32.totalorder %s38, 0
      %p336 = por %p334, %p335
      %s338 = sadd.s32 %s337, 1
      %p341 = scmp.eq.s32.totalorder %s32, 5
      %p342 = scmp.ne.s32.totalorder %s337, %s339
      %p343 = scmp.eq.s32.totalorder %s32, 0
      %p344 = por %p342, %p343
      %p345 = scmp.ne.s32.totalorder %s337, %s339
      %p346 = scmp.eq.s32.totalorder %s37, 5
      %p347 = por %p345, %p346
      %p348 = scmp.ne.s32.totalorder %s339, %s340
      %p349 = scmp.eq.s32.totalorder %s37, 0
      %p350 = por %p348, %p349
      %p351 = scmp.ne.s32.totalorder %s339, %s340
      %p352 = scmp.eq.s32.totalorder %s38, 5
      %p353 = por %p351, %p352
      %p355 = scmp.ne.s32.totalorder %s340, %s354
      %p356 = scmp.eq.s32.totalorder %s38, 0
      %p357 = por %p355, %p356
      %s359 = sadd.s32 %s358, 1
      %p362 = scmp.eq.s32.totalorder %s32, 5
      %p363 = scmp.ne.s32.totalorder %s358, %s360
      %p364 = scmp.eq.s32.totalorder %s32, 0
      %p365 = por %p363, %p364
      %p366 = scmp.ne.s32.totalorder %s358, %s360
      %p367 = scmp.eq.s32.totalorder %s37, 5
      %p368 = por %p366, %p367
      %p369 = scmp.ne.s32.totalorder %s360, %s361
      %p370 = scmp.eq.s32.totalorder %s37, 0
      %p371 = por %p369, %p370
      %p372 = scmp.ne.s32.totalorder %s360, %s361
      %p373 = scmp.eq.s32.totalorder %s38, 5
      %p374 = por %p372, %p373
      %p376 = scmp.ne.s32.totalorder %s361, %s375
      %p377 = scmp.eq.s32.totalorder %s38, 0
      %p378 = por %p376, %p377
      %s379 = ssub.s32 %s39, %s51
      %p380 = scmp.eq.s32.totalorder %s379, 0
      %s382 = sadd.s32 %s381, 1
      %s383 = scalar_select %p380, %s381, %s382
      %p386 = pneg %p380
      %p387 = scmp.eq.s32.totalorder %s32, 5
      %p388 = por %p386, %p387
      %p389 = scmp.ne.s32.totalorder %s381, %s384
      %p390 = scmp.eq.s32.totalorder %s32, 0
      %p391 = por %p389, %p390
      %p392 = scmp.ne.s32.totalorder %s381, %s384
      %p393 = scmp.eq.s32.totalorder %s37, 5
      %p394 = por %p392, %p393
      %p395 = scmp.ne.s32.totalorder %s384, %s385
      %p396 = scmp.eq.s32.totalorder %s37, 0
      %p397 = por %p395, %p396
      %p398 = scmp.ne.s32.totalorder %s384, %s385
      %p399 = scmp.eq.s32.totalorder %s38, 5
      %p400 = por %p398, %p399
      %p402 = scmp.ne.s32.totalorder %s385, %s401
      %p403 = scmp.eq.s32.totalorder %s38, 0
      %p404 = por %p402, %p403
      %p405 = scmp.le.s32.totalorder 1, %s32
      %p406 = scmp.lt.s32.totalorder %s32, 7
      %p407 = pnand %p405, %p406
      %p408 = pneg %p407
      // Predicated region
      $region9: #{tpu_custom_call.1} parent=5 // pred_check
        _
      $region10: #{tpu_custom_call.1} parent=5 // pred_check_branch
        %410 = sbr.rel (%p407) target = $region12
      $region11: #{tpu_custom_call.1} parent=5 // pred_region
        %s411 = ssub.s32 %s32, 1
        // Predicated region
        $region13: #{tpu_custom_call.1} parent=11 // pred_check
          %p412 = pneg %p119
        $region14: #{tpu_custom_call.1} parent=11 // pred_check_branch
          %414 = sbr.rel (%p412) target = $region16
        $region15: #{tpu_custom_call.1} parent=11 // pred_region
          %416 = vsyncadd [#allocation7], 0
          %s417 = sshll.u32 %s2, 4
          %s418 = int_to_ptr.hbm [resolvable:$true] %s417
          %s419 = sshll.u32 [#allocation8], 4
          %s420 = int_to_ptr.vmem [resolvable:$true] %s419
          %425 = dma.hbm_to_vmem [thread:$0]  %s418, 3072, %s420, [#allocation7], 64, 64, 4
        $region16: #{tpu_custom_call.1} parent=11 // pred_fallthru
          _
        // Predicated region
        $region17: #{tpu_custom_call.1} parent=11 // pred_check
          %p426 = pneg %p140
        $region18: #{tpu_custom_call.1} parent=11 // pred_check_branch
          %428 = sbr.rel (%p426) target = $region20
        $region19: #{tpu_custom_call.1} parent=11 // pred_region
          _
        $region20: #{tpu_custom_call.1} parent=11 // pred_fallthru
          _
        // Predicated region
        $region21: #{tpu_custom_call.1} parent=11 // pred_check
          %p429 = pneg %p161
        $region22: #{tpu_custom_call.1} parent=11 // pred_check_branch
          %431 = sbr.rel (%p429) target = $region24
        $region23: #{tpu_custom_call.1} parent=11 // pred_region
          %433 = vsyncadd [#allocation10], 0
          %s435 = sshll.u32 %s4, 4
          %s436 = int_to_ptr.hbm [resolvable:$true] %s435
          %s437 = sshll.u32 [#allocation9], 4
          %s438 = int_to_ptr.vmem [resolvable:$true] %s437
          %440 = dma.hbm_to_vmem [thread:$0]  %s436, 16, %s438, [#allocation10]
        $region24: #{tpu_custom_call.1} parent=11 // pred_fallthru
          _
        // Predicated region
        $region25: #{tpu_custom_call.1} parent=11 // pred_check
          %p441 = pneg %p182
        $region26: #{tpu_custom_call.1} parent=11 // pred_check_branch
          %443 = sbr.rel (%p441) target = $region28
        $region27: #{tpu_custom_call.1} parent=11 // pred_region
          _
        $region28: #{tpu_custom_call.1} parent=11 // pred_fallthru
          _
        // Predicated region
        $region29: #{tpu_custom_call.1} parent=11 // pred_check
          %p444 = pneg %p203
        $region30: #{tpu_custom_call.1} parent=11 // pred_check_branch
          %446 = sbr.rel (%p444) target = $region32
        $region31: #{tpu_custom_call.1} parent=11 // pred_region
          %448 = vsyncadd [#allocation10], 0
          %s449 = sshll.u32 %s6, 4
          %s450 = int_to_ptr.hbm [resolvable:$true] %s449
          %s451 = sshll.u32 [#allocation11], 4
          %s452 = int_to_ptr.vmem [resolvable:$true] %s451
          %457 = dma.hbm_to_vmem [thread:$0]  %s450, 4096, %s452, [#allocation10], 128, 128, 8
        $region32: #{tpu_custom_call.1} parent=11 // pred_fallthru
          _
        // Predicated region
        $region33: #{tpu_custom_call.1} parent=11 // pred_check
          %p458 = pneg %p224
        $region34: #{tpu_custom_call.1} parent=11 // pred_check_branch
          %460 = sbr.rel (%p458) target = $region36
        $region35: #{tpu_custom_call.1} parent=11 // pred_region
          _
        $region36: #{tpu_custom_call.1} parent=11 // pred_fallthru
          _
        // Predicated region
        $region37: #{tpu_custom_call.1} parent=11 // pred_check
          %p461 = pneg %p245
        $region38: #{tpu_custom_call.1} parent=11 // pred_check_branch
          %463 = sbr.rel (%p461) target = $region40
        $region39: #{tpu_custom_call.1} parent=11 // pred_region
          %465 = vsyncadd [#allocation13], 0
          %s466 = sshll.u32 %s8, 4
          %s467 = int_to_ptr.hbm [resolvable:$true] %s466
          %s468 = sshll.u32 [#allocation12], 4
          %s469 = int_to_ptr.vmem [resolvable:$true] %s468
          %474 = dma.hbm_to_vmem [thread:$0]  %s467, 1024, %s469, [#allocation13], 64, 64, 4
        $region40: #{tpu_custom_call.1} parent=11 // pred_fallthru
          _
        // Predicated region
        $region41: #{tpu_custom_call.1} parent=11 // pred_check
          %p475 = pneg %p266
        $region42: #{tpu_custom_call.1} parent=11 // pred_check_branch
          %477 = sbr.rel (%p475) target = $region44
        $region43: #{tpu_custom_call.1} parent=11 // pred_region
          _
        $region44: #{tpu_custom_call.1} parent=11 // pred_fallthru
          _
        // Predicated region
        $region45: #{tpu_custom_call.1} parent=11 // pred_check
          %p478 = pneg %p287
        $region46: #{tpu_custom_call.1} parent=11 // pred_check_branch
          %480 = sbr.rel (%p478) target = $region48
        $region47: #{tpu_custom_call.1} parent=11 // pred_region
          %482 = vsyncadd [#allocation13], 0
          %s483 = sshll.u32 %s10, 4
          %s484 = int_to_ptr.hbm [resolvable:$true] %s483
          %s485 = sshll.u32 [#allocation14], 4
          %s486 = int_to_ptr.vmem [resolvable:$true] %s485
          %491 = dma.hbm_to_vmem [thread:$0]  %s484, 1024, %s486, [#allocation13], 64, 64, 4
        $region48: #{tpu_custom_call.1} parent=11 // pred_fallthru
          _
        // Predicated region
        $region49: #{tpu_custom_call.1} parent=11 // pred_check
          %p492 = pneg %p308
        $region50: #{tpu_custom_call.1} parent=11 // pred_check_branch
          %494 = sbr.rel (%p492) target = $region52
        $region51: #{tpu_custom_call.1} parent=11 // pred_region
          _
        $region52: #{tpu_custom_call.1} parent=11 // pred_fallthru
          _
        // Predicated region
        $region53: #{tpu_custom_call.1} parent=11 // pred_check
          %p495 = pneg %p329
        $region54: #{tpu_custom_call.1} parent=11 // pred_check_branch
          %497 = sbr.rel (%p495) target = $region56
        $region55: #{tpu_custom_call.1} parent=11 // pred_region
          _
        $region56: #{tpu_custom_call.1} parent=11 // pred_fallthru
          _
        // Predicated region
        $region57: #{tpu_custom_call.1} parent=11 // pred_check
          %p498 = pneg %p350
        $region58: #{tpu_custom_call.1} parent=11 // pred_check_branch
          %500 = sbr.rel (%p498) target = $region60
        $region59: #{tpu_custom_call.1} parent=11 // pred_region
          _
        $region60: #{tpu_custom_call.1} parent=11 // pred_fallthru
          _
        // Predicated region
        $region61: #{tpu_custom_call.1} parent=11 // pred_check
          %p501 = pneg %p371
        $region62: #{tpu_custom_call.1} parent=11 // pred_check_branch
          %503 = sbr.rel (%p501) target = $region64
        $region63: #{tpu_custom_call.1} parent=11 // pred_region
          _
        $region64: #{tpu_custom_call.1} parent=11 // pred_fallthru
          _
      $region12: #{tpu_custom_call.1} parent=5 // pred_fallthru
        _
      %p504 = scmp.lt.s32.totalorder %s32, 6
      // Predicated region
      $region65: #{tpu_custom_call.1} parent=5 // pred_check
        %p505 = pneg %p504
      $region66: #{tpu_custom_call.1} parent=5 // pred_check_branch
        %507 = sbr.rel (%p505) target = $region68
      $region67: #{tpu_custom_call.1} parent=5 // pred_region
        // Predicated region
        $region69: #{tpu_custom_call.1} parent=67 // pred_check
          %p508 = pneg %p66
        $region70: #{tpu_custom_call.1} parent=67 // pred_check_branch
          %510 = sbr.rel (%p508) target = $region72
        $region71: #{tpu_custom_call.1} parent=67 // pred_region
          %s511 = sand.u32 %s56, 1
          %s512 = scalar_lea.sflag [#allocation4], %s511
          %s513 = sand.u32 %s56, 1
          %s514 = smul.addr %s513, 16
          %s515 = scalar_lea.vmem [#allocation3], %s514
          %s516 = smul.u32 2, %s39
          %s517 = ssub.s32 3, %s516
          %p518 = scmp.lt.s32.totalorder %s517, 2
          %s519 = scalar_select %p518, %s517, 2
          %s520 = smul.u32 8, %s519
          %s521 = ssub.s32 16, %s520
          %s522 = sshll.u32 %s521, 4
          %523 = vsyncadd %s512, %s522
          %p524 = scmp.ne.s32.totalorder 0, %s520
          %s525 = smul.addr %s516, 3
          %s526 = sadd.s32 %s40, %s525
          %s527 = smul.addr %s526, 8
          %s528 = scalar_lea.hbm %s0, %s527
          %s529 = smul.u32 8, %s519
          %s530 = sshll.u32 %s528, 4
          %s531 = int_to_ptr.hbm [resolvable:$true] %s530
          %s532 = sshll.u32 %s515, 4
          %s533 = int_to_ptr.vmem [resolvable:$true] %s532
          %s534 = sshll.u32 %s529, 4
          %538 = dma.hbm_to_vmem [thread:$0]  (%p524), %s531, %s534, %s533, %s512, 384, 128, 8
        $region72: #{tpu_custom_call.1} parent=67 // pred_fallthru
          _
        // Predicated region
        $region73: #{tpu_custom_call.1} parent=67 // pred_check
          %p539 = pneg %p92
        $region74: #{tpu_custom_call.1} parent=67 // pred_check_branch
          %541 = sbr.rel (%p539) target = $region76
        $region75: #{tpu_custom_call.1} parent=67 // pred_region
          %s542 = sand.u32 %s32, 1
          %s543 = scalar_lea.sflag [#allocation7], %s542
          %s544 = sand.u32 %s82, 1
          %s545 = smul.addr %s544, 16
          %s546 = scalar_lea.vmem [#allocation6], %s545
          %s547 = smul.u32 2, %s39
          %s548 = ssub.s32 3, %s547
          %p549 = scmp.lt.s32.totalorder %s548, 2
          %s550 = scalar_select %p549, %s548, 2
          %s551 = smul.u32 8, %s550
          %s552 = ssub.s32 16, %s551
          %s553 = sshll.u32 %s552, 4
          %554 = vsyncadd %s543, %s553
          %p555 = scmp.ne.s32.totalorder 0, %s551
          %s556 = smul.addr %s547, 8
          %s557 = scalar_lea.hbm %s1, %s556
          %s558 = smul.u32 8, %s550
          %s559 = sshll.u32 %s557, 4
          %s560 = int_to_ptr.hbm [resolvable:$true] %s559
          %s561 = sshll.u32 %s546, 4
          %s562 = int_to_ptr.vmem [resolvable:$true] %s561
          %s563 = sshll.u32 %s558, 4
          %567 = dma.hbm_to_vmem [thread:$0]  (%p555), %s560, %s563, %s562, %s543, 128, 128, 8
        $region76: #{tpu_custom_call.1} parent=67 // pred_fallthru
          _
      $region68: #{tpu_custom_call.1} parent=5 // pred_fallthru
        _
      %p568 = scmp.le.s32.totalorder 1, %s32
      %p569 = scmp.lt.s32.totalorder %s32, 7
      %p570 = pnand %p568, %p569
      %p571 = pneg %p570
      // Predicated region
      $region77: #{tpu_custom_call.1} parent=5 // pred_check
        _
      $region78: #{tpu_custom_call.1} parent=5 // pred_check_branch
        %573 = sbr.rel (%p570) target = $region80
      $region79: #{tpu_custom_call.1} parent=5 // pred_region
        %s574 = ssub.s32 %s32, 1
        %s575 = sand.u32 %s59, 1
        %s576 = scalar_lea.sflag [#allocation4], %s575
        %s577 = sand.u32 %s59, 1
        %s578 = smul.addr %s577, 16
        %s579 = scalar_lea.vmem [#allocation3], %s578
        // Predicated region
        $region81: #{tpu_custom_call.1} parent=79 // pred_check
          %p580 = pneg %p72
        $region82: #{tpu_custom_call.1} parent=79 // pred_check_branch
          %582 = sbr.rel (%p580) target = $region84
        $region83: #{tpu_custom_call.1} parent=79 // pred_region
          %584 = dma.done %s576, 256
        $region84: #{tpu_custom_call.1} parent=79 // pred_fallthru
          _
        %s585 = sand.u32 %s37, 1
        %s586 = scalar_lea.sflag [#allocation7], %s585
        %s587 = sand.u32 %s85, 1
        %s588 = smul.addr %s587, 16
        %s589 = scalar_lea.vmem [#allocation6], %s588
        // Predicated region
        $region85: #{tpu_custom_call.1} parent=79 // pred_check
          %p590 = pneg %p98
        $region86: #{tpu_custom_call.1} parent=79 // pred_check_branch
          %592 = sbr.rel (%p590) target = $region88
        $region87: #{tpu_custom_call.1} parent=79 // pred_region
          %594 = dma.done %s586, 256
        $region88: #{tpu_custom_call.1} parent=79 // pred_fallthru
          _
        // Predicated region
        $region89: #{tpu_custom_call.1} parent=79 // pred_check
          %p595 = pneg %p119
        $region90: #{tpu_custom_call.1} parent=79 // pred_check_branch
          %597 = sbr.rel (%p595) target = $region92
        $region91: #{tpu_custom_call.1} parent=79 // pred_region
          %599 = dma.done [#allocation7], 3072
        $region92: #{tpu_custom_call.1} parent=79 // pred_fallthru
          _
        // Predicated region
        $region93: #{tpu_custom_call.1} parent=79 // pred_check
          %p600 = pneg %p161
        $region94: #{tpu_custom_call.1} parent=79 // pred_check_branch
          %602 = sbr.rel (%p600) target = $region96
        $region95: #{tpu_custom_call.1} parent=79 // pred_region
          %604 = dma.done [#allocation10], 16
        $region96: #{tpu_custom_call.1} parent=79 // pred_fallthru
          _
        // Predicated region
        $region97: #{tpu_custom_call.1} parent=79 // pred_check
          %p605 = pneg %p203
        $region98: #{tpu_custom_call.1} parent=79 // pred_check_branch
          %607 = sbr.rel (%p605) target = $region100
        $region99: #{tpu_custom_call.1} parent=79 // pred_region
          %609 = dma.done [#allocation10], 4096
        $region100: #{tpu_custom_call.1} parent=79 // pred_fallthru
          _
        // Predicated region
        $region101: #{tpu_custom_call.1} parent=79 // pred_check
          %p610 = pneg %p245
        $region102: #{tpu_custom_call.1} parent=79 // pred_check_branch
          %612 = sbr.rel (%p610) target = $region104
        $region103: #{tpu_custom_call.1} parent=79 // pred_region
          %614 = dma.done [#allocation13], 1024
        $region104: #{tpu_custom_call.1} parent=79 // pred_fallthru
          _
        // Predicated region
        $region105: #{tpu_custom_call.1} parent=79 // pred_check
          %p615 = pneg %p287
        $region106: #{tpu_custom_call.1} parent=79 // pred_check_branch
          %617 = sbr.rel (%p615) target = $region108
        $region107: #{tpu_custom_call.1} parent=79 // pred_region
          %619 = dma.done [#allocation13], 1024
        $region108: #{tpu_custom_call.1} parent=79 // pred_fallthru
          _
        %s620 = sand.u32 %s59, 1
        %s621 = scalar_lea.sflag [#allocation4], %s620
        %s622 = sand.u32 %s59, 1
        %s623 = smul.addr %s622, 16
        %s624 = scalar_lea.vmem [#allocation3], %s623
        %p625 = pneg %p72
        %p626 = pneg %p69
        %s627 = sand.u32 %s37, 1
        %s628 = scalar_lea.sflag [#allocation7], %s627
        %s629 = sand.u32 %s85, 1
        %s630 = smul.addr %s629, 16
        %s631 = scalar_lea.vmem [#allocation6], %s630
        %p632 = pneg %p98
        %p633 = pneg %p95
        %p634 = pneg %p119
        %p635 = pneg %p116
        %p636 = pneg %p140
        %p637 = pneg %p137
        %p638 = pneg %p161
        %p639 = pneg %p158
        %p640 = pneg %p182
        %p641 = pneg %p179
        %p642 = pneg %p203
        %p643 = pneg %p200
        %p644 = pneg %p224
        %p645 = pneg %p221
        %p646 = pneg %p245
        %p647 = pneg %p242
        %p648 = pneg %p266
        %p649 = pneg %p263
        %p650 = pneg %p287
        %p651 = pneg %p284
        %p652 = pneg %p308
        %p653 = pneg %p305
        %p654 = pneg %p329
        %p655 = pneg %p326
        %p656 = pneg %p350
        %p657 = pneg %p347
        %p658 = pneg %p371
        %p659 = pneg %p368
        %p660 = pneg %p397
        %p661 = pneg %p394
        %s662 = sand.u32 %s384, 1
        %s663 = scalar_lea.sflag [#allocation5], %s662
        %s664 = sand.u32 %s384, 1
        %s665 = smul.addr %s664, 16
        %s666 = scalar_lea.vmem [#allocation15], %s665
        %s667 = smul.u32 2, %s41
        %s668 = ssub.s32 3, %s667
        %p669 = scmp.lt.s32.totalorder %s668, 2
        %s670 = scalar_select %p669, %s668, 2
        %s671 = smul.u32 8, %s670
        %s672 = smul.u32 2, %s41
        %s673 = ssub.s32 3, %s672
        %p674 = scmp.lt.s32.totalorder %s673, 2
        %s675 = scalar_select %p674, %s673, 2
        %s676 = smul.u32 8, %s675
        %s677 = smul.u32 2, %s41
        %s678 = ssub.s32 3, %s677
        %p679 = scmp.lt.s32.totalorder %s678, 2
        %s680 = scalar_select %p679, %s678, 2
        %s681 = smul.u32 8, %s680
        %v682 = vld [vmem:[%s579] sm:$0xff]
        %v683 = vld [vmem:[%s579 + $0x8] sm:$0xff]
        %v684 = vlaneseq
        %v685 = vand.u32 %v684, 127
        %s686 = smul.u32 %s42, 128
        %v687 = vstv %s686
        %v688 = vadd.s32 %v685, %v687
        %vm689 = vcmp.lt.s32.totalorder %v688, 300
        %v690 = vsel %vm689, %v682, 0.0
        %v691 = vsel %vm689, %v683, 0.0
        %v692 = vpack.c.bf16 %v691, %v690
        %s693 = sshra.s32 %s686, 3
        %s694 = sand.u32 %s686, 7
        %s695 = smul.addr %s693, 4
        %s696 = scalar_lea.vmem [#allocation8], %s695
        %v697 = vld [vmem:[%s696] sm:$0xf]
        %v698 = vld [vmem:[%s696 + $0x4] sm:$0xf]
        %v699 = vld [vmem:[%s696 + $0x8] sm:$0xf]
        %v700 = vld [vmem:[%s696 + $0xc] sm:$0xf]
        %v701 = vld [vmem:[%s696 + $0x10] sm:$0xf]
        %v702 = vld [vmem:[%s696 + $0x14] sm:$0xf]
        %v703 = vld [vmem:[%s696 + $0x18] sm:$0xf]
        %v704 = vld [vmem:[%s696 + $0x1c] sm:$0xf]
        %v705 = vld [vmem:[%s696 + $0x20] sm:$0xf]
        %v706 = vld [vmem:[%s696 + $0x24] sm:$0xf]
        %v707 = vld [vmem:[%s696 + $0x28] sm:$0xf]
        %v708 = vld [vmem:[%s696 + $0x2c] sm:$0xf]
        %v709 = vld [vmem:[%s696 + $0x30] sm:$0xf]
        %v710 = vld [vmem:[%s696 + $0x34] sm:$0xf]
        %v711 = vld [vmem:[%s696 + $0x38] sm:$0xf]
        %v712 = vld [vmem:[%s696 + $0x3c] sm:$0xf]
        %v729 = vunpack.c.l.b16 %v697
        %v730 = vunpack.c.l.b16 %v698
        %v731 = vunpack.c.l.b16 %v699
        %v732 = vunpack.c.l.b16 %v700
        %v733 = vunpack.c.l.b16 %v701
        %v734 = vunpack.c.l.b16 %v702
        %v735 = vunpack.c.l.b16 %v703
        %v736 = vunpack.c.l.b16 %v704
        %v737 = vunpack.c.l.b16 %v705
        %v738 = vunpack.c.l.b16 %v706
        %v739 = vunpack.c.l.b16 %v707
        %v740 = vunpack.c.l.b16 %v708
        %v741 = vunpack.c.l.b16 %v709
        %v742 = vunpack.c.l.b16 %v710
        %v743 = vunpack.c.l.b16 %v711
        %v744 = vunpack.c.l.b16 %v712
        %v745 = vpack.c.b16 %v730, %v729
        %v746 = vpack.c.b16 %v732, %v731
        %v747 = vpack.c.b16 %v734, %v733
        %v748 = vpack.c.b16 %v736, %v735
        %v749 = vpack.c.b16 %v738, %v737
        %v750 = vpack.c.b16 %v740, %v739
        %v751 = vpack.c.b16 %v742, %v741
        %v752 = vpack.c.b16 %v744, %v743
        %761 = vmatpush.bf16.msra.mxu0 %v752
        %762 = vmatpush.bf16.msra.mxu0 %v751
        %763 = vmatpush.bf16.msra.mxu0 %v750
        %764 = vmatpush.bf16.msra.mxu0 %v749
        %765 = vmatpush.bf16.msra.mxu0 %v748
        %766 = vmatpush.bf16.msra.mxu0 %v747
        %767 = vmatpush.bf16.msra.mxu0 %v746
        %768 = vmatpush.bf16.msra.mxu0 %v745
        %769 = vmatmul.bf16.gmra.mxu0 %v692
        %v770 = vpop.f32.mrf.mxu0
        %v771 = vadd.f32 0.0, %v770
        %v772 = vpop.f32.mrf.mxu0
        %v773 = vadd.f32 0.0, %v772
        %774 = vdwg.mxu0
        %p775 = scmp.eq.s32.totalorder %s42, 0
        // Predicated region
        $region109: #{tpu_custom_call.1} parent=79 // pred_check
          %p776 = pneg %p775
        $region110: #{tpu_custom_call.1} parent=79 // pred_check_branch
          %778 = sbr.rel (%p776) target = $region112
        $region111: #{tpu_custom_call.1} parent=79 // pred_region
          %779 = vst [vmem:[#allocation2] sm:$0xff] %v771
          %780 = vst [vmem:[#allocation2 + $0x8] sm:$0xff] %v773
        $region112: #{tpu_custom_call.1} parent=79 // pred_fallthru
          _
        %p781 = scmp.gt.s32.totalorder %s42, 0
        // Predicated region
        $region113: #{tpu_custom_call.1} parent=79 // pred_check
          %p782 = pneg %p781
        $region114: #{tpu_custom_call.1} parent=79 // pred_check_branch
          %784 = sbr.rel (%p782) target = $region116
        $region115: #{tpu_custom_call.1} parent=79 // pred_region
          %v785 = vld [vmem:[#allocation2] sm:$0xff]
          %v786 = vld [vmem:[#allocation2 + $0x8] sm:$0xff]
          %v787 = vadd.f32 %v785, %v771
          %v788 = vadd.f32 %v786, %v773
          %789 = vst [vmem:[#allocation2] sm:$0xff] %v787
          %790 = vst [vmem:[#allocation2 + $0x8] sm:$0xff] %v788
        $region116: #{tpu_custom_call.1} parent=79 // pred_fallthru
          _
        %p791 = scmp.eq.s32.totalorder %s42, 2
        // Predicated region
        $region117: #{tpu_custom_call.1} parent=79 // pred_check
          %p792 = pneg %p791
        $region118: #{tpu_custom_call.1} parent=79 // pred_check_branch
          %794 = sbr.rel (%p792) target = $region120
        $region119: #{tpu_custom_call.1} parent=79 // pred_region
          %v795 = vld [vmem:[#allocation2] sm:$0xff]
          %v796 = vld [vmem:[#allocation2 + $0x8] sm:$0xff]
          %v797 = vld [vmem:[%s3] sm:$0x1]
          %v799 = vperm.slane %v797, 0
          %v801 = vadd.f32 %v795, %v799
          %v802 = vadd.f32 %v796, %v799
          %803 = vadd.xlane.f32.xlu0 %v801
          %v804 = vpop.xlane.xlu0 %803
          %805 = vadd.xlane.f32.xlu0 %v802
          %v806 = vpop.xlane.xlu0 %805
          %v807 = vmul.f32 %v804, 0.02
          %v808 = vmul.f32 %v806, 0.02
          %v809 = vsub.f32 %v801, %v807
          %v810 = vsub.f32 %v802, %v808
          %vm811 = vcmp.lt.s32.totalorder %v685, 50
          %v812 = vsel %vm811, %v809, 0.0
          %v813 = vsel %vm811, %v810, 0.0
          %v814 = vmul.f32 %v812, %v812
          %v815 = vmul.f32 %v813, %v813
          %816 = vadd.xlane.f32.xlu0 %v814
          %v817 = vpop.xlane.xlu0 %816
          %818 = vadd.xlane.f32.xlu0 %v815
          %v819 = vpop.xlane.xlu0 %818
          %v820 = vmul.f32 %v817, 0.02
          %v821 = vmul.f32 %v819, 0.02
          %v822 = vadd.f32 %v820, 1e-05
          %v823 = vadd.f32 %v821, 1e-05
          %v824 = vrsqrt.pop %v822
          %v825 = vmul.f32 %v824, %v822
          %v826 = vmul.f32 %v825, %v824
          %v827 = vmul.f32 0.5, %v826
          %v828 = vsub.f32 1.5, %v827
          %v829 = vmul.f32 %v824, %v828
          %vm830 = vweird.f32 %v822
          %vm831 = vweird.f32 %v824
          %vm832 = vmor %vm830, %vm831
          %v833 = vsel %vm832, %v824, %v829
          %v834 = vrsqrt.pop %v823
          %v835 = vmul.f32 %v834, %v823
          %v836 = vmul.f32 %v835, %v834
          %v837 = vmul.f32 0.5, %v836
          %v838 = vsub.f32 1.5, %v837
          %v839 = vmul.f32 %v834, %v838
          %vm840 = vweird.f32 %v823
          %vm841 = vweird.f32 %v834
          %vm842 = vmor %vm840, %vm841
          %v843 = vsel %vm842, %v834, %v839
          %v844 = vmul.f32 %v809, %v833
          %v845 = vmul.f32 %v810, %v843
          %v846 = vld [vmem:[#allocation9] sm:$0x1]
          %v848 = vperm.slane %v846, 0
          %v850 = vmul.f32 %v844, %v848
          %v851 = vmul.f32 %v845, %v848
          %v852 = vld [vmem:[%s5] sm:$0x1]
          %v854 = vperm.slane %v852, 0
          %v856 = vadd.f32 %v850, %v854
          %v857 = vadd.f32 %v851, %v854
          %v858 = vtanh.pop %v856
          %v859 = vtanh.pop %v857
          %v860 = vpack.c.bf16 %v858, %v858
          %v861 = vpack.c.bf16 %v859, %v859
          %v862 = vld [vmem:[%s589] sm:$0xff]
          %v863 = vld [vmem:[%s589 + $0x8] sm:$0xff]
          %v864 = vpack.c.bf16 %v862, %v862
          %v865 = vpack.c.bf16 %v863, %v863
          %v868 = vunpack.c.l.b16 %v860
          %v869 = vunpack.c.l.b16 %v861
          %v870 = vpack.c.b16 %v869, %v868
          %v874 = vunpack.c.l.b16 %v864
          %v875 = vunpack.c.l.b16 %v865
          %v876 = vpack.c.b16 %v875, %v874
          %v878 = vld [vmem:[#allocation11] sm:$0xff]
          %v879 = vld [vmem:[#allocation11 + $0x8] sm:$0xff]
          %v880 = vld [vmem:[#allocation11 + $0x10] sm:$0xff]
          %v881 = vld [vmem:[#allocation11 + $0x18] sm:$0xff]
          %v882 = vld [vmem:[#allocation11 + $0x20] sm:$0xff]
          %v883 = vld [vmem:[#allocation11 + $0x28] sm:$0xff]
          %v884 = vld [vmem:[#allocation11 + $0x30] sm:$0xff]
          %v885 = vld [vmem:[#allocation11 + $0x38] sm:$0xff]
          %v886 = vld [vmem:[#allocation11 + $0x40] sm:$0xff]
          %v887 = vld [vmem:[#allocation11 + $0x48] sm:$0xff]
          %v888 = vld [vmem:[#allocation11 + $0x50] sm:$0xff]
          %v889 = vld [vmem:[#allocation11 + $0x58] sm:$0xff]
          %v890 = vld [vmem:[#allocation11 + $0x60] sm:$0xff]
          %v891 = vld [vmem:[#allocation11 + $0x68] sm:$0xff]
          %v892 = vld [vmem:[#allocation11 + $0x70] sm:$0xff]
          %v893 = vld [vmem:[#allocation11 + $0x78] sm:$0xff]
          %v894 = vld [vmem:[#allocation11 + $0x80] sm:$0xff]
          %v895 = vld [vmem:[#allocation11 + $0x88] sm:$0xff]
          %v896 = vld [vmem:[#allocation11 + $0x90] sm:$0xff]
          %v897 = vld [vmem:[#allocation11 + $0x98] sm:$0xff]
          %v898 = vld [vmem:[#allocation11 + $0xa0] sm:$0xff]
          %v899 = vld [vmem:[#allocation11 + $0xa8] sm:$0xff]
          %v900 = vld [vmem:[#allocation11 + $0xb0] sm:$0xff]
          %v901 = vld [vmem:[#allocation11 + $0xb8] sm:$0xff]
          %v902 = vld [vmem:[#allocation11 + $0xc0] sm:$0xff]
          %v903 = vld [vmem:[#allocation11 + $0xc8] sm:$0xff]
          %v904 = vld [vmem:[#allocation11 + $0xd0] sm:$0xff]
          %v905 = vld [vmem:[#allocation11 + $0xd8] sm:$0xff]
          %v906 = vld [vmem:[#allocation11 + $0xe0] sm:$0xff]
          %v907 = vld [vmem:[#allocation11 + $0xe8] sm:$0xff]
          %v908 = vld [vmem:[#allocation11 + $0xf0] sm:$0xff]
          %v909 = vld [vmem:[#allocation11 + $0xf8] sm:$0xff]
          %v910 = vld [vmem:[%s7] sm:$0x3]
          %v912 = vperm.slane %v910, 0
          %v913 = vperm.slane %v910, 1
          %v948 = vunpack.c.l.b16 %v878
          %v949 = vunpack.c.h.b16 %v878
          %v950 = vunpack.c.l.b16 %v879
          %v951 = vunpack.c.h.b16 %v879
          %v952 = vunpack.c.l.b16 %v880
          %v953 = vunpack.c.h.b16 %v880
          %v954 = vunpack.c.l.b16 %v881
          %v955 = vunpack.c.h.b16 %v881
          %v956 = vunpack.c.l.b16 %v882
          %v957 = vunpack.c.h.b16 %v882
          %v958 = vunpack.c.l.b16 %v883
          %v959 = vunpack.c.h.b16 %v883
          %v960 = vunpack.c.l.b16 %v884
          %v961 = vunpack.c.h.b16 %v884
          %v962 = vunpack.c.l.b16 %v885
          %v963 = vunpack.c.h.b16 %v885
          %v964 = vunpack.c.l.b16 %v886
          %v965 = vunpack.c.h.b16 %v886
          %v966 = vunpack.c.l.b16 %v887
          %v967 = vunpack.c.h.b16 %v887
          %v968 = vunpack.c.l.b16 %v888
          %v969 = vunpack.c.h.b16 %v888
          %v970 = vunpack.c.l.b16 %v889
          %v971 = vunpack.c.h.b16 %v889
          %v972 = vunpack.c.l.b16 %v890
          %v973 = vunpack.c.h.b16 %v890
          %v974 = vunpack.c.l.b16 %v891
          %v975 = vunpack.c.h.b16 %v891
          %v976 = vunpack.c.l.b16 %v892
          %v977 = vunpack.c.h.b16 %v892
          %v978 = vunpack.c.l.b16 %v893
          %v979 = vunpack.c.h.b16 %v893
          %v980 = vunpack.c.l.b16 %v894
          %v981 = vunpack.c.h.b16 %v894
          %v982 = vunpack.c.l.b16 %v895
          %v983 = vunpack.c.h.b16 %v895
          %v984 = vunpack.c.l.b16 %v896
          %v985 = vunpack.c.h.b16 %v896
          %v986 = vunpack.c.l.b16 %v897
          %v987 = vunpack.c.h.b16 %v897
          %v988 = vunpack.c.l.b16 %v898
          %v989 = vunpack.c.h.b16 %v898
          %v990 = vunpack.c.l.b16 %v899
          %v991 = vunpack.c.h.b16 %v899
          %v992 = vunpack.c.l.b16 %v900
          %v993 = vunpack.c.h.b16 %v900
          %v994 = vunpack.c.l.b16 %v901
          %v995 = vunpack.c.h.b16 %v901
          %v996 = vunpack.c.l.b16 %v902
          %v997 = vunpack.c.h.b16 %v902
          %v998 = vunpack.c.l.b16 %v903
          %v999 = vunpack.c.h.b16 %v903
          %v1000 = vunpack.c.l.b16 %v904
          %v1001 = vunpack.c.h.b16 %v904
          %v1002 = vunpack.c.l.b16 %v905
          %v1003 = vunpack.c.h.b16 %v905
          %v1004 = vunpack.c.l.b16 %v906
          %v1005 = vunpack.c.h.b16 %v906
          %v1006 = vunpack.c.l.b16 %v907
          %v1007 = vunpack.c.h.b16 %v907
          %v1008 = vunpack.c.l.b16 %v908
          %v1009 = vunpack.c.h.b16 %v908
          %v1010 = vunpack.c.l.b16 %v909
          %v1011 = vunpack.c.h.b16 %v909
          %v1012 = vpack.c.b16 %v950, %v948
          %v1013 = vpack.c.b16 %v951, %v949
          %v1014 = vpack.c.b16 %v954, %v952
          %v1015 = vpack.c.b16 %v955, %v953
          %v1016 = vpack.c.b16 %v958, %v956
          %v1017 = vpack.c.b16 %v959, %v957
          %v1018 = vpack.c.b16 %v962, %v960
          %v1019 = vpack.c.b16 %v963, %v961
          %v1020 = vpack.c.b16 %v966, %v964
          %v1021 = vpack.c.b16 %v967, %v965
          %v1022 = vpack.c.b16 %v970, %v968
          %v1023 = vpack.c.b16 %v971, %v969
          %v1024 = vpack.c.b16 %v974, %v972
          %v1025 = vpack.c.b16 %v975, %v973
          %v1026 = vpack.c.b16 %v978, %v976
          %v1027 = vpack.c.b16 %v979, %v977
          %v1028 = vpack.c.b16 %v982, %v980
          %v1029 = vpack.c.b16 %v983, %v981
          %v1030 = vpack.c.b16 %v986, %v984
          %v1031 = vpack.c.b16 %v987, %v985
          %v1032 = vpack.c.b16 %v990, %v988
          %v1033 = vpack.c.b16 %v991, %v989
          %v1034 = vpack.c.b16 %v994, %v992
          %v1035 = vpack.c.b16 %v995, %v993
          %v1036 = vpack.c.b16 %v998, %v996
          %v1037 = vpack.c.b16 %v999, %v997
          %v1038 = vpack.c.b16 %v1002, %v1000
          %v1039 = vpack.c.b16 %v1003, %v1001
          %v1040 = vpack.c.b16 %v1006, %v1004
          %v1041 = vpack.c.b16 %v1007, %v1005
          %v1042 = vpack.c.b16 %v1010, %v1008
          %v1043 = vpack.c.b16 %v1011, %v1009
          %1076 = vmatpush.bf16.msra.mxu0 %v1026
          %1077 = vmatpush.bf16.msra.mxu0 %v1024
          %1078 = vmatpush.bf16.msra.mxu0 %v1022
          %1079 = vmatpush.bf16.msra.mxu0 %v1020
          %1080 = vmatpush.bf16.msra.mxu0 %v1018
          %1081 = vmatpush.bf16.msra.mxu0 %v1016
          %1082 = vmatpush.bf16.msra.mxu0 %v1014
          %1083 = vmatpush.bf16.msra.mxu0 %v1012
          %1084 = vmatmul.bf16.gmra.mxu0 %v870
          %v1085 = vpop.f32.mrf.mxu0
          %v1086 = vadd.f32 %v912, %v1085
          %v1087 = vpop.f32.mrf.mxu0
          %v1088 = vadd.f32 %v912, %v1087
          %1089 = vdwg.mxu0
          %1090 = vmatpush.bf16.msra.mxu0 %v1042
          %1091 = vmatpush.bf16.msra.mxu0 %v1040
          %1092 = vmatpush.bf16.msra.mxu0 %v1038
          %1093 = vmatpush.bf16.msra.mxu0 %v1036
          %1094 = vmatpush.bf16.msra.mxu0 %v1034
          %1095 = vmatpush.bf16.msra.mxu0 %v1032
          %1096 = vmatpush.bf16.msra.mxu0 %v1030
          %1097 = vmatpush.bf16.msra.mxu0 %v1028
          %1098 = vmatmul.bf16.gmra.mxu0 %v876
          %v1099 = vpop.f32.mrf.mxu0
          %v1100 = vadd.f32 %v1086, %v1099
          %v1101 = vpop.f32.mrf.mxu0
          %v1102 = vadd.f32 %v1088, %v1101
          %1103 = vdwg.mxu0
          %1104 = vmatpush.bf16.msra.mxu0 %v1027
          %1105 = vmatpush.bf16.msra.mxu0 %v1025
          %1106 = vmatpush.bf16.msra.mxu0 %v1023
          %1107 = vmatpush.bf16.msra.mxu0 %v1021
          %1108 = vmatpush.bf16.msra.mxu0 %v1019
          %1109 = vmatpush.bf16.msra.mxu0 %v1017
          %1110 = vmatpush.bf16.msra.mxu0 %v1015
          %1111 = vmatpush.bf16.msra.mxu0 %v1013
          %1112 = vmatmul.bf16.gmra.mxu0 %v870
          %v1113 = vpop.f32.mrf.mxu0
          %v1114 = vadd.f32 %v913, %v1113
          %v1115 = vpop.f32.mrf.mxu0
          %v1116 = vadd.f32 %v913, %v1115
          %1117 = vdwg.mxu0
          %1118 = vmatpush.bf16.msra.mxu0 %v1043
          %1119 = vmatpush.bf16.msra.mxu0 %v1041
          %1120 = vmatpush.bf16.msra.mxu0 %v1039
          %1121 = vmatpush.bf16.msra.mxu0 %v1037
          %1122 = vmatpush.bf16.msra.mxu0 %v1035
          %1123 = vmatpush.bf16.msra.mxu0 %v1033
          %1124 = vmatpush.bf16.msra.mxu0 %v1031
          %1125 = vmatpush.bf16.msra.mxu0 %v1029
          %1126 = vmatmul.bf16.gmra.mxu0 %v876
          %v1127 = vpop.f32.mrf.mxu0
          %v1128 = vadd.f32 %v1114, %v1127
          %v1129 = vpop.f32.mrf.mxu0
          %v1130 = vadd.f32 %v1116, %v1129
          %1131 = vdwg.mxu0
          %v1132 = vmax.f32 %v1100, 0.0
          %v1133 = vmax.f32 %v1128, 0.0
          %v1134 = vmax.f32 %v1102, 0.0
          %v1135 = vmax.f32 %v1130, 0.0
          %v1136 = vpack.c.bf16 %v1134, %v1132
          %v1137 = vpack.c.bf16 %v1135, %v1133
          %v1138 = vld [vmem:[#allocation12] sm:$0xf]
          %v1139 = vld [vmem:[#allocation12 + $0x4] sm:$0xf]
          %v1140 = vld [vmem:[#allocation12 + $0x8] sm:$0xf]
          %v1141 = vld [vmem:[#allocation12 + $0xc] sm:$0xf]
          %v1142 = vld [vmem:[#allocation12 + $0x10] sm:$0xf]
          %v1143 = vld [vmem:[#allocation12 + $0x14] sm:$0xf]
          %v1144 = vld [vmem:[#allocation12 + $0x18] sm:$0xf]
          %v1145 = vld [vmem:[#allocation12 + $0x1c] sm:$0xf]
          %v1146 = vld [vmem:[#allocation12 + $0x20] sm:$0xf]
          %v1147 = vld [vmem:[#allocation12 + $0x24] sm:$0xf]
          %v1148 = vld [vmem:[#allocation12 + $0x28] sm:$0xf]
          %v1149 = vld [vmem:[#allocation12 + $0x2c] sm:$0xf]
          %v1150 = vld [vmem:[#allocation12 + $0x30] sm:$0xf]
          %v1151 = vld [vmem:[#allocation12 + $0x34] sm:$0xf]
          %v1152 = vld [vmem:[#allocation12 + $0x38] sm:$0xf]
          %v1153 = vld [vmem:[#allocation12 + $0x3c] sm:$0xf]
          %v1154 = vld [vmem:[%s9] sm:$0x1]
          %v1156 = vperm.slane %v1154, 0
          %v1174 = vunpack.c.l.b16 %v1138
          %v1175 = vunpack.c.l.b16 %v1139
          %v1176 = vunpack.c.l.b16 %v1140
          %v1177 = vunpack.c.l.b16 %v1141
          %v1178 = vunpack.c.l.b16 %v1142
          %v1179 = vunpack.c.l.b16 %v1143
          %v1180 = vunpack.c.l.b16 %v1144
          %v1181 = vunpack.c.l.b16 %v1145
          %v1182 = vunpack.c.l.b16 %v1146
          %v1183 = vunpack.c.l.b16 %v1147
          %v1184 = vunpack.c.l.b16 %v1148
          %v1185 = vunpack.c.l.b16 %v1149
          %v1186 = vunpack.c.l.b16 %v1150
          %v1187 = vunpack.c.l.b16 %v1151
          %v1188 = vunpack.c.l.b16 %v1152
          %v1189 = vunpack.c.l.b16 %v1153
          %v1190 = vpack.c.b16 %v1175, %v1174
          %v1191 = vpack.c.b16 %v1177, %v1176
          %v1192 = vpack.c.b16 %v1179, %v1178
          %v1193 = vpack.c.b16 %v1181, %v1180
          %v1194 = vpack.c.b16 %v1183, %v1182
          %v1195 = vpack.c.b16 %v1185, %v1184
          %v1196 = vpack.c.b16 %v1187, %v1186
          %v1197 = vpack.c.b16 %v1189, %v1188
          %1206 = vmatpush.bf16.msra.mxu0 %v1197
          %1207 = vmatpush.bf16.msra.mxu0 %v1196
          %1208 = vmatpush.bf16.msra.mxu0 %v1195
          %1209 = vmatpush.bf16.msra.mxu0 %v1194
          %1210 = vmatpush.bf16.msra.mxu0 %v1193
          %1211 = vmatpush.bf16.msra.mxu0 %v1192
          %1212 = vmatpush.bf16.msra.mxu0 %v1191
          %1213 = vmatpush.bf16.msra.mxu0 %v1190
          %1214 = vmatmul.bf16.gmra.mxu0 %v1136
          %v1215 = vpop.f32.mrf.mxu0
          %v1216 = vadd.f32 %v1156, %v1215
          %v1217 = vpop.f32.mrf.mxu0
          %v1218 = vadd.f32 %v1156, %v1217
          %1219 = vdwg.mxu0
          %v1220 = vmax.f32 %v1216, 0.0
          %v1221 = vmax.f32 %v1218, 0.0
          %v1222 = vld [vmem:[#allocation14] sm:$0xf]
          %v1223 = vld [vmem:[#allocation14 + $0x4] sm:$0xf]
          %v1224 = vld [vmem:[#allocation14 + $0x8] sm:$0xf]
          %v1225 = vld [vmem:[#allocation14 + $0xc] sm:$0xf]
          %v1226 = vld [vmem:[#allocation14 + $0x10] sm:$0xf]
          %v1227 = vld [vmem:[#allocation14 + $0x14] sm:$0xf]
          %v1228 = vld [vmem:[#allocation14 + $0x18] sm:$0xf]
          %v1229 = vld [vmem:[#allocation14 + $0x1c] sm:$0xf]
          %v1230 = vld [vmem:[#allocation14 + $0x20] sm:$0xf]
          %v1231 = vld [vmem:[#allocation14 + $0x24] sm:$0xf]
          %v1232 = vld [vmem:[#allocation14 + $0x28] sm:$0xf]
          %v1233 = vld [vmem:[#allocation14 + $0x2c] sm:$0xf]
          %v1234 = vld [vmem:[#allocation14 + $0x30] sm:$0xf]
          %v1235 = vld [vmem:[#allocation14 + $0x34] sm:$0xf]
          %v1236 = vld [vmem:[#allocation14 + $0x38] sm:$0xf]
          %v1237 = vld [vmem:[#allocation14 + $0x3c] sm:$0xf]
          %v1238 = vld [vmem:[%s11] sm:$0x1]
          %v1240 = vperm.slane %v1238, 0
          %v1258 = vunpack.c.l.b16 %v1222
          %v1259 = vunpack.c.l.b16 %v1223
          %v1260 = vunpack.c.l.b16 %v1224
          %v1261 = vunpack.c.l.b16 %v1225
          %v1262 = vunpack.c.l.b16 %v1226
          %v1263 = vunpack.c.l.b16 %v1227
          %v1264 = vunpack.c.l.b16 %v1228
          %v1265 = vunpack.c.l.b16 %v1229
          %v1266 = vunpack.c.l.b16 %v1230
          %v1267 = vunpack.c.l.b16 %v1231
          %v1268 = vunpack.c.l.b16 %v1232
          %v1269 = vunpack.c.l.b16 %v1233
          %v1270 = vunpack.c.l.b16 %v1234
          %v1271 = vunpack.c.l.b16 %v1235
          %v1272 = vunpack.c.l.b16 %v1236
          %v1273 = vunpack.c.l.b16 %v1237
          %v1274 = vpack.c.b16 %v1259, %v1258
          %v1275 = vpack.c.b16 %v1261, %v1260
          %v1276 = vpack.c.b16 %v1263, %v1262
          %v1277 = vpack.c.b16 %v1265, %v1264
          %v1278 = vpack.c.b16 %v1267, %v1266
          %v1279 = vpack.c.b16 %v1269, %v1268
          %v1280 = vpack.c.b16 %v1271, %v1270
          %v1281 = vpack.c.b16 %v1273, %v1272
          %1290 = vmatpush.bf16.msra.mxu0 %v1281
          %1291 = vmatpush.bf16.msra.mxu0 %v1280
          %1292 = vmatpush.bf16.msra.mxu0 %v1279
          %1293 = vmatpush.bf16.msra.mxu0 %v1278
          %1294 = vmatpush.bf16.msra.mxu0 %v1277
          %1295 = vmatpush.bf16.msra.mxu0 %v1276
          %1296 = vmatpush.bf16.msra.mxu0 %v1275
          %1297 = vmatpush.bf16.msra.mxu0 %v1274
          %1298 = vmatmul.bf16.gmra.mxu0 %v1137
          %v1299 = vpop.f32.mrf.mxu0
          %v1300 = vadd.f32 %v1240, %v1299
          %v1301 = vpop.f32.mrf.mxu0
          %v1302 = vadd.f32 %v1240, %v1301
          %1303 = vdwg.mxu0
          %v1304 = vmax.f32 %v1300, 0.0
          %v1305 = vmax.f32 %v1302, 0.0
          %v1306 = vld [vmem:[%s12] sm:$0x1]
          %v1308 = vperm.slane %v1306, 0
          %v1310 = vmul.f32 %v1220, %v1308
          %v1311 = vmul.f32 %v1221, %v1308
          %1312 = vadd.xlane.f32.xlu0 %v1310
          %v1313 = vpop.xlane.xlu0 %1312
          %1314 = vadd.xlane.f32.xlu0 %v1311
          %v1315 = vpop.xlane.xlu0 %1314
          %v1316 = vld [vmem:[%s13] sm:$0x1]
          %v1318 = vperm.slane %v1316, 0
          %v1320 = vmul.f32 %v1304, %v1318
          %v1321 = vmul.f32 %v1305, %v1318
          %1322 = vadd.xlane.f32.xlu0 %v1320
          %v1323 = vpop.xlane.xlu0 %1322
          %1324 = vadd.xlane.f32.xlu0 %v1321
          %v1325 = vpop.xlane.xlu0 %1324
          %vm1326 = vcmp.eq.s32.totalorder %v685, 0
          %v1327 = vsel %vm1326, %v1313, 0.0
          %v1328 = vsel %vm1326, %v1315, 0.0
          %vm1329 = vcmp.eq.s32.totalorder %v685, 1
          %v1330 = vsel %vm1329, %v1323, 0.0
          %v1331 = vsel %vm1329, %v1325, 0.0
          %v1332 = vadd.f32 %v1327, %v1330
          %v1333 = vadd.f32 %v1328, %v1331
          %v1334 = vld [vmem:[%s14] sm:$0x1]
          %v1336 = vperm.slane %v1334, 0
          %v1338 = vadd.f32 %v1332, %v1336
          %v1339 = vadd.f32 %v1333, %v1336
          %1340 = vst [vmem:[%s666] sm:$0xff] %v1338
          %1341 = vst [vmem:[%s666 + $0x8] sm:$0xff] %v1339
        $region120: #{tpu_custom_call.1} parent=79 // pred_fallthru
          _
        %s1342 = sand.u32 %s384, 1
        %s1343 = scalar_lea.sflag [#allocation5], %s1342
        %s1344 = sand.u32 %s384, 1
        %s1345 = smul.addr %s1344, 16
        %s1346 = scalar_lea.vmem [#allocation15], %s1345
        // Predicated region
        $region121: #{tpu_custom_call.1} parent=79 // pred_check
          %p1347 = pneg %p394
        $region122: #{tpu_custom_call.1} parent=79 // pred_check_branch
          %1349 = sbr.rel (%p1347) target = $region124
        $region123: #{tpu_custom_call.1} parent=79 // pred_region
          %s1350 = smul.u32 2, %s41
          %s1351 = ssub.s32 3, %s1350
          %p1352 = scmp.lt.s32.totalorder %s1351, 2
          %s1353 = scalar_select %p1352, %s1351, 2
          %s1354 = smul.u32 8, %s1353
          %s1355 = ssub.s32 16, %s1354
          %s1356 = sshll.u32 %s1355, 4
          %1357 = vsyncadd %s1343, %s1356
          %p1358 = scmp.ne.s32.totalorder 0, %s1354
          %s1359 = smul.addr %s1350, 8
          %s1360 = scalar_lea.hbm %s15, %s1359
          %s1361 = smul.u32 8, %s1353
          %s1362 = sshll.u32 %s1346, 4
          %s1363 = int_to_ptr.vmem [resolvable:$true] %s1362
          %s1364 = sshll.u32 %s1360, 4
          %s1365 = int_to_ptr.hbm [resolvable:$true] %s1364
          %s1366 = sshll.u32 %s1361, 4
          %1370 = dma.vmem_to_hbm [thread:$0]  (%p1358), %s1363, %s1366, %s1365, %s1343, 128, 128, 8
        $region124: #{tpu_custom_call.1} parent=79 // pred_fallthru
          _
      $region80: #{tpu_custom_call.1} parent=5 // pred_fallthru
        _
      %p1371 = scmp.le.s32.totalorder 2, %s32
      // Predicated region
      $region125: #{tpu_custom_call.1} parent=5 // pred_check
        %p1372 = pneg %p1371
      $region126: #{tpu_custom_call.1} parent=5 // pred_check_branch
        %1374 = sbr.rel (%p1372) target = $region128
      $region127: #{tpu_custom_call.1} parent=5 // pred_region
        %s1375 = ssub.s32 %s32, 2
        // Predicated region
        $region129: #{tpu_custom_call.1} parent=127 // pred_check
          %p1376 = pneg %p400
        $region130: #{tpu_custom_call.1} parent=127 // pred_check_branch
          %1378 = sbr.rel (%p1376) target = $region132
        $region131: #{tpu_custom_call.1} parent=127 // pred_region
          %s1379 = sand.u32 %s385, 1
          %s1380 = scalar_lea.sflag [#allocation5], %s1379
          %s1381 = sand.u32 %s385, 1
          %s1382 = smul.addr %s1381, 16
          %s1383 = scalar_lea.vmem [#allocation15], %s1382
          %1385 = dma.done %s1380, 256
        $region132: #{tpu_custom_call.1} parent=127 // pred_fallthru
          _
      $region128: #{tpu_custom_call.1} parent=5 // pred_fallthru
        _
    $region6: #{tpu_custom_call.1} parent=1 // loop_footer
      %s36 = sadd.s32 1, %s32
    $region7: #{tpu_custom_call.1} parent=1 // loop_footer_branch
      %31 = sbr.rel target = $region3
    $region8: #{tpu_custom_call.1} parent=1 // loop_exit
      _
    %1386 = vsyncpa [#allocation4], 1
    %s1387 = scalar_lea.sflag [#allocation4], 1
    %1388 = vsyncpa %s1387, 1
    %1389 = vsyncpa [#allocation7], 1
    %s1390 = scalar_lea.sflag [#allocation7], 1
    %1391 = vsyncpa %s1390, 1
    %1392 = vsyncpa [#allocation10], 1
    %1393 = vsyncpa [#allocation13], 1
    %1394 = vsyncpa [#allocation5], 1
    %s1395 = scalar_lea.sflag [#allocation5], 1
    %1396 = vsyncpa %s1395, 1

// kernel: tpu_custom_call.1
$region0: #{tpu_custom_call.1}
  #allocation0 [shape = 'u32[]', space=smem, size = 0x4, offset = 0x4, fixed_abs, tag = 'smem constant byte address 0x4 - core index']
  #allocation1 [shape = 'u32[72,128]{1,0:T(1,128)}', space=vmem, size = 0x9000, scoped, tag = 'internal scratch']
  #allocation2 [shape = 'f32[16,128]{1,0:T(8,128)}', space=vmem, size = 0x2000, scoped, tag = 'scratch operand']
  %s0 = inlined_call_operand.hbm [shape: f32[24,300], index: 0, kind: input, shape index: {}]
  %s1 = inlined_call_operand.hbm [shape: f32[24,128], index: 1, kind: input, shape index: {}]
  %s2 = inlined_call_operand.hbm [shape: bf16[384,128], index: 2, kind: input, shape index: {}]
  %s3 = inlined_call_operand.vmem [shape: f32[1,128], index: 3, kind: input, shape index: {}]
  %s4 = inlined_call_operand.hbm [shape: f32[1,128], index: 4, kind: input, shape index: {}]
  %s5 = inlined_call_operand.vmem [shape: f32[1,128], index: 5, kind: input, shape index: {}]
  %s6 = inlined_call_operand.hbm [shape: bf16[256,256], index: 6, kind: input, shape index: {}]
  %s7 = inlined_call_operand.vmem [shape: f32[1,256], index: 7, kind: input, shape index: {}]
  %s8 = inlined_call_operand.hbm [shape: bf16[128,128], index: 8, kind: input, shape index: {}]
  %s9 = inlined_call_operand.vmem [shape: f32[1,128], index: 9, kind: input, shape index: {}]
  %s10 = inlined_call_operand.hbm [shape: bf16[128,128], index: 10, kind: input, shape index: {}]
  %s11 = inlined_call_operand.vmem [shape: f32[1,128], index: 11, kind: input, shape index: {}]
  %s12 = inlined_call_operand.vmem [shape: f32[1,128], index: 12, kind: input, shape index: {}]
  %s13 = inlined_call_operand.vmem [shape: f32[1,128], index: 13, kind: input, shape index: {}]
  %s14 = inlined_call_operand.vmem [shape: f32[1,128], index: 14, kind: input, shape index: {}]
  %s15 = inlined_call_operand.hbm [shape: f32[24,128], index: 15, kind: output, shape index: {}]
  %s16 = sld [smem:[#allocation0]]
  $region133: #{tpu_custom_call.1} parent=0
    _
  %s18 = ssub.s32 1, %s16
  %s19 = scalar_select 0, %s18, %s16
  $region1: #{tpu_custom_call.1} parent=0
    #allocation3 [shape = 'u8[16384]{0}', space=vmem, size = 0x4000, scoped, tag = 'input window, operand 0']
    #allocation4 [shape = 's32[2]{0}', space=sflag, size = 0x8, scoped, tag = 'scoped memory for tpu_custom_call.1']
    #allocation5 [shape = 's32[2]{0}', space=sflag, size = 0x8, scoped, tag = 'scoped memory for tpu_custom_call.1']
    #allocation6 [shape = 'u8[16384]{0}', space=vmem, size = 0x4000, scoped, tag = 'input window, operand 1']
    #allocation7 [shape = 's32[2]{0}', space=sflag, size = 0x8, scoped, tag = 'scoped memory for tpu_custom_call.1']
    #allocation8 [shape = 'u8[98304]{0}', space=vmem, size = 0x18000, scoped, tag = 'input window, operand 2, single buffered']
    #allocation9 [shape = 'u8[512]{0}', space=vmem, size = 0x400, scoped, tag = 'input window, operand 4, single buffered']
    #allocation10 [shape = 's32[1]{0}', space=sflag, size = 0x4, scoped, tag = 'scoped memory for tpu_custom_call.1']
    #allocation11 [shape = 'u8[131072]{0}', space=vmem, size = 0x20000, scoped, tag = 'input window, operand 6, single buffered']
    #allocation12 [shape = 'u8[32768]{0}', space=vmem, size = 0x8000, scoped, tag = 'input window, operand 8, single buffered']
    #allocation13 [shape = 's32[1]{0}', space=sflag, size = 0x4, scoped, tag = 'scoped memory for tpu_custom_call.1']
    #allocation14 [shape = 'u8[32768]{0}', space=vmem, size = 0x8000, scoped, tag = 'input window, operand 10, single buffered']
    #allocation15 [shape = 'u8[16384]{0}', space=vmem, size = 0x4000, scoped, tag = 'output window, operand 0']
    %20 = vsyncpa [#allocation4], 0
    %s21 = scalar_lea.sflag [#allocation4], 1
    %22 = vsyncpa %s21, 0
    %23 = vsyncpa [#allocation7], 0
    %s24 = scalar_lea.sflag [#allocation7], 1
    %25 = vsyncpa %s24, 0
    %26 = vsyncpa [#allocation10], 0
    %27 = vsyncpa [#allocation13], 0
    %28 = vsyncpa [#allocation5], 0
    %s29 = scalar_lea.sflag [#allocation5], 1
    %30 = vsyncpa %s29, 0
    loop: start=0, step=1, limit=8
    $region2: #{tpu_custom_call.1} parent=1 // loop_pre_header
      _
    $region3: #{tpu_custom_call.1} parent=1 // loop_header
      %s32 = sphi 0, %s36
      %p33 = scmp.ge.s32.totalorder %s32, 8
      %s39 = sphi 0, %s51
      %s40 = sphi 0, %s47
      %s41 = sphi 0, %s39
      %s42 = sphi 0, %s40
      %s43 = sphi 0, %s41
      %s44 = sphi 0, %s42
      %s56 = sphi 0, %s58
      %s59 = sphi 0, %s56
      %s60 = sphi 0, %s59
      %s76 = sphi 0, %s60
      %s82 = sphi 0, %s84
      %s85 = sphi 0, %s82
      %s86 = sphi 0, %s85
      %s102 = sphi 0, %s86
      %s106 = sphi 0, %s106
      %s108 = sphi 0, %s106
      %s109 = sphi 0, %s108
      %s123 = sphi 0, %s109
      %s127 = sphi 0, %s127
      %s129 = sphi 0, %s127
      %s130 = sphi 0, %s129
      %s144 = sphi 0, %s130
      %s148 = sphi 0, %s148
      %s150 = sphi 0, %s148
      %s151 = sphi 0, %s150
      %s165 = sphi 0, %s151
      %s169 = sphi 0, %s169
      %s171 = sphi 0, %s169
      %s172 = sphi 0, %s171
      %s186 = sphi 0, %s172
      %s190 = sphi 0, %s190
      %s192 = sphi 0, %s190
      %s193 = sphi 0, %s192
      %s207 = sphi 0, %s193
      %s211 = sphi 0, %s211
      %s213 = sphi 0, %s211
      %s214 = sphi 0, %s213
      %s228 = sphi 0, %s214
      %s232 = sphi 0, %s232
      %s234 = sphi 0, %s232
      %s235 = sphi 0, %s234
      %s249 = sphi 0, %s235
      %s253 = sphi 0, %s253
      %s255 = sphi 0, %s253
      %s256 = sphi 0, %s255
      %s270 = sphi 0, %s256
      %s274 = sphi 0, %s274
      %s276 = sphi 0, %s274
      %s277 = sphi 0, %s276
      %s291 = sphi 0, %s277
      %s295 = sphi 0, %s295
      %s297 = sphi 0, %s295
      %s298 = sphi 0, %s297
      %s312 = sphi 0, %s298
      %s316 = sphi 0, %s316
      %s318 = sphi 0, %s316
      %s319 = sphi 0, %s318
      %s333 = sphi 0, %s319
      %s337 = sphi 0, %s337
      %s339 = sphi 0, %s337
      %s340 = sphi 0, %s339
      %s354 = sphi 0, %s340
      %s358 = sphi 0, %s358
      %s360 = sphi 0, %s358
      %s361 = sphi 0, %s360
      %s375 = sphi 0, %s361
      %s381 = sphi 0, %s383
      %s384 = sphi 0, %s381
      %s385 = sphi 0, %s384
      %s401 = sphi 0, %s385
    $region4: #{tpu_custom_call.1} parent=1 // loop_header_branch
      %35 = sbr.rel (%p33) target = $region8
    $region5: #{tpu_custom_call.1} parent=1 // loop_body
      %s37 = ssub.s32 %s32, 1
      %s38 = ssub.s32 %s32, 2
      %s45 = sadd.s32 1, %s40
      %p46 = scmp.ge.s32.totalorder %s45, 3
      %s47 = scalar_select %p46, 0, %s45
      %s48 = sadd.s32 1, %s39
      %s49 = scalar_select %p46, %s48, %s39
      %p50 = scmp.ge.s32.totalorder %s49, 2
      %s51 = scalar_select %p50, 0, %s49
      %s52 = ssub.s32 %s39, %s51
      %s53 = ssub.s32 %s40, %s47
      %s54 = sor.u32 %s52, %s53
      %p55 = scmp.eq.s32.totalorder %s54, 0
      %s57 = sadd.s32 %s56, 1
      %s58 = scalar_select %p55, %s56, %s57
      %p61 = pneg %p55
      %p62 = scmp.eq.s32.totalorder %s32, 5
      %p63 = por %p61, %p62
      %p64 = scmp.ne.s32.totalorder %s56, %s59
      %p65 = scmp.eq.s32.totalorder %s32, 0
      %p66 = por %p64, %p65
      %p67 = scmp.ne.s32.totalorder %s56, %s59
      %p68 = scmp.eq.s32.totalorder %s37, 5
      %p69 = por %p67, %p68
      %p70 = scmp.ne.s32.totalorder %s59, %s60
      %p71 = scmp.eq.s32.totalorder %s37, 0
      %p72 = por %p70, %p71
      %p73 = scmp.ne.s32.totalorder %s59, %s60
      %p74 = scmp.eq.s32.totalorder %s38, 5
      %p75 = por %p73, %p74
      %p77 = scmp.ne.s32.totalorder %s60, %s76
      %p78 = scmp.eq.s32.totalorder %s38, 0
      %p79 = por %p77, %p78
      %s80 = ssub.s32 %s39, %s51
      %p81 = scmp.eq.s32.totalorder %s80, 0
      %s83 = sadd.s32 %s82, 1
      %s84 = scalar_select %p81, %s82, %s83
      %p87 = pneg %p81
      %p88 = scmp.eq.s32.totalorder %s32, 5
      %p89 = por %p87, %p88
      %p90 = scmp.ne.s32.totalorder %s82, %s85
      %p91 = scmp.eq.s32.totalorder %s32, 0
      %p92 = por %p90, %p91
      %p93 = scmp.ne.s32.totalorder %s82, %s85
      %p94 = scmp.eq.s32.totalorder %s37, 5
      %p95 = por %p93, %p94
      %p96 = scmp.ne.s32.totalorder %s85, %s86
      %p97 = scmp.eq.s32.totalorder %s37, 0
      %p98 = por %p96, %p97
      %p99 = scmp.ne.s32.totalorder %s85, %s86
      %p100 = scmp.eq.s32.totalorder %s38, 5
      %p101 = por %p99, %p100
      %p103 = scmp.ne.s32.totalorder %s86, %s102
      %p104 = scmp.eq.s32.totalorder %s38, 0
      %p105 = por %p103, %p104
      %s107 = sadd.s32 %s106, 1
      %p110 = scmp.eq.s32.totalorder %s32, 5
      %p111 = scmp.ne.s32.totalorder %s106, %s108
      %p112 = scmp.eq.s32.totalorder %s32, 0
      %p113 = por %p111, %p112
      %p114 = scmp.ne.s32.totalorder %s106, %s108
      %p115 = scmp.eq.s32.totalorder %s37, 5
      %p116 = por %p114, %p115
      %p117 = scmp.ne.s32.totalorder %s108, %s109
      %p118 = scmp.eq.s32.totalorder %s37, 0
      %p119 = por %p117, %p118
      %p120 = scmp.ne.s32.totalorder %s108, %s109
      %p121 = scmp.eq.s32.totalorder %s38, 5
      %p122 = por %p120, %p121
      %p124 = scmp.ne.s32.totalorder %s109, %s123
      %p125 = scmp.eq.s32.totalorder %s38, 0
      %p126 = por %p124, %p125
      %s128 = sadd.s32 %s127, 1
      %p131 = scmp.eq.s32.totalorder %s32, 5
      %p132 = scmp.ne.s32.totalorder %s127, %s129
      %p133 = scmp.eq.s32.totalorder %s32, 0
      %p134 = por %p132, %p133
      %p135 = scmp.ne.s32.totalorder %s127, %s129
      %p136 = scmp.eq.s32.totalorder %s37, 5
      %p137 = por %p135, %p136
      %p138 = scmp.ne.s32.totalorder %s129, %s130
      %p139 = scmp.eq.s32.totalorder %s37, 0
      %p140 = por %p138, %p139
      %p141 = scmp.ne.s32.totalorder %s129, %s130
      %p142 = scmp.eq.s32.totalorder %s38, 5
      %p143 = por %p141, %p142
      %p145 = scmp.ne.s32.totalorder %s130, %s144
      %p146 = scmp.eq.s32.totalorder %s38, 0
      %p147 = por %p145, %p146
      %s149 = sadd.s32 %s148, 1
      %p152 = scmp.eq.s32.totalorder %s32, 5
      %p153 = scmp.ne.s32.totalorder %s148, %s150
      %p154 = scmp.eq.s32.totalorder %s32, 0
      %p155 = por %p153, %p154
      %p156 = scmp.ne.s32.totalorder %s148, %s150
      %p157 = scmp.eq.s32.totalorder %s37, 5
      %p158 = por %p156, %p157
      %p159 = scmp.ne.s32.totalorder %s150, %s151
      %p160 = scmp.eq.s32.totalorder %s37, 0
      %p161 = por %p159, %p160
      %p162 = scmp.ne.s32.totalorder %s150, %s151
      %p163 = scmp.eq.s32.totalorder %s38, 5
      %p164 = por %p162, %p163
      %p166 = scmp.ne.s32.totalorder %s151, %s165
      %p167 = scmp.eq.s32.totalorder %s38, 0
      %p168 = por %p166, %p167
      %s170 = sadd.s32 %s169, 1
      %p173 = scmp.eq.s32.totalorder %s32, 5
      %p174 = scmp.ne.s32.totalorder %s169, %s171
      %p175 = scmp.eq.s32.totalorder %s32, 0
      %p176 = por %p174, %p175
      %p177 = scmp.ne.s32.totalorder %s169, %s171
      %p178 = scmp.eq.s32.totalorder %s37, 5
      %p179 = por %p177, %p178
      %p180 = scmp.ne.s32.totalorder %s171, %s172
      %p181 = scmp.eq.s32.totalorder %s37, 0
      %p182 = por %p180, %p181
      %p183 = scmp.ne.s32.totalorder %s171, %s172
      %p184 = scmp.eq.s32.totalorder %s38, 5
      %p185 = por %p183, %p184
      %p187 = scmp.ne.s32.totalorder %s172, %s186
      %p188 = scmp.eq.s32.totalorder %s38, 0
      %p189 = por %p187, %p188
      %s191 = sadd.s32 %s190, 1
      %p194 = scmp.eq.s32.totalorder %s32, 5
      %p195 = scmp.ne.s32.totalorder %s190, %s192
      %p196 = scmp.eq.s32.totalorder %s32, 0
      %p197 = por %p195, %p196
      %p198 = scmp.ne.s32.totalorder %s190, %s192
      %p199 = scmp.eq.s32.totalorder %s37, 5
      %p200 = por %p198, %p199
      %p201 = scmp.ne.s32.totalorder %s192, %s193
      %p202 = scmp.eq.s32.totalorder %s37, 0
      %p203 = por %p201, %p202
      %p204 = scmp.ne.s32.totalorder %s192, %s193
      %p205 = scmp.eq.s32.totalorder %s38, 5
      %p206 = por %p204, %p205
      %p208 = scmp.ne.s32.totalorder %s193, %s207
      %p209 = scmp.eq.s32.totalorder %s38, 0
      %p210 = por %p208, %p209
      %s212 = sadd.s32 %s211, 1
      %p215 = scmp.eq.s32.totalorder %s32, 5
      %p216 = scmp.ne.s32.totalorder %s211, %s213
      %p217 = scmp.eq.s32.totalorder %s32, 0
      %p218 = por %p216, %p217
      %p219 = scmp.ne.s32.totalorder %s211, %s213
      %p220 = scmp.eq.s32.totalorder %s37, 5
      %p221 = por %p219, %p220
      %p222 = scmp.ne.s32.totalorder %s213, %s214
      %p223 = scmp.eq.s32.totalorder %s37, 0
      %p224 = por %p222, %p223
      %p225 = scmp.ne.s32.totalorder %s213, %s214
      %p226 = scmp.eq.s32.totalorder %s38, 5
      %p227 = por %p225, %p226
      %p229 = scmp.ne.s32.totalorder %s214, %s228
      %p230 = scmp.eq.s32.totalorder %s38, 0
      %p231 = por %p229, %p230
      %s233 = sadd.s32 %s232, 1
      %p236 = scmp.eq.s32.totalorder %s32, 5
      %p237 = scmp.ne.s32.totalorder %s232, %s234
      %p238 = scmp.eq.s32.totalorder %s32, 0
      %p239 = por %p237, %p238
      %p240 = scmp.ne.s32.totalorder %s232, %s234
      %p241 = scmp.eq.s32.totalorder %s37, 5
      %p242 = por %p240, %p241
      %p243 = scmp.ne.s32.totalorder %s234, %s235
      %p244 = scmp.eq.s32.totalorder %s37, 0
      %p245 = por %p243, %p244
      %p246 = scmp.ne.s32.totalorder %s234, %s235
      %p247 = scmp.eq.s32.totalorder %s38, 5
      %p248 = por %p246, %p247
      %p250 = scmp.ne.s32.totalorder %s235, %s249
      %p251 = scmp.eq.s32.totalorder %s38, 0
      %p252 = por %p250, %p251
      %s254 = sadd.s32 %s253, 1
      %p257 = scmp.eq.s32.totalorder %s32, 5
      %p258 = scmp.ne.s32.totalorder %s253, %s255
      %p259 = scmp.eq.s32.totalorder %s32, 0
      %p260 = por %p258, %p259
      %p261 = scmp.ne.s32.totalorder %s253, %s255
      %p262 = scmp.eq.s32.totalorder %s37, 5
      %p263 = por %p261, %p262
      %p264 = scmp.ne.s32.totalorder %s255, %s256
      %p265 = scmp.eq.s32.totalorder %s37, 0
      %p266 = por %p264, %p265
      %p267 = scmp.ne.s32.totalorder %s255, %s256
      %p268 = scmp.eq.s32.totalorder %s38, 5
      %p269 = por %p267, %p268
      %p271 = scmp.ne.s32.totalorder %s256, %s270
      %p272 = scmp.eq.s32.totalorder %s38, 0
      %p273 = por %p271, %p272
      %s275 = sadd.s32 %s274, 1
      %p278 = scmp.eq.s32.totalorder %s32, 5
      %p279 = scmp.ne.s32.totalorder %s274, %s276
      %p280 = scmp.eq.s32.totalorder %s32, 0
      %p281 = por %p279, %p280
      %p282 = scmp.ne.s32.totalorder %s274, %s276
      %p283 = scmp.eq.s32.totalorder %s37, 5
      %p284 = por %p282, %p283
      %p285 = scmp.ne.s32.totalorder %s276, %s277
      %p286 = scmp.eq.s32.totalorder %s37, 0
      %p287 = por %p285, %p286
      %p288 = scmp.ne.s32.totalorder %s276, %s277
      %p289 = scmp.eq.s32.totalorder %s38, 5
      %p290 = por %p288, %p289
      %p292 = scmp.ne.s32.totalorder %s277, %s291
      %p293 = scmp.eq.s32.totalorder %s38, 0
      %p294 = por %p292, %p293
      %s296 = sadd.s32 %s295, 1
      %p299 = scmp.eq.s32.totalorder %s32, 5
      %p300 = scmp.ne.s32.totalorder %s295, %s297
      %p301 = scmp.eq.s32.totalorder %s32, 0
      %p302 = por %p300, %p301
      %p303 = scmp.ne.s32.totalorder %s295, %s297
      %p304 = scmp.eq.s32.totalorder %s37, 5
      %p305 = por %p303, %p304
      %p306 = scmp.ne.s32.totalorder %s297, %s298
      %p307 = scmp.eq.s32.totalorder %s37, 0
      %p308 = por %p306, %p307
      %p309 = scmp.ne.s32.totalorder %s297, %s298
      %p310 = scmp.eq.s32.totalorder %s38, 5
      %p311 = por %p309, %p310
      %p313 = scmp.ne.s32.totalorder %s298, %s312
      %p314 = scmp.eq.s32.totalorder %s38, 0
      %p315 = por %p313, %p314
      %s317 = sadd.s32 %s316, 1
      %p320 = scmp.eq.s32.totalorder %s32, 5
      %p321 = scmp.ne.s32.totalorder %s316, %s318
      %p322 = scmp.eq.s32.totalorder %s32, 0
      %p323 = por %p321, %p322
      %p324 = scmp.ne.s32.totalorder %s316, %s318
      %p325 = scmp.eq.s32.totalorder %s37, 5
      %p326 = por %p324, %p325
      %p327 = scmp.ne.s32.totalorder %s318, %s319
      %p328 = scmp.eq.s32.totalorder %s37, 0
      %p329 = por %p327, %p328
      %p330 = scmp.ne.s32.totalorder %s318, %s319
      %p331 = scmp.eq.s32.totalorder %s38, 5
      %p332 = por %p330, %p331
      %p334 = scmp.ne.s32.totalorder %s319, %s333
      %p335 = scmp.eq.s32.totalorder %s38, 0
      %p336 = por %p334, %p335
      %s338 = sadd.s32 %s337, 1
      %p341 = scmp.eq.s32.totalorder %s32, 5
      %p342 = scmp.ne.s32.totalorder %s337, %s339
      %p343 = scmp.eq.s32.totalorder %s32, 0
      %p344 = por %p342, %p343
      %p345 = scmp.ne.s32.totalorder %s337, %s339
      %p346 = scmp.eq.s32.totalorder %s37, 5
      %p347 = por %p345, %p346
      %p348 = scmp.ne.s32.totalorder %s339, %s340
      %p349 = scmp.eq.s32.totalorder %s37, 0
      %p350 = por %p348, %p349
      %p351 = scmp.ne.s32.totalorder %s339, %s340
      %p352 = scmp.eq.s32.totalorder %s38, 5
      %p353 = por %p351, %p352
      %p355 = scmp.ne.s32.totalorder %s340, %s354
      %p356 = scmp.eq.s32.totalorder %s38, 0
      %p357 = por %p355, %p356
      %s359 = sadd.s32 %s358, 1
      %p362 = scmp.eq.s32.totalorder %s32, 5
      %p363 = scmp.ne.s32.totalorder %s358, %s360
      %p364 = scmp.eq.s32.totalorder %s32, 0
      %p365 = por %p363, %p364
      %p366 = scmp.ne.s32.totalorder %s358, %s360
      %p367 = scmp.eq.s32.totalorder %s37, 5
      %p368 = por %p366, %p367
      %p369 = scmp.ne.s32.totalorder %s360, %s361
      %p370 = scmp.eq.s32.totalorder %s37, 0
      %p371 = por %p369, %p370
      %p372 = scmp.ne.s32.totalorder %s360, %s361
      %p373 = scmp.eq.s32.totalorder %s38, 5
      %p374 = por %p372, %p373
      %p376 = scmp.ne.s32.totalorder %s361, %s375
      %p377 = scmp.eq.s32.totalorder %s38, 0
      %p378 = por %p376, %p377
      %s379 = ssub.s32 %s39, %s51
      %p380 = scmp.eq.s32.totalorder %s379, 0
      %s382 = sadd.s32 %s381, 1
      %s383 = scalar_select %p380, %s381, %s382
      %p386 = pneg %p380
      %p387 = scmp.eq.s32.totalorder %s32, 5
      %p388 = por %p386, %p387
      %p389 = scmp.ne.s32.totalorder %s381, %s384
      %p390 = scmp.eq.s32.totalorder %s32, 0
      %p391 = por %p389, %p390
      %p392 = scmp.ne.s32.totalorder %s381, %s384
      %p393 = scmp.eq.s32.totalorder %s37, 5
      %p394 = por %p392, %p393
      %p395 = scmp.ne.s32.totalorder %s384, %s385
      %p396 = scmp.eq.s32.totalorder %s37, 0
      %p397 = por %p395, %p396
      %p398 = scmp.ne.s32.totalorder %s384, %s385
      %p399 = scmp.eq.s32.totalorder %s38, 5
      %p400 = por %p398, %p399
      %p402 = scmp.ne.s32.totalorder %s385, %s401
      %p403 = scmp.eq.s32.totalorder %s38, 0
      %p404 = por %p402, %p403
      %p405 = scmp.le.s32.totalorder 1, %s32
      %p406 = scmp.lt.s32.totalorder %s32, 7
      %p407 = pnand %p405, %p406
      %p408 = pneg %p407
      // Predicated region
      $region9: #{tpu_custom_call.1} parent=5 // pred_check
        _
      $region10: #{tpu_custom_call.1} parent=5 // pred_check_branch
        %410 = sbr.rel (%p407) target = $region12
      $region11: #{tpu_custom_call.1} parent=5 // pred_region
        %s411 = ssub.s32 %s32, 1
        // Predicated region
        $region13: #{tpu_custom_call.1} parent=11 // pred_check
          %p412 = pneg %p119
        $region14: #{tpu_custom_call.1} parent=11 // pred_check_branch
          %414 = sbr.rel (%p412) target = $region16
        $region15: #{tpu_custom_call.1} parent=11 // pred_region
          %416 = vsyncadd [#allocation7], 0
          %s417 = sshll.u32 %s2, 4
          %s418 = int_to_ptr.hbm [resolvable:$true] %s417
          %s419 = sshll.u32 [#allocation8], 4
          %s420 = int_to_ptr.vmem [resolvable:$true] %s419
          %425 = dma.hbm_to_vmem [thread:$0]  %s418, 3072, %s420, [#allocation7], 64, 64, 4
        $region16: #{tpu_custom_call.1} parent=11 // pred_fallthru
          _
        // Predicated region
        $region17: #{tpu_custom_call.1} parent=11 // pred_check
          %p426 = pneg %p140
        $region18: #{tpu_custom_call.1} parent=11 // pred_check_branch
          %428 = sbr.rel (%p426) target = $region20
        $region19: #{tpu_custom_call.1} parent=11 // pred_region
          _
        $region20: #{tpu_custom_call.1} parent=11 // pred_fallthru
          _
        // Predicated region
        $region21: #{tpu_custom_call.1} parent=11 // pred_check
          %p429 = pneg %p161
        $region22: #{tpu_custom_call.1} parent=11 // pred_check_branch
          %431 = sbr.rel (%p429) target = $region24
        $region23: #{tpu_custom_call.1} parent=11 // pred_region
          %433 = vsyncadd [#allocation10], 0
          %s435 = sshll.u32 %s4, 4
          %s436 = int_to_ptr.hbm [resolvable:$true] %s435
          %s437 = sshll.u32 [#allocation9], 4
          %s438 = int_to_ptr.vmem [resolvable:$true] %s437
          %440 = dma.hbm_to_vmem [thread:$0]  %s436, 16, %s438, [#allocation10]
        $region24: #{tpu_custom_call.1} parent=11 // pred_fallthru
          _
        // Predicated region
        $region25: #{tpu_custom_call.1} parent=11 // pred_check
          %p441 = pneg %p182
        $region26: #{tpu_custom_call.1} parent=11 // pred_check_branch
          %443 = sbr.rel (%p441) target = $region28
        $region27: #{tpu_custom_call.1} parent=11 // pred_region
          _
        $region28: #{tpu_custom_call.1} parent=11 // pred_fallthru
          _
        // Predicated region
        $region29: #{tpu_custom_call.1} parent=11 // pred_check
          %p444 = pneg %p203
        $region30: #{tpu_custom_call.1} parent=11 // pred_check_branch
          %446 = sbr.rel (%p444) target = $region32
        $region31: #{tpu_custom_call.1} parent=11 // pred_region
          %448 = vsyncadd [#allocation10], 0
          %s449 = sshll.u32 %s6, 4
          %s450 = int_to_ptr.hbm [resolvable:$true] %s449
          %s451 = sshll.u32 [#allocation11], 4
          %s452 = int_to_ptr.vmem [resolvable:$true] %s451
          %457 = dma.hbm_to_vmem [thread:$0]  %s450, 4096, %s452, [#allocation10], 128, 128, 8
        $region32: #{tpu_custom_call.1} parent=11 // pred_fallthru
          _
        // Predicated region
        $region33: #{tpu_custom_call.1} parent=11 // pred_check
          %p458 = pneg %p224
        $region34: #{tpu_custom_call.1} parent=11 // pred_check_branch
          %460 = sbr.rel (%p458) target = $region36
        $region35: #{tpu_custom_call.1} parent=11 // pred_region
          _
        $region36: #{tpu_custom_call.1} parent=11 // pred_fallthru
          _
        // Predicated region
        $region37: #{tpu_custom_call.1} parent=11 // pred_check
          %p461 = pneg %p245
        $region38: #{tpu_custom_call.1} parent=11 // pred_check_branch
          %463 = sbr.rel (%p461) target = $region40
        $region39: #{tpu_custom_call.1} parent=11 // pred_region
          %465 = vsyncadd [#allocation13], 0
          %s466 = sshll.u32 %s8, 4
          %s467 = int_to_ptr.hbm [resolvable:$true] %s466
          %s468 = sshll.u32 [#allocation12], 4
          %s469 = int_to_ptr.vmem [resolvable:$true] %s468
          %474 = dma.hbm_to_vmem [thread:$0]  %s467, 1024, %s469, [#allocation13], 64, 64, 4
        $region40: #{tpu_custom_call.1} parent=11 // pred_fallthru
          _
        // Predicated region
        $region41: #{tpu_custom_call.1} parent=11 // pred_check
          %p475 = pneg %p266
        $region42: #{tpu_custom_call.1} parent=11 // pred_check_branch
          %477 = sbr.rel (%p475) target = $region44
        $region43: #{tpu_custom_call.1} parent=11 // pred_region
          _
        $region44: #{tpu_custom_call.1} parent=11 // pred_fallthru
          _
        // Predicated region
        $region45: #{tpu_custom_call.1} parent=11 // pred_check
          %p478 = pneg %p287
        $region46: #{tpu_custom_call.1} parent=11 // pred_check_branch
          %480 = sbr.rel (%p478) target = $region48
        $region47: #{tpu_custom_call.1} parent=11 // pred_region
          %482 = vsyncadd [#allocation13], 0
          %s483 = sshll.u32 %s10, 4
          %s484 = int_to_ptr.hbm [resolvable:$true] %s483
          %s485 = sshll.u32 [#allocation14], 4
          %s486 = int_to_ptr.vmem [resolvable:$true] %s485
          %491 = dma.hbm_to_vmem [thread:$0]  %s484, 1024, %s486, [#allocation13], 64, 64, 4
        $region48: #{tpu_custom_call.1} parent=11 // pred_fallthru
          _
        // Predicated region
        $region49: #{tpu_custom_call.1} parent=11 // pred_check
          %p492 = pneg %p308
        $region50: #{tpu_custom_call.1} parent=11 // pred_check_branch
          %494 = sbr.rel (%p492) target = $region52
        $region51: #{tpu_custom_call.1} parent=11 // pred_region
          _
        $region52: #{tpu_custom_call.1} parent=11 // pred_fallthru
          _
        // Predicated region
        $region53: #{tpu_custom_call.1} parent=11 // pred_check
          %p495 = pneg %p329
        $region54: #{tpu_custom_call.1} parent=11 // pred_check_branch
          %497 = sbr.rel (%p495) target = $region56
        $region55: #{tpu_custom_call.1} parent=11 // pred_region
          _
        $region56: #{tpu_custom_call.1} parent=11 // pred_fallthru
          _
        // Predicated region
        $region57: #{tpu_custom_call.1} parent=11 // pred_check
          %p498 = pneg %p350
        $region58: #{tpu_custom_call.1} parent=11 // pred_check_branch
          %500 = sbr.rel (%p498) target = $region60
        $region59: #{tpu_custom_call.1} parent=11 // pred_region
          _
        $region60: #{tpu_custom_call.1} parent=11 // pred_fallthru
          _
        // Predicated region
        $region61: #{tpu_custom_call.1} parent=11 // pred_check
          %p501 = pneg %p371
        $region62: #{tpu_custom_call.1} parent=11 // pred_check_branch
          %503 = sbr.rel (%p501) target = $region64
        $region63: #{tpu_custom_call.1} parent=11 // pred_region
          _
        $region64: #{tpu_custom_call.1} parent=11 // pred_fallthru
          _
      $region12: #{tpu_custom_call.1} parent=5 // pred_fallthru
        _
      %p504 = scmp.lt.s32.totalorder %s32, 6
      // Predicated region
      $region65: #{tpu_custom_call.1} parent=5 // pred_check
        %p505 = pneg %p504
      $region66: #{tpu_custom_call.1} parent=5 // pred_check_branch
        %507 = sbr.rel (%p505) target = $region68
      $region67: #{tpu_custom_call.1} parent=5 // pred_region
        // Predicated region
        $region69: #{tpu_custom_call.1} parent=67 // pred_check
          %p508 = pneg %p66
        $region70: #{tpu_custom_call.1} parent=67 // pred_check_branch
          %510 = sbr.rel (%p508) target = $region72
        $region71: #{tpu_custom_call.1} parent=67 // pred_region
          %s511 = sand.u32 %s56, 1
          %s512 = scalar_lea.sflag [#allocation4], %s511
          %s513 = sand.u32 %s56, 1
          %s514 = smul.addr %s513, 16
          %s515 = scalar_lea.vmem [#allocation3], %s514
          %s516 = smul.u32 2, %s39
          %s517 = ssub.s32 3, %s516
          %p518 = scmp.lt.s32.totalorder %s517, 2
          %s519 = scalar_select %p518, %s517, 2
          %s520 = smul.u32 8, %s519
          %s521 = ssub.s32 16, %s520
          %s522 = sshll.u32 %s521, 4
          %523 = vsyncadd %s512, %s522
          %p524 = scmp.ne.s32.totalorder 0, %s520
          %s525 = smul.addr %s516, 3
          %s526 = sadd.s32 %s40, %s525
          %s527 = smul.addr %s526, 8
          %s528 = scalar_lea.hbm %s0, %s527
          %s529 = smul.u32 8, %s519
          %s530 = sshll.u32 %s528, 4
          %s531 = int_to_ptr.hbm [resolvable:$true] %s530
          %s532 = sshll.u32 %s515, 4
          %s533 = int_to_ptr.vmem [resolvable:$true] %s532
          %s534 = sshll.u32 %s529, 4
          %538 = dma.hbm_to_vmem [thread:$0]  (%p524), %s531, %s534, %s533, %s512, 384, 128, 8
        $region72: #{tpu_custom_call.1} parent=67 // pred_fallthru
          _
        // Predicated region
        $region73: #{tpu_custom_call.1} parent=67 // pred_check
          %p539 = pneg %p92
        $region74: #{tpu_custom_call.1} parent=67 // pred_check_branch
          %541 = sbr.rel (%p539) target = $region76
        $region75: #{tpu_custom_call.1} parent=67 // pred_region
          %s542 = sand.u32 %s32, 1
          %s543 = scalar_lea.sflag [#allocation7], %s542
          %s544 = sand.u32 %s82, 1
          %s545 = smul.addr %s544, 16
          %s546 = scalar_lea.vmem [#allocation6], %s545
          %s547 = smul.u32 2, %s39
          %s548 = ssub.s32 3, %s547
          %p549 = scmp.lt.s32.totalorder %s548, 2
          %s550 = scalar_select %p549, %s548, 2
          %s551 = smul.u32 8, %s550
          %s552 = ssub.s32 16, %s551
          %s553 = sshll.u32 %s552, 4
          %554 = vsyncadd %s543, %s553
          %p555 = scmp.ne.s32.totalorder 0, %s551
          %s556 = smul.addr %s547, 8
          %s557 = scalar_lea.hbm %s1, %s556
          %s558 = smul.u32 8, %s550
          %s559 = sshll.u32 %s557, 4
          %s560 = int_to_ptr.hbm [resolvable:$true] %s559
          %s561 = sshll.u32 %s546, 4
          %s562 = int_to_ptr.vmem [resolvable:$true] %s561
          %s563 = sshll.u32 %s558, 4
          %567 = dma.hbm_to_vmem [thread:$0]  (%p555), %s560, %s563, %s562, %s543, 128, 128, 8
        $region76: #{tpu_custom_call.1} parent=67 // pred_fallthru
          _
      $region68: #{tpu_custom_call.1} parent=5 // pred_fallthru
        _
      %p568 = scmp.le.s32.totalorder 1, %s32
      %p569 = scmp.lt.s32.totalorder %s32, 7
      %p570 = pnand %p568, %p569
      %p571 = pneg %p570
      // Predicated region
      $region77: #{tpu_custom_call.1} parent=5 // pred_check
        _
      $region78: #{tpu_custom_call.1} parent=5 // pred_check_branch
        %573 = sbr.rel (%p570) target = $region80
      $region79: #{tpu_custom_call.1} parent=5 // pred_region
        %s574 = ssub.s32 %s32, 1
        %s575 = sand.u32 %s59, 1
        %s576 = scalar_lea.sflag [#allocation4], %s575
        %s577 = sand.u32 %s59, 1
        %s578 = smul.addr %s577, 16
        %s579 = scalar_lea.vmem [#allocation3], %s578
        // Predicated region
        $region81: #{tpu_custom_call.1} parent=79 // pred_check
          %p580 = pneg %p72
        $region82: #{tpu_custom_call.1} parent=79 // pred_check_branch
          %582 = sbr.rel (%p580) target = $region84
        $region83: #{tpu_custom_call.1} parent=79 // pred_region
          %584 = dma.done %s576, 256
        $region84: #{tpu_custom_call.1} parent=79 // pred_fallthru
          _
        %s585 = sand.u32 %s37, 1
        %s586 = scalar_lea.sflag [#allocation7], %s585
        %s587 = sand.u32 %s85, 1
        %s588 = smul.addr %s587, 16
        %s589 = scalar_lea.vmem [#allocation6], %s588
        // Predicated region
        $region85: #{tpu_custom_call.1} parent=79 // pred_check
          %p590 = pneg %p98
        $region86: #{tpu_custom_call.1} parent=79 // pred_check_branch
          %592 = sbr.rel (%p590) target = $region88
        $region87: #{tpu_custom_call.1} parent=79 // pred_region
          %594 = dma.done %s586, 256
        $region88: #{tpu_custom_call.1} parent=79 // pred_fallthru
          _
        // Predicated region
        $region89: #{tpu_custom_call.1} parent=79 // pred_check
          %p595 = pneg %p119
        $region90: #{tpu_custom_call.1} parent=79 // pred_check_branch
          %597 = sbr.rel (%p595) target = $region92
        $region91: #{tpu_custom_call.1} parent=79 // pred_region
          %599 = dma.done [#allocation7], 3072
        $region92: #{tpu_custom_call.1} parent=79 // pred_fallthru
          _
        // Predicated region
        $region93: #{tpu_custom_call.1} parent=79 // pred_check
          %p600 = pneg %p161
        $region94: #{tpu_custom_call.1} parent=79 // pred_check_branch
          %602 = sbr.rel (%p600) target = $region96
        $region95: #{tpu_custom_call.1} parent=79 // pred_region
          %604 = dma.done [#allocation10], 16
        $region96: #{tpu_custom_call.1} parent=79 // pred_fallthru
          _
        // Predicated region
        $region97: #{tpu_custom_call.1} parent=79 // pred_check
          %p605 = pneg %p203
        $region98: #{tpu_custom_call.1} parent=79 // pred_check_branch
          %607 = sbr.rel (%p605) target = $region100
        $region99: #{tpu_custom_call.1} parent=79 // pred_region
          %609 = dma.done [#allocation10], 4096
        $region100: #{tpu_custom_call.1} parent=79 // pred_fallthru
          _
        // Predicated region
        $region101: #{tpu_custom_call.1} parent=79 // pred_check
          %p610 = pneg %p245
        $region102: #{tpu_custom_call.1} parent=79 // pred_check_branch
          %612 = sbr.rel (%p610) target = $region104
        $region103: #{tpu_custom_call.1} parent=79 // pred_region
          %614 = dma.done [#allocation13], 1024
        $region104: #{tpu_custom_call.1} parent=79 // pred_fallthru
          _
        // Predicated region
        $region105: #{tpu_custom_call.1} parent=79 // pred_check
          %p615 = pneg %p287
        $region106: #{tpu_custom_call.1} parent=79 // pred_check_branch
          %617 = sbr.rel (%p615) target = $region108
        $region107: #{tpu_custom_call.1} parent=79 // pred_region
          %619 = dma.done [#allocation13], 1024
        $region108: #{tpu_custom_call.1} parent=79 // pred_fallthru
          _
        %s620 = sand.u32 %s59, 1
        %s621 = scalar_lea.sflag [#allocation4], %s620
        %s622 = sand.u32 %s59, 1
        %s623 = smul.addr %s622, 16
        %s624 = scalar_lea.vmem [#allocation3], %s623
        %p625 = pneg %p72
        %p626 = pneg %p69
        %s627 = sand.u32 %s37, 1
        %s628 = scalar_lea.sflag [#allocation7], %s627
        %s629 = sand.u32 %s85, 1
        %s630 = smul.addr %s629, 16
        %s631 = scalar_lea.vmem [#allocation6], %s630
        %p632 = pneg %p98
        %p633 = pneg %p95
        %p634 = pneg %p119
        %p635 = pneg %p116
        %p636 = pneg %p140
        %p637 = pneg %p137
        %p638 = pneg %p161
        %p639 = pneg %p158
        %p640 = pneg %p182
        %p641 = pneg %p179
        %p642 = pneg %p203
        %p643 = pneg %p200
        %p644 = pneg %p224
        %p645 = pneg %p221
        %p646 = pneg %p245
        %p647 = pneg %p242
        %p648 = pneg %p266
        %p649 = pneg %p263
        %p650 = pneg %p287
        %p651 = pneg %p284
        %p652 = pneg %p308
        %p653 = pneg %p305
        %p654 = pneg %p329
        %p655 = pneg %p326
        %p656 = pneg %p350
        %p657 = pneg %p347
        %p658 = pneg %p371
        %p659 = pneg %p368
        %p660 = pneg %p397
        %p661 = pneg %p394
        %s662 = sand.u32 %s384, 1
        %s663 = scalar_lea.sflag [#allocation5], %s662
        %s664 = sand.u32 %s384, 1
        %s665 = smul.addr %s664, 16
        %s666 = scalar_lea.vmem [#allocation15], %s665
        %s667 = smul.u32 2, %s41
        %s668 = ssub.s32 3, %s667
        %p669 = scmp.lt.s32.totalorder %s668, 2
        %s670 = scalar_select %p669, %s668, 2
        %s671 = smul.u32 8, %s670
        %s672 = smul.u32 2, %s41
        %s673 = ssub.s32 3, %s672
        %p674 = scmp.lt.s32.totalorder %s673, 2
        %s675 = scalar_select %p674, %s673, 2
        %s676 = smul.u32 8, %s675
        %s677 = smul.u32 2, %s41
        %s678 = ssub.s32 3, %s677
        %p679 = scmp.lt.s32.totalorder %s678, 2
        %s680 = scalar_select %p679, %s678, 2
        %s681 = smul.u32 8, %s680
        %v682 = vld [vmem:[%s579] sm:$0xff]
        %v683 = vld [vmem:[%s579 + $0x8] sm:$0xff]
        %v684 = vlaneseq
        %v685 = vand.u32 %v684, 127
        %s686 = smul.u32 %s42, 128
        %v687 = vstv %s686
        %v688 = vadd.s32 %v685, %v687
        %vm689 = vcmp.lt.s32.totalorder %v688, 300
        %v690 = vsel %vm689, %v682, 0.0
        %v691 = vsel %vm689, %v683, 0.0
        %v692 = vpack.c.bf16 %v691, %v690
        %s693 = sshra.s32 %s686, 3
        %s694 = sand.u32 %s686, 7
        %s695 = smul.addr %s693, 4
        %s696 = scalar_lea.vmem [#allocation8], %s695
        %v697 = vld [vmem:[%s696] sm:$0xf]
        %v698 = vld [vmem:[%s696 + $0x4] sm:$0xf]
        %v699 = vld [vmem:[%s696 + $0x8] sm:$0xf]
        %v700 = vld [vmem:[%s696 + $0xc] sm:$0xf]
        %v701 = vld [vmem:[%s696 + $0x10] sm:$0xf]
        %v702 = vld [vmem:[%s696 + $0x14] sm:$0xf]
        %v703 = vld [vmem:[%s696 + $0x18] sm:$0xf]
        %v704 = vld [vmem:[%s696 + $0x1c] sm:$0xf]
        %v705 = vld [vmem:[%s696 + $0x20] sm:$0xf]
        %v706 = vld [vmem:[%s696 + $0x24] sm:$0xf]
        %v707 = vld [vmem:[%s696 + $0x28] sm:$0xf]
        %v708 = vld [vmem:[%s696 + $0x2c] sm:$0xf]
        %v709 = vld [vmem:[%s696 + $0x30] sm:$0xf]
        %v710 = vld [vmem:[%s696 + $0x34] sm:$0xf]
        %v711 = vld [vmem:[%s696 + $0x38] sm:$0xf]
        %v712 = vld [vmem:[%s696 + $0x3c] sm:$0xf]
        %v729 = vunpack.c.l.b16 %v697
        %v730 = vunpack.c.l.b16 %v698
        %v731 = vunpack.c.l.b16 %v699
        %v732 = vunpack.c.l.b16 %v700
        %v733 = vunpack.c.l.b16 %v701
        %v734 = vunpack.c.l.b16 %v702
        %v735 = vunpack.c.l.b16 %v703
        %v736 = vunpack.c.l.b16 %v704
        %v737 = vunpack.c.l.b16 %v705
        %v738 = vunpack.c.l.b16 %v706
        %v739 = vunpack.c.l.b16 %v707
        %v740 = vunpack.c.l.b16 %v708
        %v741 = vunpack.c.l.b16 %v709
        %v742 = vunpack.c.l.b16 %v710
        %v743 = vunpack.c.l.b16 %v711
        %v744 = vunpack.c.l.b16 %v712
        %v745 = vpack.c.b16 %v730, %v729
        %v746 = vpack.c.b16 %v732, %v731
        %v747 = vpack.c.b16 %v734, %v733
        %v748 = vpack.c.b16 %v736, %v735
        %v749 = vpack.c.b16 %v738, %v737
        %v750 = vpack.c.b16 %v740, %v739
        %v751 = vpack.c.b16 %v742, %v741
        %v752 = vpack.c.b16 %v744, %v743
        %761 = vmatpush.bf16.msra.mxu0 %v752
        %762 = vmatpush.bf16.msra.mxu0 %v751
        %763 = vmatpush.bf16.msra.mxu0 %v750
        %764 = vmatpush.bf16.msra.mxu0 %v749
        %765 = vmatpush.bf16.msra.mxu0 %v748
        %766 = vmatpush.bf16.msra.mxu0 %v747
        %767 = vmatpush.bf16.msra.mxu0 %v746
        %768 = vmatpush.bf16.msra.mxu0 %v745
        %769 = vmatmul.bf16.gmra.mxu0 %v692
        %v770 = vpop.f32.mrf.mxu0
        %v771 = vadd.f32 0.0, %v770
        %v772 = vpop.f32.mrf.mxu0
        %v773 = vadd.f32 0.0, %v772
        %774 = vdwg.mxu0
        %p775 = scmp.eq.s32.totalorder %s42, 0
        // Predicated region
        $region109: #{tpu_custom_call.1} parent=79 // pred_check
          %p776 = pneg %p775
        $region110: #{tpu_custom_call.1} parent=79 // pred_check_branch
          %778 = sbr.rel (%p776) target = $region112
        $region111: #{tpu_custom_call.1} parent=79 // pred_region
          %779 = vst [vmem:[#allocation2] sm:$0xff] %v771
          %780 = vst [vmem:[#allocation2 + $0x8] sm:$0xff] %v773
        $region112: #{tpu_custom_call.1} parent=79 // pred_fallthru
          _
        %p781 = scmp.gt.s32.totalorder %s42, 0
        // Predicated region
        $region113: #{tpu_custom_call.1} parent=79 // pred_check
          %p782 = pneg %p781
        $region114: #{tpu_custom_call.1} parent=79 // pred_check_branch
          %784 = sbr.rel (%p782) target = $region116
        $region115: #{tpu_custom_call.1} parent=79 // pred_region
          %v785 = vld [vmem:[#allocation2] sm:$0xff]
          %v786 = vld [vmem:[#allocation2 + $0x8] sm:$0xff]
          %v787 = vadd.f32 %v785, %v771
          %v788 = vadd.f32 %v786, %v773
          %789 = vst [vmem:[#allocation2] sm:$0xff] %v787
          %790 = vst [vmem:[#allocation2 + $0x8] sm:$0xff] %v788
        $region116: #{tpu_custom_call.1} parent=79 // pred_fallthru
          _
        %p791 = scmp.eq.s32.totalorder %s42, 2
        // Predicated region
        $region117: #{tpu_custom_call.1} parent=79 // pred_check
          %p792 = pneg %p791
        $region118: #{tpu_custom_call.1} parent=79 // pred_check_branch
          %794 = sbr.rel (%p792) target = $region120
        $region119: #{tpu_custom_call.1} parent=79 // pred_region
          %v795 = vld [vmem:[#allocation2] sm:$0xff]
          %v796 = vld [vmem:[#allocation2 + $0x8] sm:$0xff]
          %v797 = vld [vmem:[%s3] sm:$0x1]
          %v799 = vperm.slane %v797, 0
          %v801 = vadd.f32 %v795, %v799
          %v802 = vadd.f32 %v796, %v799
          %803 = vadd.xlane.f32.xlu0 %v801
          %v804 = vpop.xlane.xlu0 %803
          %805 = vadd.xlane.f32.xlu0 %v802
          %v806 = vpop.xlane.xlu0 %805
          %v807 = vmul.f32 %v804, 0.02
          %v808 = vmul.f32 %v806, 0.02
          %v809 = vsub.f32 %v801, %v807
          %v810 = vsub.f32 %v802, %v808
          %vm811 = vcmp.lt.s32.totalorder %v685, 50
          %v812 = vsel %vm811, %v809, 0.0
          %v813 = vsel %vm811, %v810, 0.0
          %v814 = vmul.f32 %v812, %v812
          %v815 = vmul.f32 %v813, %v813
          %816 = vadd.xlane.f32.xlu0 %v814
          %v817 = vpop.xlane.xlu0 %816
          %818 = vadd.xlane.f32.xlu0 %v815
          %v819 = vpop.xlane.xlu0 %818
          %v820 = vmul.f32 %v817, 0.02
          %v821 = vmul.f32 %v819, 0.02
          %v822 = vadd.f32 %v820, 1e-05
          %v823 = vadd.f32 %v821, 1e-05
          %v824 = vrsqrt.pop %v822
          %v825 = vmul.f32 %v824, %v822
          %v826 = vmul.f32 %v825, %v824
          %v827 = vmul.f32 0.5, %v826
          %v828 = vsub.f32 1.5, %v827
          %v829 = vmul.f32 %v824, %v828
          %vm830 = vweird.f32 %v822
          %vm831 = vweird.f32 %v824
          %vm832 = vmor %vm830, %vm831
          %v833 = vsel %vm832, %v824, %v829
          %v834 = vrsqrt.pop %v823
          %v835 = vmul.f32 %v834, %v823
          %v836 = vmul.f32 %v835, %v834
          %v837 = vmul.f32 0.5, %v836
          %v838 = vsub.f32 1.5, %v837
          %v839 = vmul.f32 %v834, %v838
          %vm840 = vweird.f32 %v823
          %vm841 = vweird.f32 %v834
          %vm842 = vmor %vm840, %vm841
          %v843 = vsel %vm842, %v834, %v839
          %v844 = vmul.f32 %v809, %v833
          %v845 = vmul.f32 %v810, %v843
          %v846 = vld [vmem:[#allocation9] sm:$0x1]
          %v848 = vperm.slane %v846, 0
          %v850 = vmul.f32 %v844, %v848
          %v851 = vmul.f32 %v845, %v848
          %v852 = vld [vmem:[%s5] sm:$0x1]
          %v854 = vperm.slane %v852, 0
          %v856 = vadd.f32 %v850, %v854
          %v857 = vadd.f32 %v851, %v854
          %v858 = vtanh.pop %v856
          %v859 = vtanh.pop %v857
          %v860 = vpack.c.bf16 %v858, %v858
          %v861 = vpack.c.bf16 %v859, %v859
          %v862 = vld [vmem:[%s589] sm:$0xff]
          %v863 = vld [vmem:[%s589 + $0x8] sm:$0xff]
          %v864 = vpack.c.bf16 %v862, %v862
          %v865 = vpack.c.bf16 %v863, %v863
          %v868 = vunpack.c.l.b16 %v860
          %v869 = vunpack.c.l.b16 %v861
          %v870 = vpack.c.b16 %v869, %v868
          %v874 = vunpack.c.l.b16 %v864
          %v875 = vunpack.c.l.b16 %v865
          %v876 = vpack.c.b16 %v875, %v874
          %v878 = vld [vmem:[#allocation11] sm:$0xff]
          %v879 = vld [vmem:[#allocation11 + $0x8] sm:$0xff]
          %v880 = vld [vmem:[#allocation11 + $0x10] sm:$0xff]
          %v881 = vld [vmem:[#allocation11 + $0x18] sm:$0xff]
          %v882 = vld [vmem:[#allocation11 + $0x20] sm:$0xff]
          %v883 = vld [vmem:[#allocation11 + $0x28] sm:$0xff]
          %v884 = vld [vmem:[#allocation11 + $0x30] sm:$0xff]
          %v885 = vld [vmem:[#allocation11 + $0x38] sm:$0xff]
          %v886 = vld [vmem:[#allocation11 + $0x40] sm:$0xff]
          %v887 = vld [vmem:[#allocation11 + $0x48] sm:$0xff]
          %v888 = vld [vmem:[#allocation11 + $0x50] sm:$0xff]
          %v889 = vld [vmem:[#allocation11 + $0x58] sm:$0xff]
          %v890 = vld [vmem:[#allocation11 + $0x60] sm:$0xff]
          %v891 = vld [vmem:[#allocation11 + $0x68] sm:$0xff]
          %v892 = vld [vmem:[#allocation11 + $0x70] sm:$0xff]
          %v893 = vld [vmem:[#allocation11 + $0x78] sm:$0xff]
          %v894 = vld [vmem:[#allocation11 + $0x80] sm:$0xff]
          %v895 = vld [vmem:[#allocation11 + $0x88] sm:$0xff]
          %v896 = vld [vmem:[#allocation11 + $0x90] sm:$0xff]
          %v897 = vld [vmem:[#allocation11 + $0x98] sm:$0xff]
          %v898 = vld [vmem:[#allocation11 + $0xa0] sm:$0xff]
          %v899 = vld [vmem:[#allocation11 + $0xa8] sm:$0xff]
          %v900 = vld [vmem:[#allocation11 + $0xb0] sm:$0xff]
          %v901 = vld [vmem:[#allocation11 + $0xb8] sm:$0xff]
          %v902 = vld [vmem:[#allocation11 + $0xc0] sm:$0xff]
          %v903 = vld [vmem:[#allocation11 + $0xc8] sm:$0xff]
          %v904 = vld [vmem:[#allocation11 + $0xd0] sm:$0xff]
          %v905 = vld [vmem:[#allocation11 + $0xd8] sm:$0xff]
          %v906 = vld [vmem:[#allocation11 + $0xe0] sm:$0xff]
          %v907 = vld [vmem:[#allocation11 + $0xe8] sm:$0xff]
          %v908 = vld [vmem:[#allocation11 + $0xf0] sm:$0xff]
          %v909 = vld [vmem:[#allocation11 + $0xf8] sm:$0xff]
          %v910 = vld [vmem:[%s7] sm:$0x3]
          %v912 = vperm.slane %v910, 0
          %v913 = vperm.slane %v910, 1
          %v948 = vunpack.c.l.b16 %v878
          %v949 = vunpack.c.h.b16 %v878
          %v950 = vunpack.c.l.b16 %v879
          %v951 = vunpack.c.h.b16 %v879
          %v952 = vunpack.c.l.b16 %v880
          %v953 = vunpack.c.h.b16 %v880
          %v954 = vunpack.c.l.b16 %v881
          %v955 = vunpack.c.h.b16 %v881
          %v956 = vunpack.c.l.b16 %v882
          %v957 = vunpack.c.h.b16 %v882
          %v958 = vunpack.c.l.b16 %v883
          %v959 = vunpack.c.h.b16 %v883
          %v960 = vunpack.c.l.b16 %v884
          %v961 = vunpack.c.h.b16 %v884
          %v962 = vunpack.c.l.b16 %v885
          %v963 = vunpack.c.h.b16 %v885
          %v964 = vunpack.c.l.b16 %v886
          %v965 = vunpack.c.h.b16 %v886
          %v966 = vunpack.c.l.b16 %v887
          %v967 = vunpack.c.h.b16 %v887
          %v968 = vunpack.c.l.b16 %v888
          %v969 = vunpack.c.h.b16 %v888
          %v970 = vunpack.c.l.b16 %v889
          %v971 = vunpack.c.h.b16 %v889
          %v972 = vunpack.c.l.b16 %v890
          %v973 = vunpack.c.h.b16 %v890
          %v974 = vunpack.c.l.b16 %v891
          %v975 = vunpack.c.h.b16 %v891
          %v976 = vunpack.c.l.b16 %v892
          %v977 = vunpack.c.h.b16 %v892
          %v978 = vunpack.c.l.b16 %v893
          %v979 = vunpack.c.h.b16 %v893
          %v980 = vunpack.c.l.b16 %v894
          %v981 = vunpack.c.h.b16 %v894
          %v982 = vunpack.c.l.b16 %v895
          %v983 = vunpack.c.h.b16 %v895
          %v984 = vunpack.c.l.b16 %v896
          %v985 = vunpack.c.h.b16 %v896
          %v986 = vunpack.c.l.b16 %v897
          %v987 = vunpack.c.h.b16 %v897
          %v988 = vunpack.c.l.b16 %v898
          %v989 = vunpack.c.h.b16 %v898
          %v990 = vunpack.c.l.b16 %v899
          %v991 = vunpack.c.h.b16 %v899
          %v992 = vunpack.c.l.b16 %v900
          %v993 = vunpack.c.h.b16 %v900
          %v994 = vunpack.c.l.b16 %v901
          %v995 = vunpack.c.h.b16 %v901
          %v996 = vunpack.c.l.b16 %v902
          %v997 = vunpack.c.h.b16 %v902
          %v998 = vunpack.c.l.b16 %v903
          %v999 = vunpack.c.h.b16 %v903
          %v1000 = vunpack.c.l.b16 %v904
          %v1001 = vunpack.c.h.b16 %v904
          %v1002 = vunpack.c.l.b16 %v905
          %v1003 = vunpack.c.h.b16 %v905
          %v1004 = vunpack.c.l.b16 %v906
          %v1005 = vunpack.c.h.b16 %v906
          %v1006 = vunpack.c.l.b16 %v907
          %v1007 = vunpack.c.h.b16 %v907
          %v1008 = vunpack.c.l.b16 %v908
          %v1009 = vunpack.c.h.b16 %v908
          %v1010 = vunpack.c.l.b16 %v909
          %v1011 = vunpack.c.h.b16 %v909
          %v1012 = vpack.c.b16 %v950, %v948
          %v1013 = vpack.c.b16 %v951, %v949
          %v1014 = vpack.c.b16 %v954, %v952
          %v1015 = vpack.c.b16 %v955, %v953
          %v1016 = vpack.c.b16 %v958, %v956
          %v1017 = vpack.c.b16 %v959, %v957
          %v1018 = vpack.c.b16 %v962, %v960
          %v1019 = vpack.c.b16 %v963, %v961
          %v1020 = vpack.c.b16 %v966, %v964
          %v1021 = vpack.c.b16 %v967, %v965
          %v1022 = vpack.c.b16 %v970, %v968
          %v1023 = vpack.c.b16 %v971, %v969
          %v1024 = vpack.c.b16 %v974, %v972
          %v1025 = vpack.c.b16 %v975, %v973
          %v1026 = vpack.c.b16 %v978, %v976
          %v1027 = vpack.c.b16 %v979, %v977
          %v1028 = vpack.c.b16 %v982, %v980
          %v1029 = vpack.c.b16 %v983, %v981
          %v1030 = vpack.c.b16 %v986, %v984
          %v1031 = vpack.c.b16 %v987, %v985
          %v1032 = vpack.c.b16 %v990, %v988
          %v1033 = vpack.c.b16 %v991, %v989
          %v1034 = vpack.c.b16 %v994, %v992
          %v1035 = vpack.c.b16 %v995, %v993
          %v1036 = vpack.c.b16 %v998, %v996
          %v1037 = vpack.c.b16 %v999, %v997
          %v1038 = vpack.c.b16 %v1002, %v1000
          %v1039 = vpack.c.b16 %v1003, %v1001
          %v1040 = vpack.c.b16 %v1006, %v1004
          %v1041 = vpack.c.b16 %v1007, %v1005
          %v1042 = vpack.c.b16 %v1010, %v1008
          %v1043 = vpack.c.b16 %v1011, %v1009
          %1076 = vmatpush.bf16.msra.mxu0 %v1026
          %1077 = vmatpush.bf16.msra.mxu0 %v1024
          %1078 = vmatpush.bf16.msra.mxu0 %v1022
          %1079 = vmatpush.bf16.msra.mxu0 %v1020
          %1080 = vmatpush.bf16.msra.mxu0 %v1018
          %1081 = vmatpush.bf16.msra.mxu0 %v1016
          %1082 = vmatpush.bf16.msra.mxu0 %v1014
          %1083 = vmatpush.bf16.msra.mxu0 %v1012
          %1084 = vmatmul.bf16.gmra.mxu0 %v870
          %v1085 = vpop.f32.mrf.mxu0
          %v1086 = vadd.f32 %v912, %v1085
          %v1087 = vpop.f32.mrf.mxu0
          %v1088 = vadd.f32 %v912, %v1087
          %1089 = vdwg.mxu0
          %1090 = vmatpush.bf16.msra.mxu0 %v1042
          %1091 = vmatpush.bf16.msra.mxu0 %v1040
          %1092 = vmatpush.bf16.msra.mxu0 %v1038
          %1093 = vmatpush.bf16.msra.mxu0 %v1036
          %1094 = vmatpush.bf16.msra.mxu0 %v1034
          %1095 = vmatpush.bf16.msra.mxu0 %v1032
          %1096 = vmatpush.bf16.msra.mxu0 %v1030
          %1097 = vmatpush.bf16.msra.mxu0 %v1028
          %1098 = vmatmul.bf16.gmra.mxu0 %v876
          %v1099 = vpop.f32.mrf.mxu0
          %v1100 = vadd.f32 %v1086, %v1099
          %v1101 = vpop.f32.mrf.mxu0
          %v1102 = vadd.f32 %v1088, %v1101
          %1103 = vdwg.mxu0
          %1104 = vmatpush.bf16.msra.mxu0 %v1027
          %1105 = vmatpush.bf16.msra.mxu0 %v1025
          %1106 = vmatpush.bf16.msra.mxu0 %v1023
          %1107 = vmatpush.bf16.msra.mxu0 %v1021
          %1108 = vmatpush.bf16.msra.mxu0 %v1019
          %1109 = vmatpush.bf16.msra.mxu0 %v1017
          %1110 = vmatpush.bf16.msra.mxu0 %v1015
          %1111 = vmatpush.bf16.msra.mxu0 %v1013
          %1112 = vmatmul.bf16.gmra.mxu0 %v870
          %v1113 = vpop.f32.mrf.mxu0
          %v1114 = vadd.f32 %v913, %v1113
          %v1115 = vpop.f32.mrf.mxu0
          %v1116 = vadd.f32 %v913, %v1115
          %1117 = vdwg.mxu0
          %1118 = vmatpush.bf16.msra.mxu0 %v1043
          %1119 = vmatpush.bf16.msra.mxu0 %v1041
          %1120 = vmatpush.bf16.msra.mxu0 %v1039
          %1121 = vmatpush.bf16.msra.mxu0 %v1037
          %1122 = vmatpush.bf16.msra.mxu0 %v1035
          %1123 = vmatpush.bf16.msra.mxu0 %v1033
          %1124 = vmatpush.bf16.msra.mxu0 %v1031
          %1125 = vmatpush.bf16.msra.mxu0 %v1029
          %1126 = vmatmul.bf16.gmra.mxu0 %v876
          %v1127 = vpop.f32.mrf.mxu0
          %v1128 = vadd.f32 %v1114, %v1127
          %v1129 = vpop.f32.mrf.mxu0
          %v1130 = vadd.f32 %v1116, %v1129
          %1131 = vdwg.mxu0
          %v1132 = vmax.f32 %v1100, 0.0
          %v1133 = vmax.f32 %v1128, 0.0
          %v1134 = vmax.f32 %v1102, 0.0
          %v1135 = vmax.f32 %v1130, 0.0
          %v1136 = vpack.c.bf16 %v1134, %v1132
          %v1137 = vpack.c.bf16 %v1135, %v1133
          %v1138 = vld [vmem:[#allocation12] sm:$0xf]
          %v1139 = vld [vmem:[#allocation12 + $0x4] sm:$0xf]
          %v1140 = vld [vmem:[#allocation12 + $0x8] sm:$0xf]
          %v1141 = vld [vmem:[#allocation12 + $0xc] sm:$0xf]
          %v1142 = vld [vmem:[#allocation12 + $0x10] sm:$0xf]
          %v1143 = vld [vmem:[#allocation12 + $0x14] sm:$0xf]
          %v1144 = vld [vmem:[#allocation12 + $0x18] sm:$0xf]
          %v1145 = vld [vmem:[#allocation12 + $0x1c] sm:$0xf]
          %v1146 = vld [vmem:[#allocation12 + $0x20] sm:$0xf]
          %v1147 = vld [vmem:[#allocation12 + $0x24] sm:$0xf]
          %v1148 = vld [vmem:[#allocation12 + $0x28] sm:$0xf]
          %v1149 = vld [vmem:[#allocation12 + $0x2c] sm:$0xf]
          %v1150 = vld [vmem:[#allocation12 + $0x30] sm:$0xf]
          %v1151 = vld [vmem:[#allocation12 + $0x34] sm:$0xf]
          %v1152 = vld [vmem:[#allocation12 + $0x38] sm:$0xf]
          %v1153 = vld [vmem:[#allocation12 + $0x3c] sm:$0xf]
          %v1154 = vld [vmem:[%s9] sm:$0x1]
          %v1156 = vperm.slane %v1154, 0
          %v1174 = vunpack.c.l.b16 %v1138
          %v1175 = vunpack.c.l.b16 %v1139
          %v1176 = vunpack.c.l.b16 %v1140
          %v1177 = vunpack.c.l.b16 %v1141
          %v1178 = vunpack.c.l.b16 %v1142
          %v1179 = vunpack.c.l.b16 %v1143
          %v1180 = vunpack.c.l.b16 %v1144
          %v1181 = vunpack.c.l.b16 %v1145
          %v1182 = vunpack.c.l.b16 %v1146
          %v1183 = vunpack.c.l.b16 %v1147
          %v1184 = vunpack.c.l.b16 %v1148
          %v1185 = vunpack.c.l.b16 %v1149
          %v1186 = vunpack.c.l.b16 %v1150
          %v1187 = vunpack.c.l.b16 %v1151
          %v1188 = vunpack.c.l.b16 %v1152
          %v1189 = vunpack.c.l.b16 %v1153
          %v1190 = vpack.c.b16 %v1175, %v1174
          %v1191 = vpack.c.b16 %v1177, %v1176
          %v1192 = vpack.c.b16 %v1179, %v1178
          %v1193 = vpack.c.b16 %v1181, %v1180
          %v1194 = vpack.c.b16 %v1183, %v1182
          %v1195 = vpack.c.b16 %v1185, %v1184
          %v1196 = vpack.c.b16 %v1187, %v1186
          %v1197 = vpack.c.b16 %v1189, %v1188
          %1206 = vmatpush.bf16.msra.mxu0 %v1197
          %1207 = vmatpush.bf16.msra.mxu0 %v1196
          %1208 = vmatpush.bf16.msra.mxu0 %v1195
          %1209 = vmatpush.bf16.msra.mxu0 %v1194
          %1210 = vmatpush.bf16.msra.mxu0 %v1193
          %1211 = vmatpush.bf16.msra.mxu0 %v1192
          %1212 = vmatpush.bf16.msra.mxu0 %v1191
          %1213 = vmatpush.bf16.msra.mxu0 %v1190
          %1214 = vmatmul.bf16.gmra.mxu0 %v1136
          %v1215 = vpop.f32.mrf.mxu0
          %v1216 = vadd.f32 %v1156, %v1215
          %v1217 = vpop.f32.mrf.mxu0
          %v1218 = vadd.f32 %v1156, %v1217
          %1219 = vdwg.mxu0
          %v1220 = vmax.f32 %v1216, 0.0
          %v1221 = vmax.f32 %v1218, 0.0
          %v1222 = vld [vmem:[#allocation14] sm:$0xf]
          %v1223 = vld [vmem:[#allocation14 + $0x4] sm:$0xf]
          %v1224 = vld [vmem:[#allocation14 + $0x8] sm:$0xf]
          %v1225 = vld [vmem:[#allocation14 + $0xc] sm:$0xf]
          %v1226 = vld [vmem:[#allocation14 + $0x10] sm:$0xf]
          %v1227 = vld [vmem:[#allocation14 + $0x14] sm:$0xf]
          %v1228 = vld [vmem:[#allocation14 + $0x18] sm:$0xf]
          %v1229 = vld [vmem:[#allocation14 + $0x1c] sm:$0xf]
          %v1230 = vld [vmem:[#allocation14 + $0x20] sm:$0xf]
          %v1231 = vld [vmem:[#allocation14 + $0x24] sm:$0xf]
          %v1232 = vld [vmem:[#allocation14 + $0x28] sm:$0xf]
          %v1233 = vld [vmem:[#allocation14 + $0x2c] sm:$0xf]
          %v1234 = vld [vmem:[#allocation14 + $0x30] sm:$0xf]
          %v1235 = vld [vmem:[#allocation14 + $0x34] sm:$0xf]
          %v1236 = vld [vmem:[#allocation14 + $0x38] sm:$0xf]
          %v1237 = vld [vmem:[#allocation14 + $0x3c] sm:$0xf]
          %v1238 = vld [vmem:[%s11] sm:$0x1]
          %v1240 = vperm.slane %v1238, 0
          %v1258 = vunpack.c.l.b16 %v1222
          %v1259 = vunpack.c.l.b16 %v1223
          %v1260 = vunpack.c.l.b16 %v1224
          %v1261 = vunpack.c.l.b16 %v1225
          %v1262 = vunpack.c.l.b16 %v1226
          %v1263 = vunpack.c.l.b16 %v1227
          %v1264 = vunpack.c.l.b16 %v1228
          %v1265 = vunpack.c.l.b16 %v1229
          %v1266 = vunpack.c.l.b16 %v1230
          %v1267 = vunpack.c.l.b16 %v1231
          %v1268 = vunpack.c.l.b16 %v1232
          %v1269 = vunpack.c.l.b16 %v1233
          %v1270 = vunpack.c.l.b16 %v1234
          %v1271 = vunpack.c.l.b16 %v1235
          %v1272 = vunpack.c.l.b16 %v1236
          %v1273 = vunpack.c.l.b16 %v1237
          %v1274 = vpack.c.b16 %v1259, %v1258
          %v1275 = vpack.c.b16 %v1261, %v1260
          %v1276 = vpack.c.b16 %v1263, %v1262
          %v1277 = vpack.c.b16 %v1265, %v1264
          %v1278 = vpack.c.b16 %v1267, %v1266
          %v1279 = vpack.c.b16 %v1269, %v1268
          %v1280 = vpack.c.b16 %v1271, %v1270
          %v1281 = vpack.c.b16 %v1273, %v1272
          %1290 = vmatpush.bf16.msra.mxu0 %v1281
          %1291 = vmatpush.bf16.msra.mxu0 %v1280
          %1292 = vmatpush.bf16.msra.mxu0 %v1279
          %1293 = vmatpush.bf16.msra.mxu0 %v1278
          %1294 = vmatpush.bf16.msra.mxu0 %v1277
          %1295 = vmatpush.bf16.msra.mxu0 %v1276
          %1296 = vmatpush.bf16.msra.mxu0 %v1275
          %1297 = vmatpush.bf16.msra.mxu0 %v1274
          %1298 = vmatmul.bf16.gmra.mxu0 %v1137
          %v1299 = vpop.f32.mrf.mxu0
          %v1300 = vadd.f32 %v1240, %v1299
          %v1301 = vpop.f32.mrf.mxu0
          %v1302 = vadd.f32 %v1240, %v1301
          %1303 = vdwg.mxu0
          %v1304 = vmax.f32 %v1300, 0.0
          %v1305 = vmax.f32 %v1302, 0.0
          %v1306 = vld [vmem:[%s12] sm:$0x1]
          %v1308 = vperm.slane %v1306, 0
          %v1310 = vmul.f32 %v1220, %v1308
          %v1311 = vmul.f32 %v1221, %v1308
          %1312 = vadd.xlane.f32.xlu0 %v1310
          %v1313 = vpop.xlane.xlu0 %1312
          %1314 = vadd.xlane.f32.xlu0 %v1311
          %v1315 = vpop.xlane.xlu0 %1314
          %v1316 = vld [vmem:[%s13] sm:$0x1]
          %v1318 = vperm.slane %v1316, 0
          %v1320 = vmul.f32 %v1304, %v1318
          %v1321 = vmul.f32 %v1305, %v1318
          %1322 = vadd.xlane.f32.xlu0 %v1320
          %v1323 = vpop.xlane.xlu0 %1322
          %1324 = vadd.xlane.f32.xlu0 %v1321
          %v1325 = vpop.xlane.xlu0 %1324
          %vm1326 = vcmp.eq.s32.totalorder %v685, 0
          %v1327 = vsel %vm1326, %v1313, 0.0
          %v1328 = vsel %vm1326, %v1315, 0.0
          %vm1329 = vcmp.eq.s32.totalorder %v685, 1
          %v1330 = vsel %vm1329, %v1323, 0.0
          %v1331 = vsel %vm1329, %v1325, 0.0
          %v1332 = vadd.f32 %v1327, %v1330
          %v1333 = vadd.f32 %v1328, %v1331
          %v1334 = vld [vmem:[%s14] sm:$0x1]
          %v1336 = vperm.slane %v1334, 0
          %v1338 = vadd.f32 %v1332, %v1336
          %v1339 = vadd.f32 %v1333, %v1336
          %1340 = vst [vmem:[%s666] sm:$0xff] %v1338
          %1341 = vst [vmem:[%s666 + $0x8] sm:$0xff] %v1339
        $region120: #{tpu_custom_call.1} parent=79 // pred_fallthru
          _
        %s1342 = sand.u32 %s384, 1
        %s1343 = scalar_lea.sflag [#allocation5], %s1342
        %s1344 = sand.u32 %s384, 1
        %s1345 = smul.addr %s1344, 16
        %s1346 = scalar_lea.vmem [#allocation15], %s1345
        // Predicated region
        $region121: #{tpu_custom_call.1} parent=79 // pred_check
          %p1347 = pneg %p394
        $region122: #{tpu_custom_call.1} parent=79 // pred_check_branch
          %1349 = sbr.rel (%p1347) target = $region124
        $region123: #{tpu_custom_call.1} parent=79 // pred_region
          %s1350 = smul.u32 2, %s41
          %s1351 = ssub.s32 3, %s1350
          %p1352 = scmp.lt.s32.totalorder %s1351, 2
          %s1353 = scalar_select %p1352, %s1351, 2
          %s1354 = smul.u32 8, %s1353
          %s1355 = ssub.s32 16, %s1354
          %s1356 = sshll.u32 %s1355, 4
          %1357 = vsyncadd %s1343, %s1356
          %p1358 = scmp.ne.s32.totalorder 0, %s1354
          %s1359 = smul.addr %s1350, 8
          %s1360 = scalar_lea.hbm %s15, %s1359
          %s1361 = smul.u32 8, %s1353
          %s1362 = sshll.u32 %s1346, 4
          %s1363 = int_to_ptr.vmem [resolvable:$true] %s1362
          %s1364 = sshll.u32 %s1360, 4
          %s1365 = int_to_ptr.hbm [resolvable:$true] %s1364
          %s1366 = sshll.u32 %s1361, 4
          %1370 = dma.vmem_to_hbm [thread:$0]  (%p1358), %s1363, %s1366, %s1365, %s1343, 128, 128, 8
        $region124: #{tpu_custom_call.1} parent=79 // pred_fallthru
          _
      $region80: #{tpu_custom_call.1} parent=5 // pred_fallthru
        _
      %p1371 = scmp.le.s32.totalorder 2, %s32
      // Predicated region
      $region125: #{tpu_custom_call.1} parent=5 // pred_check
        %p1372 = pneg %p1371
      $region126: #{tpu_custom_call.1} parent=5 // pred_check_branch
        %1374 = sbr.rel (%p1372) target = $region128
      $region127: #{tpu_custom_call.1} parent=5 // pred_region
        %s1375 = ssub.s32 %s32, 2
        // Predicated region
        $region129: #{tpu_custom_call.1} parent=127 // pred_check
          %p1376 = pneg %p400
        $region130: #{tpu_custom_call.1} parent=127 // pred_check_branch
          %1378 = sbr.rel (%p1376) target = $region132
        $region131: #{tpu_custom_call.1} parent=127 // pred_region
          %s1379 = sand.u32 %s385, 1
          %s1380 = scalar_lea.sflag [#allocation5], %s1379
          %s1381 = sand.u32 %s385, 1
          %s1382 = smul.addr %s1381, 16
          %s1383 = scalar_lea.vmem [#allocation15], %s1382
          %1385 = dma.done %s1380, 256
        $region132: #{tpu_custom_call.1} parent=127 // pred_fallthru
          _
      $region128: #{tpu_custom_call.1} parent=5 // pred_fallthru
        _
    $region6: #{tpu_custom_call.1} parent=1 // loop_footer
      %s36 = sadd.s32 1, %s32
    $region7: #{tpu_custom_call.1} parent=1 // loop_footer_branch
      %31 = sbr.rel target = $region3
    $region8: #{tpu_custom_call.1} parent=1 // loop_exit
      _
    %1386 = vsyncpa [#allocation4], 1
    %s1387 = scalar_lea.sflag [#allocation4], 1
    %1388 = vsyncpa %s1387, 1
    %1389 = vsyncpa [#allocation7], 1
    %s1390 = scalar_lea.sflag [#allocation7], 1
    %1391 = vsyncpa %s1390, 1
    %1392 = vsyncpa [#allocation10], 1
    %1393 = vsyncpa [#allocation13], 1
    %1394 = vsyncpa [#allocation5], 1
    %s1395 = scalar_lea.sflag [#allocation5], 1
    %1396 = vsyncpa %s1395, 1

</llo_original>
